<compile_context>
chip_gen: v5e
topology: v5e:2x2
jax: 0.10.0
libtpu: 0.0.40
codegen_flags: <defaults>
</compile_context>

<pallas_src>
import math

import jax
import jax.numpy as jnp
from jax.experimental import pallas as pl
from jax.experimental.pallas import tpu as pltpu


LANE = 128      # TPU lane width (last dim)
SUBLANE = 8     # TPU sublane width (second-to-last dim)

# PyTorch LSTM gate order is [i, f, g, o]; the kernel uses [i, f, o, g] so the
# three sigmoid gates are contiguous (single EUP stream) and tanh is last.
GATE_PERM = (0, 1, 3, 2)


def _round_up(x, m):
    return (x + m - 1) // m * m


def _pack_gates(w, H, Hp):
    """(rows, 4H) PyTorch gate order -> (rows, 4*Hp) kernel order [i,f,o,g],
    each gate padded to its own Hp-lane tile."""
    rows = w.shape[0]
    w4 = w.reshape(rows, 4, H)[:, GATE_PERM, :]
    w4 = jnp.pad(w4, ((0, 0), (0, 0), (0, Hp - H)))
    return w4.reshape(rows, 4 * Hp)


def _vmem_limit_bytes():
    """Generation-aware scoped-VMEM limit: ~48 MiB on v7x (64 MiB physical),
    96 MiB on v5e/v6e (128 MiB physical)."""
    cap = 128 * 1024 * 1024
    try:
        info = pltpu.get_tpu_info()
        cap = getattr(info, "vmem_capacity_bytes", cap) or cap
    except Exception:
        pass
    return int(min(96 * 1024 * 1024, cap * 3 // 4))


def lstm_kernel(x_ref, w_ih_ref, w_hh_ref, hseq_ref, h_scr, c_scr):
    """One (batch-tile, time-chunk) grid step of the LSTM recurrence.

    x_ref   : (Tc, Bt, E+1)   embedded inputs (ones column folds in the bias)
    w_ih_ref: (E+1, 4*Hp)     input->gates weights (+ bias row), gate-padded
    w_hh_ref: (Hp, 4*Hp)      hidden->gates weights, row + gate padded
    hseq_ref: (Tc, Bt, Hp)    per-step hidden states for this chunk (output)
    h_scr, c_scr: (Bt, Hp) f32  recurrence carry, persists across time chunks
    """
    Hp = w_hh_ref.shape[0]
    Tc = x_ref.shape[0]

    # (h, c) carry persists across the time ("arbitrary") grid axis; it is
    # re-initialised at the first time chunk of every batch tile, so the
    # leading batch axis can be "parallel" (per-core scratch on v7x).
    @pl.when(pl.program_id(1) == 0)
    def _init():
        h_scr[...] = jnp.zeros_like(h_scr)
        c_scr[...] = jnp.zeros_like(c_scr)

    def step(t, carry):
        x_t = x_ref[t]                       # (Bt, E+1), bias via ones column
        h = h_scr[...]
        c = c_scr[...]

        # The x-projection has no dependence on the carry: inside the unrolled
        # body the scheduler issues it ahead of the serial h-projection / EUP
        # chain, so it hides under per-step latency (MXU is otherwise idle).
        gates = (
            jnp.dot(x_t, w_ih_ref[...], preferred_element_type=jnp.float32)
            + jnp.dot(h.astype(w_hh_ref.dtype), w_hh_ref[...],
                      preferred_element_type=jnp.float32)
        )                                     # (Bt, 4*Hp), kernel order [i,f,o,g]

        # One contiguous sigmoid stream over lanes [0, 3*Hp); approx vrcp for
        # the division (EUP latency is the binding resource of this kernel).
        sig = pl.reciprocal(1.0 + jnp.exp(-gates[:, : 3 * Hp]), approx=True)
        i_g = sig[:, 0 * Hp:1 * Hp]
        f_g = sig[:, 1 * Hp:2 * Hp]
        o_g = sig[:, 2 * Hp:3 * Hp]
        g_g = jnp.tanh(gates[:, 3 * Hp:4 * Hp])

        c_new = f_g * c + i_g * g_g
        h_new = o_g * jnp.tanh(c_new)

        h_scr[...] = h_new
        c_scr[...] = c_new
        hseq_ref[t] = h_new                   # lane-dense (Bt, Hp) store
        return carry

    # Moderate unroll: scheduling visibility across steps without code-size /
    # vreg-pressure blowup for long chunks.
    jax.lax.fori_loop(0, Tc, step, 0, unroll=min(Tc, 8))


def encoder_lstm_forward(inputs, params, *, chunk_t=None, batch_tile=None,
                         mxu_dtype=jnp.float32):
    """inputs: (B, T) int32 token ids.  Returns (h_seq (B,T,H), h_final (1,B,H))."""
    B, T = inputs.shape
    emb = params["embedding"]          # (V, E)
    w_ih = params["w_ih"]              # (E, 4H)
    w_hh = params["w_hh"]              # (H, 4H)
    b = params["b"]                    # (1, 4H)
    E = emb.shape[1]
    H = w_hh.shape[0]

    Hp = _round_up(H, LANE)            # each gate padded to its own lane tile
    Bp = _round_up(B, SUBLANE)         # sublane-aligned batch

    # Batch tiles: split across the (v7x) cores when the batch is big enough.
    if batch_tile is None:
        batch_tile = Bp if Bp < 2 * SUBLANE else _round_up(Bp // 2, SUBLANE)
    Bt = min(_round_up(batch_tile, SUBLANE), Bp)
    Bp = _round_up(Bp, Bt)
    n_bt = Bp // Bt

    # Time chunks: sane default (not T), streamed via BlockSpec pipelining.
    Tc = max(1, min(32 if chunk_t is None else chunk_t, T))
    Tp = _round_up(T, Tc)
    n_chunks = Tp // Tc

    # Embedding lookup as a gather, directly in time-major order (no transpose
    # pass over HBM).  Padded time steps / batch rows are wasted serial work in
    # the final chunk only; their outputs are stripped below.
    x = jnp.take(emb, inputs.T, axis=0)                      # (T, B, E)
    x = jnp.pad(x, ((0, Tp - T), (0, Bp - B), (0, 0)))       # (Tp, Bp, E)
    ones = jnp.ones((Tp, Bp, 1), x.dtype)
    x_aug = jnp.concatenate([x, ones], axis=-1).astype(mxu_dtype)   # (Tp, Bp, E+1)

    # Gate-packed / padded weights; bias folded in as an extra W_ih row.
    w_ih_p = _pack_gates(w_ih, H, Hp)                                    # (E, 4Hp)
    b_p = _pack_gates(b, H, Hp)                                          # (1, 4Hp)
    w_ih_aug = jnp.concatenate([w_ih_p, b_p], axis=0).astype(mxu_dtype)  # (E+1, 4Hp)
    w_hh_p = jnp.pad(_pack_gates(w_hh, H, Hp),
                     ((0, Hp - H), (0, 0))).astype(mxu_dtype)            # (Hp, 4Hp)

    hseq = pl.pallas_call(
        lstm_kernel,
        out_shape=jax.ShapeDtypeStruct((Tp, Bp, Hp), jnp.float32),
        grid_spec=pltpu.PrefetchScalarGridSpec(
            num_scalar_prefetch=0,
            grid=(n_bt, n_chunks),
            in_specs=[
                # streamed x chunk
                pl.BlockSpec((Tc, Bt, E + 1), lambda bt, t: (t, bt, 0)),
                # resident weights: constant index_map -> single-buffered.
                pl.BlockSpec((E + 1, 4 * Hp), lambda bt, t: (0, 0),
                             pipeline_mode=pl.Buffered(1)),
                pl.BlockSpec((Hp, 4 * Hp), lambda bt, t: (0, 0),
                             pipeline_mode=pl.Buffered(1)),
            ],
            out_specs=pl.BlockSpec((Tc, Bt, Hp), lambda bt, t: (t, bt, 0)),
            scratch_shapes=[
                pltpu.VMEM((Bt, Hp), jnp.float32),   # h carry (f32 always)
                pltpu.VMEM((Bt, Hp), jnp.float32),   # c carry (f32 always)
            ],
        ),
        compiler_params=pltpu.CompilerParams(
            dimension_semantics=("parallel", "arbitrary"),   # batch || , time serial
            vmem_limit_bytes=_vmem_limit_bytes(),
        ),
    )(x_aug, w_ih_aug, w_hh_p)

    hseq = hseq[:T, :B, :H]                                   # strip padding
    h_seq = jnp.transpose(hseq, (1, 0, 2))                    # (B, T, H) batch_first
    # nn.LSTM h_n (num_layers=1, unidirectional) = state after the last time
    # step, PAD tokens included (the module does not pack sequences).
    h_final = h_seq[:, -1, :][None]                           # (1, B, H)
    return h_seq, h_final


def make_params(vocab_size, pad_idx, embedding_dim=16, lstm_dim=16, seed=0):
    """Deterministic parameter init mirroring PyTorch defaults."""
    k = jax.random.PRNGKey(seed)
    k_emb, k_wih, k_whh, k_bih, k_bhh = jax.random.split(k, 5)

    # nn.Embedding: N(0, 1) with the pad row zeroed.
    emb = jax.random.normal(k_emb, (vocab_size, embedding_dim), jnp.float32)
    emb = emb.at[pad_idx].set(0.0)

    # nn.LSTM: uniform(-1/sqrt(H), 1/sqrt(H)) for all weights and biases.
    bound = 1.0 / math.sqrt(lstm_dim)
    w_ih = jax.random.uniform(k_wih, (4 * lstm_dim, embedding_dim), jnp.float32,
                              -bound, bound)      # PyTorch layout (4H, E)
    w_hh = jax.random.uniform(k_whh, (4 * lstm_dim, lstm_dim), jnp.float32,
                              -bound, bound)      # PyTorch layout (4H, H)
    b_ih = jax.random.uniform(k_bih, (4 * lstm_dim,), jnp.float32, -bound, bound)
    b_hh = jax.random.uniform(k_bhh, (4 * lstm_dim,), jnp.float32, -bound, bound)

    return {
        "embedding": emb,
        "w_ih": w_ih.T,                           # (E, 4H) for x @ W
        "w_hh": w_hh.T,                           # (H, 4H) for h @ W
        "b": (b_ih + b_hh)[None, :],              # (1, 4H)
    }


def reference_forward(inputs, params):
    """Pure-JAX reference of the same forward, for a correctness check."""
    emb = params["embedding"]
    w_ih, w_hh, b = params["w_ih"], params["w_hh"], params["b"]
    H = w_hh.shape[0]
    x = jnp.take(emb, inputs, axis=0)             # (B, T, E)
    B, T, _ = x.shape

    def step(carry, x_t):
        h, c = carry
        gates = x_t @ w_ih + h @ w_hh + b         # PyTorch gate order [i,f,g,o]
        i_g = jax.nn.sigmoid(gates[:, 0 * H:1 * H])
        f_g = jax.nn.sigmoid(gates[:, 1 * H:2 * H])
        g_g = jnp.tanh(gates[:, 2 * H:3 * H])
        o_g = jax.nn.sigmoid(gates[:, 3 * H:4 * H])
        c_new = f_g * c + i_g * g_g
        h_new = o_g * jnp.tanh(c_new)
        return (h_new, c_new), h_new

    h0 = jnp.zeros((B, H), jnp.float32)
    (h_fin, _), h_seq = jax.lax.scan(step, (h0, h0), jnp.transpose(x, (1, 0, 2)))
    return jnp.transpose(h_seq, (1, 0, 2)), h_fin[None]


if __name__ == "__main__":
    vocab_size, pad_idx = 32, 0
    B, T = 2, 8

    params = make_params(vocab_size, pad_idx, seed=0)

    key = jax.random.PRNGKey(0)
    inputs = jax.random.randint(key, (B, T), 0, vocab_size, dtype=jnp.int32)
    inputs = inputs.at[0, -2:].set(pad_idx)       # include some padding tokens

    h_seq, h_final = jax.jit(encoder_lstm_forward)(inputs, params)
    jax.block_until_ready((h_seq, h_final))

    assert h_seq.shape == (B, T, 16)
    assert h_final.shape == (1, B, 16)

    ref_seq, ref_fin = reference_forward(inputs, params)
    # All-f32 path except the approx-vrcp sigmoid on the recurrence; 5e-3 is a
    # comfortable bound for the approx reciprocal compounded over T steps (the
    # exact-sigmoid variant matches to ~1e-6).
    assert jnp.allclose(h_seq, ref_seq, atol=5e-3, rtol=5e-3), \
        float(jnp.max(jnp.abs(h_seq - ref_seq)))
    assert jnp.allclose(h_final, ref_fin, atol=5e-3, rtol=5e-3)

    print("KERNEL_OK")
</pallas_src>

<mosaic_0001>
module attributes {stable_mosaic.version = 11 : i64} {
  func.func @lstm_kernel(%arg0: i32, %arg1: i32, %arg2: memref<8x8x17xf32, #tpu.memory_space<vmem>>, %arg3: memref<17x512xf32, #tpu.memory_space<vmem>>, %arg4: memref<128x512xf32, #tpu.memory_space<vmem>>, %arg5: memref<8x8x128xf32, #tpu.memory_space<vmem>>, %arg6: memref<8x128xf32, #tpu.memory_space<vmem>>, %arg7: memref<8x128xf32, #tpu.memory_space<vmem>>) attributes {dimension_semantics = [#tpu.dimension_semantics<parallel>, #tpu.dimension_semantics<arbitrary>], iteration_bounds = array<i64: 1, 1>, scalar_prefetch = 0 : i64, scratch_operands = 2 : i64, tpu.core_type = #tpu.core_type<tc>, window_params = [{transform_indices = @transform_0, window_bounds = array<i64: 8, 8, 17>}, {pipeline_mode = #tpu.pipeline_mode<synchronous>, transform_indices = @transform_1, window_bounds = array<i64: 17, 512>}, {pipeline_mode = #tpu.pipeline_mode<synchronous>, transform_indices = @transform_2, window_bounds = array<i64: 128, 512>}, {transform_indices = @transform_3, window_bounds = array<i64: 8, 8, 128>}]} {
    %c0_i32 = arith.constant 0 : i32
    %0 = arith.cmpi eq, %arg1, %c0_i32 : i32
    %1 = arith.extui %0 : i1 to i32
    %c0_i32_0 = arith.constant 0 : i32
    %2 = arith.cmpi ne, %1, %c0_i32_0 : i32
    scf.if %2 {
      %cst_160 = arith.constant 0.000000e+00 : f32
      %267 = vector.broadcast %cst_160 : f32 to vector<8x128xf32>
      %c0_161 = arith.constant 0 : index
      %c0_162 = arith.constant 0 : index
      %268 = vector.load %arg6[%c0_161, %c0_162] : memref<8x128xf32, #tpu.memory_space<vmem>>, vector<8x128xf32>
      tpu.vector_store %arg6[%c0_161, %c0_162], %267 {strides = array<i32>} : memref<8x128xf32, #tpu.memory_space<vmem>>, vector<8x128xf32>,
      %cst_163 = arith.constant 0.000000e+00 : f32
      %269 = vector.broadcast %cst_163 : f32 to vector<8x128xf32>
      %c0_164 = arith.constant 0 : index
      %c0_165 = arith.constant 0 : index
      %270 = vector.load %arg7[%c0_164, %c0_165] : memref<8x128xf32, #tpu.memory_space<vmem>>, vector<8x128xf32>
      tpu.vector_store %arg7[%c0_164, %c0_165], %269 {strides = array<i32>} : memref<8x128xf32, #tpu.memory_space<vmem>>, vector<8x128xf32>,
    } else {
    }
    %c0_i32_1 = arith.constant 0 : i32
    %3 = arith.index_cast %c0_i32_1 : i32 to index
    %c0 = arith.constant 0 : index
    %c0_2 = arith.constant 0 : index
    %4 = vector.load %arg2[%3, %c0, %c0_2] : memref<8x8x17xf32, #tpu.memory_space<vmem>>, vector<1x8x17xf32>
    %5 = vector.shape_cast %4 : vector<1x8x17xf32> to vector<8x17xf32>
    %c0_3 = arith.constant 0 : index
    %c0_4 = arith.constant 0 : index
    %6 = vector.load %arg6[%c0_3, %c0_4] : memref<8x128xf32, #tpu.memory_space<vmem>>, vector<8x128xf32>
    %c0_5 = arith.constant 0 : index
    %c0_6 = arith.constant 0 : index
    %7 = vector.load %arg7[%c0_5, %c0_6] : memref<8x128xf32, #tpu.memory_space<vmem>>, vector<8x128xf32>
    %c0_7 = arith.constant 0 : index
    %c0_8 = arith.constant 0 : index
    %8 = vector.load %arg3[%c0_7, %c0_8] : memref<17x512xf32, #tpu.memory_space<vmem>>, vector<17x512xf32>
    %cst = arith.constant dense<0.000000e+00> : vector<8x512xf32>
    %9 = tpu.matmul %5, %8, %cst {dimension_numbers = #tpu.dot_dimension_numbers<[1], [0], [0], [1], [0, 0, 1, 1], [], []>} : vector<8x17xf32>, vector<17x512xf32>, vector<8x512xf32> -> vector<8x512xf32>
    %c0_9 = arith.constant 0 : index
    %c0_10 = arith.constant 0 : index
    %10 = vector.load %arg4[%c0_9, %c0_10] : memref<128x512xf32, #tpu.memory_space<vmem>>, vector<128x512xf32>
    %cst_11 = arith.constant dense<0.000000e+00> : vector<8x512xf32>
    %11 = tpu.matmul %6, %10, %cst_11 {dimension_numbers = #tpu.dot_dimension_numbers<[1], [0], [0], [1], [0, 0, 1, 1], [], []>} : vector<8x128xf32>, vector<128x512xf32>, vector<8x512xf32> -> vector<8x512xf32>
    %12 = arith.addf %9, %11 : vector<8x512xf32>
    %13 = vector.extract_strided_slice %12 {offsets = [0, 0], sizes = [8, 384], strides = [1, 1]} : vector<8x512xf32> to vector<8x384xf32>
    %cst_12 = arith.constant 0.000000e+00 : f32
    %14 = vector.broadcast %cst_12 : f32 to vector<8x384xf32>
    %15 = arith.subf %14, %13 : vector<8x384xf32>
    %16 = math.exp %15 : vector<8x384xf32>
    %cst_13 = arith.constant 1.000000e+00 : f32
    %17 = vector.broadcast %cst_13 : f32 to vector<8x384xf32>
    %18 = arith.addf %17, %16 : vector<8x384xf32>
    %19 = tpu.reciprocal %18 {approx = true} : vector<8x384xf32> -> vector<8x384xf32>
    %20 = vector.extract_strided_slice %19 {offsets = [0, 0], sizes = [8, 128], strides = [1, 1]} : vector<8x384xf32> to vector<8x128xf32>
    %21 = vector.extract_strided_slice %19 {offsets = [0, 128], sizes = [8, 128], strides = [1, 1]} : vector<8x384xf32> to vector<8x128xf32>
    %22 = vector.extract_strided_slice %19 {offsets = [0, 256], sizes = [8, 128], strides = [1, 1]} : vector<8x384xf32> to vector<8x128xf32>
    %23 = vector.extract_strided_slice %12 {offsets = [0, 384], sizes = [8, 128], strides = [1, 1]} : vector<8x512xf32> to vector<8x128xf32>
    %24 = math.tanh %23 : vector<8x128xf32>
    %25 = arith.mulf %21, %7 : vector<8x128xf32>
    %26 = arith.mulf %20, %24 : vector<8x128xf32>
    %27 = arith.addf %25, %26 : vector<8x128xf32>
    %28 = math.tanh %27 : vector<8x128xf32>
    %29 = arith.mulf %22, %28 : vector<8x128xf32>
    %c0_14 = arith.constant 0 : index
    %c0_15 = arith.constant 0 : index
    %30 = vector.load %arg6[%c0_14, %c0_15] : memref<8x128xf32, #tpu.memory_space<vmem>>, vector<8x128xf32>
    tpu.vector_store %arg6[%c0_14, %c0_15], %29 {strides = array<i32>} : memref<8x128xf32, #tpu.memory_space<vmem>>, vector<8x128xf32>,
    %c0_16 = arith.constant 0 : index
    %c0_17 = arith.constant 0 : index
    %31 = vector.load %arg7[%c0_16, %c0_17] : memref<8x128xf32, #tpu.memory_space<vmem>>, vector<8x128xf32>
    tpu.vector_store %arg7[%c0_16, %c0_17], %27 {strides = array<i32>} : memref<8x128xf32, #tpu.memory_space<vmem>>, vector<8x128xf32>,
    %32 = arith.index_cast %c0_i32_1 : i32 to index
    %c0_18 = arith.constant 0 : index
    %c0_19 = arith.constant 0 : index
    %33 = vector.load %arg5[%32, %c0_18, %c0_19] : memref<8x8x128xf32, #tpu.memory_space<vmem>>, vector<1x8x128xf32>
    %34 = vector.shape_cast %33 : vector<1x8x128xf32> to vector<8x128xf32>
    %35 = vector.shape_cast %29 : vector<8x128xf32> to vector<1x8x128xf32>
    tpu.vector_store %arg5[%32, %c0_18, %c0_19], %35 {strides = array<i32>} : memref<8x8x128xf32, #tpu.memory_space<vmem>>, vector<1x8x128xf32>,
    %c1_i32 = arith.constant 1 : i32
    %36 = arith.index_cast %c1_i32 : i32 to index
    %c0_20 = arith.constant 0 : index
    %c0_21 = arith.constant 0 : index
    %37 = vector.load %arg2[%36, %c0_20, %c0_21] : memref<8x8x17xf32, #tpu.memory_space<vmem>>, vector<1x8x17xf32>
    %38 = vector.shape_cast %37 : vector<1x8x17xf32> to vector<8x17xf32>
    %c0_22 = arith.constant 0 : index
    %c0_23 = arith.constant 0 : index
    %39 = vector.load %arg6[%c0_22, %c0_23] : memref<8x128xf32, #tpu.memory_space<vmem>>, vector<8x128xf32>
    %c0_24 = arith.constant 0 : index
    %c0_25 = arith.constant 0 : index
    %40 = vector.load %arg7[%c0_24, %c0_25] : memref<8x128xf32, #tpu.memory_space<vmem>>, vector<8x128xf32>
    %c0_26 = arith.constant 0 : index
    %c0_27 = arith.constant 0 : index
    %41 = vector.load %arg3[%c0_26, %c0_27] : memref<17x512xf32, #tpu.memory_space<vmem>>, vector<17x512xf32>
    %cst_28 = arith.constant dense<0.000000e+00> : vector<8x512xf32>
    %42 = tpu.matmul %38, %41, %cst_28 {dimension_numbers = #tpu.dot_dimension_numbers<[1], [0], [0], [1], [0, 0, 1, 1], [], []>} : vector<8x17xf32>, vector<17x512xf32>, vector<8x512xf32> -> vector<8x512xf32>
    %c0_29 = arith.constant 0 : index
    %c0_30 = arith.constant 0 : index
    %43 = vector.load %arg4[%c0_29, %c0_30] : memref<128x512xf32, #tpu.memory_space<vmem>>, vector<128x512xf32>
    %cst_31 = arith.constant dense<0.000000e+00> : vector<8x512xf32>
    %44 = tpu.matmul %39, %43, %cst_31 {dimension_numbers = #tpu.dot_dimension_numbers<[1], [0], [0], [1], [0, 0, 1, 1], [], []>} : vector<8x128xf32>, vector<128x512xf32>, vector<8x512xf32> -> vector<8x512xf32>
    %45 = arith.addf %42, %44 : vector<8x512xf32>
    %46 = vector.extract_strided_slice %45 {offsets = [0, 0], sizes = [8, 384], strides = [1, 1]} : vector<8x512xf32> to vector<8x384xf32>
    %cst_32 = arith.constant 0.000000e+00 : f32
    %47 = vector.broadcast %cst_32 : f32 to vector<8x384xf32>
    %48 = arith.subf %47, %46 : vector<8x384xf32>
    %49 = math.exp %48 : vector<8x384xf32>
    %cst_33 = arith.constant 1.000000e+00 : f32
    %50 = vector.broadcast %cst_33 : f32 to vector<8x384xf32>
    %51 = arith.addf %50, %49 : vector<8x384xf32>
    %52 = tpu.reciprocal %51 {approx = true} : vector<8x384xf32> -> vector<8x384xf32>
    %53 = vector.extract_strided_slice %52 {offsets = [0, 0], sizes = [8, 128], strides = [1, 1]} : vector<8x384xf32> to vector<8x128xf32>
    %54 = vector.extract_strided_slice %52 {offsets = [0, 128], sizes = [8, 128], strides = [1, 1]} : vector<8x384xf32> to vector<8x128xf32>
    %55 = vector.extract_strided_slice %52 {offsets = [0, 256], sizes = [8, 128], strides = [1, 1]} : vector<8x384xf32> to vector<8x128xf32>
    %56 = vector.extract_strided_slice %45 {offsets = [0, 384], sizes = [8, 128], strides = [1, 1]} : vector<8x512xf32> to vector<8x128xf32>
    %57 = math.tanh %56 : vector<8x128xf32>
    %58 = arith.mulf %54, %40 : vector<8x128xf32>
    %59 = arith.mulf %53, %57 : vector<8x128xf32>
    %60 = arith.addf %58, %59 : vector<8x128xf32>
    %61 = math.tanh %60 : vector<8x128xf32>
    %62 = arith.mulf %55, %61 : vector<8x128xf32>
    %c0_34 = arith.constant 0 : index
    %c0_35 = arith.constant 0 : index
    %63 = vector.load %arg6[%c0_34, %c0_35] : memref<8x128xf32, #tpu.memory_space<vmem>>, vector<8x128xf32>
    tpu.vector_store %arg6[%c0_34, %c0_35], %62 {strides = array<i32>} : memref<8x128xf32, #tpu.memory_space<vmem>>, vector<8x128xf32>,
    %c0_36 = arith.constant 0 : index
    %c0_37 = arith.constant 0 : index
    %64 = vector.load %arg7[%c0_36, %c0_37] : memref<8x128xf32, #tpu.memory_space<vmem>>, vector<8x128xf32>
    tpu.vector_store %arg7[%c0_36, %c0_37], %60 {strides = array<i32>} : memref<8x128xf32, #tpu.memory_space<vmem>>, vector<8x128xf32>,
    %65 = arith.index_cast %c1_i32 : i32 to index
    %c0_38 = arith.constant 0 : index
    %c0_39 = arith.constant 0 : index
    %66 = vector.load %arg5[%65, %c0_38, %c0_39] : memref<8x8x128xf32, #tpu.memory_space<vmem>>, vector<1x8x128xf32>
    %67 = vector.shape_cast %66 : vector<1x8x128xf32> to vector<8x128xf32>
    %68 = vector.shape_cast %62 : vector<8x128xf32> to vector<1x8x128xf32>
    tpu.vector_store %arg5[%65, %c0_38, %c0_39], %68 {strides = array<i32>} : memref<8x8x128xf32, #tpu.memory_space<vmem>>, vector<1x8x128xf32>,
    %c2_i32 = arith.constant 2 : i32
    %69 = arith.index_cast %c2_i32 : i32 to index
    %c0_40 = arith.constant 0 : index
    %c0_41 = arith.constant 0 : index
    %70 = vector.load %arg2[%69, %c0_40, %c0_41] : memref<8x8x17xf32, #tpu.memory_space<vmem>>, vector<1x8x17xf32>
    %71 = vector.shape_cast %70 : vector<1x8x17xf32> to vector<8x17xf32>
    %c0_42 = arith.constant 0 : index
    %c0_43 = arith.constant 0 : index
    %72 = vector.load %arg6[%c0_42, %c0_43] : memref<8x128xf32, #tpu.memory_space<vmem>>, vector<8x128xf32>
    %c0_44 = arith.constant 0 : index
    %c0_45 = arith.constant 0 : index
    %73 = vector.load %arg7[%c0_44, %c0_45] : memref<8x128xf32, #tpu.memory_space<vmem>>, vector<8x128xf32>
    %c0_46 = arith.constant 0 : index
    %c0_47 = arith.constant 0 : index
    %74 = vector.load %arg3[%c0_46, %c0_47] : memref<17x512xf32, #tpu.memory_space<vmem>>, vector<17x512xf32>
    %cst_48 = arith.constant dense<0.000000e+00> : vector<8x512xf32>
    %75 = tpu.matmul %71, %74, %cst_48 {dimension_numbers = #tpu.dot_dimension_numbers<[1], [0], [0], [1], [0, 0, 1, 1], [], []>} : vector<8x17xf32>, vector<17x512xf32>, vector<8x512xf32> -> vector<8x512xf32>
    %c0_49 = arith.constant 0 : index
    %c0_50 = arith.constant 0 : index
    %76 = vector.load %arg4[%c0_49, %c0_50] : memref<128x512xf32, #tpu.memory_space<vmem>>, vector<128x512xf32>
    %cst_51 = arith.constant dense<0.000000e+00> : vector<8x512xf32>
    %77 = tpu.matmul %72, %76, %cst_51 {dimension_numbers = #tpu.dot_dimension_numbers<[1], [0], [0], [1], [0, 0, 1, 1], [], []>} : vector<8x128xf32>, vector<128x512xf32>, vector<8x512xf32> -> vector<8x512xf32>
    %78 = arith.addf %75, %77 : vector<8x512xf32>
    %79 = vector.extract_strided_slice %78 {offsets = [0, 0], sizes = [8, 384], strides = [1, 1]} : vector<8x512xf32> to vector<8x384xf32>
    %cst_52 = arith.constant 0.000000e+00 : f32
    %80 = vector.broadcast %cst_52 : f32 to vector<8x384xf32>
    %81 = arith.subf %80, %79 : vector<8x384xf32>
    %82 = math.exp %81 : vector<8x384xf32>
    %cst_53 = arith.constant 1.000000e+00 : f32
    %83 = vector.broadcast %cst_53 : f32 to vector<8x384xf32>
    %84 = arith.addf %83, %82 : vector<8x384xf32>
    %85 = tpu.reciprocal %84 {approx = true} : vector<8x384xf32> -> vector<8x384xf32>
    %86 = vector.extract_strided_slice %85 {offsets = [0, 0], sizes = [8, 128], strides = [1, 1]} : vector<8x384xf32> to vector<8x128xf32>
    %87 = vector.extract_strided_slice %85 {offsets = [0, 128], sizes = [8, 128], strides = [1, 1]} : vector<8x384xf32> to vector<8x128xf32>
    %88 = vector.extract_strided_slice %85 {offsets = [0, 256], sizes = [8, 128], strides = [1, 1]} : vector<8x384xf32> to vector<8x128xf32>
    %89 = vector.extract_strided_slice %78 {offsets = [0, 384], sizes = [8, 128], strides = [1, 1]} : vector<8x512xf32> to vector<8x128xf32>
    %90 = math.tanh %89 : vector<8x128xf32>
    %91 = arith.mulf %87, %73 : vector<8x128xf32>
    %92 = arith.mulf %86, %90 : vector<8x128xf32>
    %93 = arith.addf %91, %92 : vector<8x128xf32>
    %94 = math.tanh %93 : vector<8x128xf32>
    %95 = arith.mulf %88, %94 : vector<8x128xf32>
    %c0_54 = arith.constant 0 : index
    %c0_55 = arith.constant 0 : index
    %96 = vector.load %arg6[%c0_54, %c0_55] : memref<8x128xf32, #tpu.memory_space<vmem>>, vector<8x128xf32>
    tpu.vector_store %arg6[%c0_54, %c0_55], %95 {strides = array<i32>} : memref<8x128xf32, #tpu.memory_space<vmem>>, vector<8x128xf32>,
    %c0_56 = arith.constant 0 : index
    %c0_57 = arith.constant 0 : index
    %97 = vector.load %arg7[%c0_56, %c0_57] : memref<8x128xf32, #tpu.memory_space<vmem>>, vector<8x128xf32>
    tpu.vector_store %arg7[%c0_56, %c0_57], %93 {strides = array<i32>} : memref<8x128xf32, #tpu.memory_space<vmem>>, vector<8x128xf32>,
    %98 = arith.index_cast %c2_i32 : i32 to index
    %c0_58 = arith.constant 0 : index
    %c0_59 = arith.constant 0 : index
    %99 = vector.load %arg5[%98, %c0_58, %c0_59] : memref<8x8x128xf32, #tpu.memory_space<vmem>>, vector<1x8x128xf32>
    %100 = vector.shape_cast %99 : vector<1x8x128xf32> to vector<8x128xf32>
    %101 = vector.shape_cast %95 : vector<8x128xf32> to vector<1x8x128xf32>
    tpu.vector_store %arg5[%98, %c0_58, %c0_59], %101 {strides = array<i32>} : memref<8x8x128xf32, #tpu.memory_space<vmem>>, vector<1x8x128xf32>,
    %c3_i32 = arith.constant 3 : i32
    %102 = arith.index_cast %c3_i32 : i32 to index
    %c0_60 = arith.constant 0 : index
    %c0_61 = arith.constant 0 : index
    %103 = vector.load %arg2[%102, %c0_60, %c0_61] : memref<8x8x17xf32, #tpu.memory_space<vmem>>, vector<1x8x17xf32>
    %104 = vector.shape_cast %103 : vector<1x8x17xf32> to vector<8x17xf32>
    %c0_62 = arith.constant 0 : index
    %c0_63 = arith.constant 0 : index
    %105 = vector.load %arg6[%c0_62, %c0_63] : memref<8x128xf32, #tpu.memory_space<vmem>>, vector<8x128xf32>
    %c0_64 = arith.constant 0 : index
    %c0_65 = arith.constant 0 : index
    %106 = vector.load %arg7[%c0_64, %c0_65] : memref<8x128xf32, #tpu.memory_space<vmem>>, vector<8x128xf32>
    %c0_66 = arith.constant 0 : index
    %c0_67 = arith.constant 0 : index
    %107 = vector.load %arg3[%c0_66, %c0_67] : memref<17x512xf32, #tpu.memory_space<vmem>>, vector<17x512xf32>
    %cst_68 = arith.constant dense<0.000000e+00> : vector<8x512xf32>
    %108 = tpu.matmul %104, %107, %cst_68 {dimension_numbers = #tpu.dot_dimension_numbers<[1], [0], [0], [1], [0, 0, 1, 1], [], []>} : vector<8x17xf32>, vector<17x512xf32>, vector<8x512xf32> -> vector<8x512xf32>
    %c0_69 = arith.constant 0 : index
    %c0_70 = arith.constant 0 : index
    %109 = vector.load %arg4[%c0_69, %c0_70] : memref<128x512xf32, #tpu.memory_space<vmem>>, vector<128x512xf32>
    %cst_71 = arith.constant dense<0.000000e+00> : vector<8x512xf32>
    %110 = tpu.matmul %105, %109, %cst_71 {dimension_numbers = #tpu.dot_dimension_numbers<[1], [0], [0], [1], [0, 0, 1, 1], [], []>} : vector<8x128xf32>, vector<128x512xf32>, vector<8x512xf32> -> vector<8x512xf32>
    %111 = arith.addf %108, %110 : vector<8x512xf32>
    %112 = vector.extract_strided_slice %111 {offsets = [0, 0], sizes = [8, 384], strides = [1, 1]} : vector<8x512xf32> to vector<8x384xf32>
    %cst_72 = arith.constant 0.000000e+00 : f32
    %113 = vector.broadcast %cst_72 : f32 to vector<8x384xf32>
    %114 = arith.subf %113, %112 : vector<8x384xf32>
    %115 = math.exp %114 : vector<8x384xf32>
    %cst_73 = arith.constant 1.000000e+00 : f32
    %116 = vector.broadcast %cst_73 : f32 to vector<8x384xf32>
    %117 = arith.addf %116, %115 : vector<8x384xf32>
    %118 = tpu.reciprocal %117 {approx = true} : vector<8x384xf32> -> vector<8x384xf32>
    %119 = vector.extract_strided_slice %118 {offsets = [0, 0], sizes = [8, 128], strides = [1, 1]} : vector<8x384xf32> to vector<8x128xf32>
    %120 = vector.extract_strided_slice %118 {offsets = [0, 128], sizes = [8, 128], strides = [1, 1]} : vector<8x384xf32> to vector<8x128xf32>
    %121 = vector.extract_strided_slice %118 {offsets = [0, 256], sizes = [8, 128], strides = [1, 1]} : vector<8x384xf32> to vector<8x128xf32>
    %122 = vector.extract_strided_slice %111 {offsets = [0, 384], sizes = [8, 128], strides = [1, 1]} : vector<8x512xf32> to vector<8x128xf32>
    %123 = math.tanh %122 : vector<8x128xf32>
    %124 = arith.mulf %120, %106 : vector<8x128xf32>
    %125 = arith.mulf %119, %123 : vector<8x128xf32>
    %126 = arith.addf %124, %125 : vector<8x128xf32>
    %127 = math.tanh %126 : vector<8x128xf32>
    %128 = arith.mulf %121, %127 : vector<8x128xf32>
    %c0_74 = arith.constant 0 : index
    %c0_75 = arith.constant 0 : index
    %129 = vector.load %arg6[%c0_74, %c0_75] : memref<8x128xf32, #tpu.memory_space<vmem>>, vector<8x128xf32>
    tpu.vector_store %arg6[%c0_74, %c0_75], %128 {strides = array<i32>} : memref<8x128xf32, #tpu.memory_space<vmem>>, vector<8x128xf32>,
    %c0_76 = arith.constant 0 : index
    %c0_77 = arith.constant 0 : index
    %130 = vector.load %arg7[%c0_76, %c0_77] : memref<8x128xf32, #tpu.memory_space<vmem>>, vector<8x128xf32>
    tpu.vector_store %arg7[%c0_76, %c0_77], %126 {strides = array<i32>} : memref<8x128xf32, #tpu.memory_space<vmem>>, vector<8x128xf32>,
    %131 = arith.index_cast %c3_i32 : i32 to index
    %c0_78 = arith.constant 0 : index
    %c0_79 = arith.constant 0 : index
    %132 = vector.load %arg5[%131, %c0_78, %c0_79] : memref<8x8x128xf32, #tpu.memory_space<vmem>>, vector<1x8x128xf32>
    %133 = vector.shape_cast %132 : vector<1x8x128xf32> to vector<8x128xf32>
    %134 = vector.shape_cast %128 : vector<8x128xf32> to vector<1x8x128xf32>
    tpu.vector_store %arg5[%131, %c0_78, %c0_79], %134 {strides = array<i32>} : memref<8x8x128xf32, #tpu.memory_space<vmem>>, vector<1x8x128xf32>,
    %c4_i32 = arith.constant 4 : i32
    %135 = arith.index_cast %c4_i32 : i32 to index
    %c0_80 = arith.constant 0 : index
    %c0_81 = arith.constant 0 : index
    %136 = vector.load %arg2[%135, %c0_80, %c0_81] : memref<8x8x17xf32, #tpu.memory_space<vmem>>, vector<1x8x17xf32>
    %137 = vector.shape_cast %136 : vector<1x8x17xf32> to vector<8x17xf32>
    %c0_82 = arith.constant 0 : index
    %c0_83 = arith.constant 0 : index
    %138 = vector.load %arg6[%c0_82, %c0_83] : memref<8x128xf32, #tpu.memory_space<vmem>>, vector<8x128xf32>
    %c0_84 = arith.constant 0 : index
    %c0_85 = arith.constant 0 : index
    %139 = vector.load %arg7[%c0_84, %c0_85] : memref<8x128xf32, #tpu.memory_space<vmem>>, vector<8x128xf32>
    %c0_86 = arith.constant 0 : index
    %c0_87 = arith.constant 0 : index
    %140 = vector.load %arg3[%c0_86, %c0_87] : memref<17x512xf32, #tpu.memory_space<vmem>>, vector<17x512xf32>
    %cst_88 = arith.constant dense<0.000000e+00> : vector<8x512xf32>
    %141 = tpu.matmul %137, %140, %cst_88 {dimension_numbers = #tpu.dot_dimension_numbers<[1], [0], [0], [1], [0, 0, 1, 1], [], []>} : vector<8x17xf32>, vector<17x512xf32>, vector<8x512xf32> -> vector<8x512xf32>
    %c0_89 = arith.constant 0 : index
    %c0_90 = arith.constant 0 : index
    %142 = vector.load %arg4[%c0_89, %c0_90] : memref<128x512xf32, #tpu.memory_space<vmem>>, vector<128x512xf32>
    %cst_91 = arith.constant dense<0.000000e+00> : vector<8x512xf32>
    %143 = tpu.matmul %138, %142, %cst_91 {dimension_numbers = #tpu.dot_dimension_numbers<[1], [0], [0], [1], [0, 0, 1, 1], [], []>} : vector<8x128xf32>, vector<128x512xf32>, vector<8x512xf32> -> vector<8x512xf32>
    %144 = arith.addf %141, %143 : vector<8x512xf32>
    %145 = vector.extract_strided_slice %144 {offsets = [0, 0], sizes = [8, 384], strides = [1, 1]} : vector<8x512xf32> to vector<8x384xf32>
    %cst_92 = arith.constant 0.000000e+00 : f32
    %146 = vector.broadcast %cst_92 : f32 to vector<8x384xf32>
    %147 = arith.subf %146, %145 : vector<8x384xf32>
    %148 = math.exp %147 : vector<8x384xf32>
    %cst_93 = arith.constant 1.000000e+00 : f32
    %149 = vector.broadcast %cst_93 : f32 to vector<8x384xf32>
    %150 = arith.addf %149, %148 : vector<8x384xf32>
    %151 = tpu.reciprocal %150 {approx = true} : vector<8x384xf32> -> vector<8x384xf32>
    %152 = vector.extract_strided_slice %151 {offsets = [0, 0], sizes = [8, 128], strides = [1, 1]} : vector<8x384xf32> to vector<8x128xf32>
    %153 = vector.extract_strided_slice %151 {offsets = [0, 128], sizes = [8, 128], strides = [1, 1]} : vector<8x384xf32> to vector<8x128xf32>
    %154 = vector.extract_strided_slice %151 {offsets = [0, 256], sizes = [8, 128], strides = [1, 1]} : vector<8x384xf32> to vector<8x128xf32>
    %155 = vector.extract_strided_slice %144 {offsets = [0, 384], sizes = [8, 128], strides = [1, 1]} : vector<8x512xf32> to vector<8x128xf32>
    %156 = math.tanh %155 : vector<8x128xf32>
    %157 = arith.mulf %153, %139 : vector<8x128xf32>
    %158 = arith.mulf %152, %156 : vector<8x128xf32>
    %159 = arith.addf %157, %158 : vector<8x128xf32>
    %160 = math.tanh %159 : vector<8x128xf32>
    %161 = arith.mulf %154, %160 : vector<8x128xf32>
    %c0_94 = arith.constant 0 : index
    %c0_95 = arith.constant 0 : index
    %162 = vector.load %arg6[%c0_94, %c0_95] : memref<8x128xf32, #tpu.memory_space<vmem>>, vector<8x128xf32>
    tpu.vector_store %arg6[%c0_94, %c0_95], %161 {strides = array<i32>} : memref<8x128xf32, #tpu.memory_space<vmem>>, vector<8x128xf32>,
    %c0_96 = arith.constant 0 : index
    %c0_97 = arith.constant 0 : index
    %163 = vector.load %arg7[%c0_96, %c0_97] : memref<8x128xf32, #tpu.memory_space<vmem>>, vector<8x128xf32>
    tpu.vector_store %arg7[%c0_96, %c0_97], %159 {strides = array<i32>} : memref<8x128xf32, #tpu.memory_space<vmem>>, vector<8x128xf32>,
    %164 = arith.index_cast %c4_i32 : i32 to index
    %c0_98 = arith.constant 0 : index
    %c0_99 = arith.constant 0 : index
    %165 = vector.load %arg5[%164, %c0_98, %c0_99] : memref<8x8x128xf32, #tpu.memory_space<vmem>>, vector<1x8x128xf32>
    %166 = vector.shape_cast %165 : vector<1x8x128xf32> to vector<8x128xf32>
    %167 = vector.shape_cast %161 : vector<8x128xf32> to vector<1x8x128xf32>
    tpu.vector_store %arg5[%164, %c0_98, %c0_99], %167 {strides = array<i32>} : memref<8x8x128xf32, #tpu.memory_space<vmem>>, vector<1x8x128xf32>,
    %c5_i32 = arith.constant 5 : i32
    %168 = arith.index_cast %c5_i32 : i32 to index
    %c0_100 = arith.constant 0 : index
    %c0_101 = arith.constant 0 : index
    %169 = vector.load %arg2[%168, %c0_100, %c0_101] : memref<8x8x17xf32, #tpu.memory_space<vmem>>, vector<1x8x17xf32>
    %170 = vector.shape_cast %169 : vector<1x8x17xf32> to vector<8x17xf32>
    %c0_102 = arith.constant 0 : index
    %c0_103 = arith.constant 0 : index
    %171 = vector.load %arg6[%c0_102, %c0_103] : memref<8x128xf32, #tpu.memory_space<vmem>>, vector<8x128xf32>
    %c0_104 = arith.constant 0 : index
    %c0_105 = arith.constant 0 : index
    %172 = vector.load %arg7[%c0_104, %c0_105] : memref<8x128xf32, #tpu.memory_space<vmem>>, vector<8x128xf32>
    %c0_106 = arith.constant 0 : index
    %c0_107 = arith.constant 0 : index
    %173 = vector.load %arg3[%c0_106, %c0_107] : memref<17x512xf32, #tpu.memory_space<vmem>>, vector<17x512xf32>
    %cst_108 = arith.constant dense<0.000000e+00> : vector<8x512xf32>
    %174 = tpu.matmul %170, %173, %cst_108 {dimension_numbers = #tpu.dot_dimension_numbers<[1], [0], [0], [1], [0, 0, 1, 1], [], []>} : vector<8x17xf32>, vector<17x512xf32>, vector<8x512xf32> -> vector<8x512xf32>
    %c0_109 = arith.constant 0 : index
    %c0_110 = arith.constant 0 : index
    %175 = vector.load %arg4[%c0_109, %c0_110] : memref<128x512xf32, #tpu.memory_space<vmem>>, vector<128x512xf32>
    %cst_111 = arith.constant dense<0.000000e+00> : vector<8x512xf32>
    %176 = tpu.matmul %171, %175, %cst_111 {dimension_numbers = #tpu.dot_dimension_numbers<[1], [0], [0], [1], [0, 0, 1, 1], [], []>} : vector<8x128xf32>, vector<128x512xf32>, vector<8x512xf32> -> vector<8x512xf32>
    %177 = arith.addf %174, %176 : vector<8x512xf32>
    %178 = vector.extract_strided_slice %177 {offsets = [0, 0], sizes = [8, 384], strides = [1, 1]} : vector<8x512xf32> to vector<8x384xf32>
    %cst_112 = arith.constant 0.000000e+00 : f32
    %179 = vector.broadcast %cst_112 : f32 to vector<8x384xf32>
    %180 = arith.subf %179, %178 : vector<8x384xf32>
    %181 = math.exp %180 : vector<8x384xf32>
    %cst_113 = arith.constant 1.000000e+00 : f32
    %182 = vector.broadcast %cst_113 : f32 to vector<8x384xf32>
    %183 = arith.addf %182, %181 : vector<8x384xf32>
    %184 = tpu.reciprocal %183 {approx = true} : vector<8x384xf32> -> vector<8x384xf32>
    %185 = vector.extract_strided_slice %184 {offsets = [0, 0], sizes = [8, 128], strides = [1, 1]} : vector<8x384xf32> to vector<8x128xf32>
    %186 = vector.extract_strided_slice %184 {offsets = [0, 128], sizes = [8, 128], strides = [1, 1]} : vector<8x384xf32> to vector<8x128xf32>
    %187 = vector.extract_strided_slice %184 {offsets = [0, 256], sizes = [8, 128], strides = [1, 1]} : vector<8x384xf32> to vector<8x128xf32>
    %188 = vector.extract_strided_slice %177 {offsets = [0, 384], sizes = [8, 128], strides = [1, 1]} : vector<8x512xf32> to vector<8x128xf32>
    %189 = math.tanh %188 : vector<8x128xf32>
    %190 = arith.mulf %186, %172 : vector<8x128xf32>
    %191 = arith.mulf %185, %189 : vector<8x128xf32>
    %192 = arith.addf %190, %191 : vector<8x128xf32>
    %193 = math.tanh %192 : vector<8x128xf32>
    %194 = arith.mulf %187, %193 : vector<8x128xf32>
    %c0_114 = arith.constant 0 : index
    %c0_115 = arith.constant 0 : index
    %195 = vector.load %arg6[%c0_114, %c0_115] : memref<8x128xf32, #tpu.memory_space<vmem>>, vector<8x128xf32>
    tpu.vector_store %arg6[%c0_114, %c0_115], %194 {strides = array<i32>} : memref<8x128xf32, #tpu.memory_space<vmem>>, vector<8x128xf32>,
    %c0_116 = arith.constant 0 : index
    %c0_117 = arith.constant 0 : index
    %196 = vector.load %arg7[%c0_116, %c0_117] : memref<8x128xf32, #tpu.memory_space<vmem>>, vector<8x128xf32>
    tpu.vector_store %arg7[%c0_116, %c0_117], %192 {strides = array<i32>} : memref<8x128xf32, #tpu.memory_space<vmem>>, vector<8x128xf32>,
    %197 = arith.index_cast %c5_i32 : i32 to index
    %c0_118 = arith.constant 0 : index
    %c0_119 = arith.constant 0 : index
    %198 = vector.load %arg5[%197, %c0_118, %c0_119] : memref<8x8x128xf32, #tpu.memory_space<vmem>>, vector<1x8x128xf32>
    %199 = vector.shape_cast %198 : vector<1x8x128xf32> to vector<8x128xf32>
    %200 = vector.shape_cast %194 : vector<8x128xf32> to vector<1x8x128xf32>
    tpu.vector_store %arg5[%197, %c0_118, %c0_119], %200 {strides = array<i32>} : memref<8x8x128xf32, #tpu.memory_space<vmem>>, vector<1x8x128xf32>,
    %c6_i32 = arith.constant 6 : i32
    %201 = arith.index_cast %c6_i32 : i32 to index
    %c0_120 = arith.constant 0 : index
    %c0_121 = arith.constant 0 : index
    %202 = vector.load %arg2[%201, %c0_120, %c0_121] : memref<8x8x17xf32, #tpu.memory_space<vmem>>, vector<1x8x17xf32>
    %203 = vector.shape_cast %202 : vector<1x8x17xf32> to vector<8x17xf32>
    %c0_122 = arith.constant 0 : index
    %c0_123 = arith.constant 0 : index
    %204 = vector.load %arg6[%c0_122, %c0_123] : memref<8x128xf32, #tpu.memory_space<vmem>>, vector<8x128xf32>
    %c0_124 = arith.constant 0 : index
    %c0_125 = arith.constant 0 : index
    %205 = vector.load %arg7[%c0_124, %c0_125] : memref<8x128xf32, #tpu.memory_space<vmem>>, vector<8x128xf32>
    %c0_126 = arith.constant 0 : index
    %c0_127 = arith.constant 0 : index
    %206 = vector.load %arg3[%c0_126, %c0_127] : memref<17x512xf32, #tpu.memory_space<vmem>>, vector<17x512xf32>
    %cst_128 = arith.constant dense<0.000000e+00> : vector<8x512xf32>
    %207 = tpu.matmul %203, %206, %cst_128 {dimension_numbers = #tpu.dot_dimension_numbers<[1], [0], [0], [1], [0, 0, 1, 1], [], []>} : vector<8x17xf32>, vector<17x512xf32>, vector<8x512xf32> -> vector<8x512xf32>
    %c0_129 = arith.constant 0 : index
    %c0_130 = arith.constant 0 : index
    %208 = vector.load %arg4[%c0_129, %c0_130] : memref<128x512xf32, #tpu.memory_space<vmem>>, vector<128x512xf32>
    %cst_131 = arith.constant dense<0.000000e+00> : vector<8x512xf32>
    %209 = tpu.matmul %204, %208, %cst_131 {dimension_numbers = #tpu.dot_dimension_numbers<[1], [0], [0], [1], [0, 0, 1, 1], [], []>} : vector<8x128xf32>, vector<128x512xf32>, vector<8x512xf32> -> vector<8x512xf32>
    %210 = arith.addf %207, %209 : vector<8x512xf32>
    %211 = vector.extract_strided_slice %210 {offsets = [0, 0], sizes = [8, 384], strides = [1, 1]} : vector<8x512xf32> to vector<8x384xf32>
    %cst_132 = arith.constant 0.000000e+00 : f32
    %212 = vector.broadcast %cst_132 : f32 to vector<8x384xf32>
    %213 = arith.subf %212, %211 : vector<8x384xf32>
    %214 = math.exp %213 : vector<8x384xf32>
    %cst_133 = arith.constant 1.000000e+00 : f32
    %215 = vector.broadcast %cst_133 : f32 to vector<8x384xf32>
    %216 = arith.addf %215, %214 : vector<8x384xf32>
    %217 = tpu.reciprocal %216 {approx = true} : vector<8x384xf32> -> vector<8x384xf32>
    %218 = vector.extract_strided_slice %217 {offsets = [0, 0], sizes = [8, 128], strides = [1, 1]} : vector<8x384xf32> to vector<8x128xf32>
    %219 = vector.extract_strided_slice %217 {offsets = [0, 128], sizes = [8, 128], strides = [1, 1]} : vector<8x384xf32> to vector<8x128xf32>
    %220 = vector.extract_strided_slice %217 {offsets = [0, 256], sizes = [8, 128], strides = [1, 1]} : vector<8x384xf32> to vector<8x128xf32>
    %221 = vector.extract_strided_slice %210 {offsets = [0, 384], sizes = [8, 128], strides = [1, 1]} : vector<8x512xf32> to vector<8x128xf32>
    %222 = math.tanh %221 : vector<8x128xf32>
    %223 = arith.mulf %219, %205 : vector<8x128xf32>
    %224 = arith.mulf %218, %222 : vector<8x128xf32>
    %225 = arith.addf %223, %224 : vector<8x128xf32>
    %226 = math.tanh %225 : vector<8x128xf32>
    %227 = arith.mulf %220, %226 : vector<8x128xf32>
    %c0_134 = arith.constant 0 : index
    %c0_135 = arith.constant 0 : index
    %228 = vector.load %arg6[%c0_134, %c0_135] : memref<8x128xf32, #tpu.memory_space<vmem>>, vector<8x128xf32>
    tpu.vector_store %arg6[%c0_134, %c0_135], %227 {strides = array<i32>} : memref<8x128xf32, #tpu.memory_space<vmem>>, vector<8x128xf32>,
    %c0_136 = arith.constant 0 : index
    %c0_137 = arith.constant 0 : index
    %229 = vector.load %arg7[%c0_136, %c0_137] : memref<8x128xf32, #tpu.memory_space<vmem>>, vector<8x128xf32>
    tpu.vector_store %arg7[%c0_136, %c0_137], %225 {strides = array<i32>} : memref<8x128xf32, #tpu.memory_space<vmem>>, vector<8x128xf32>,
    %230 = arith.index_cast %c6_i32 : i32 to index
    %c0_138 = arith.constant 0 : index
    %c0_139 = arith.constant 0 : index
    %231 = vector.load %arg5[%230, %c0_138, %c0_139] : memref<8x8x128xf32, #tpu.memory_space<vmem>>, vector<1x8x128xf32>
    %232 = vector.shape_cast %231 : vector<1x8x128xf32> to vector<8x128xf32>
    %233 = vector.shape_cast %227 : vector<8x128xf32> to vector<1x8x128xf32>
    tpu.vector_store %arg5[%230, %c0_138, %c0_139], %233 {strides = array<i32>} : memref<8x8x128xf32, #tpu.memory_space<vmem>>, vector<1x8x128xf32>,
    %c7_i32 = arith.constant 7 : i32
    %234 = arith.index_cast %c7_i32 : i32 to index
    %c0_140 = arith.constant 0 : index
    %c0_141 = arith.constant 0 : index
    %235 = vector.load %arg2[%234, %c0_140, %c0_141] : memref<8x8x17xf32, #tpu.memory_space<vmem>>, vector<1x8x17xf32>
    %236 = vector.shape_cast %235 : vector<1x8x17xf32> to vector<8x17xf32>
    %c0_142 = arith.constant 0 : index
    %c0_143 = arith.constant 0 : index
    %237 = vector.load %arg6[%c0_142, %c0_143] : memref<8x128xf32, #tpu.memory_space<vmem>>, vector<8x128xf32>
    %c0_144 = arith.constant 0 : index
    %c0_145 = arith.constant 0 : index
    %238 = vector.load %arg7[%c0_144, %c0_145] : memref<8x128xf32, #tpu.memory_space<vmem>>, vector<8x128xf32>
    %c0_146 = arith.constant 0 : index
    %c0_147 = arith.constant 0 : index
    %239 = vector.load %arg3[%c0_146, %c0_147] : memref<17x512xf32, #tpu.memory_space<vmem>>, vector<17x512xf32>
    %cst_148 = arith.constant dense<0.000000e+00> : vector<8x512xf32>
    %240 = tpu.matmul %236, %239, %cst_148 {dimension_numbers = #tpu.dot_dimension_numbers<[1], [0], [0], [1], [0, 0, 1, 1], [], []>} : vector<8x17xf32>, vector<17x512xf32>, vector<8x512xf32> -> vector<8x512xf32>
    %c0_149 = arith.constant 0 : index
    %c0_150 = arith.constant 0 : index
    %241 = vector.load %arg4[%c0_149, %c0_150] : memref<128x512xf32, #tpu.memory_space<vmem>>, vector<128x512xf32>
    %cst_151 = arith.constant dense<0.000000e+00> : vector<8x512xf32>
    %242 = tpu.matmul %237, %241, %cst_151 {dimension_numbers = #tpu.dot_dimension_numbers<[1], [0], [0], [1], [0, 0, 1, 1], [], []>} : vector<8x128xf32>, vector<128x512xf32>, vector<8x512xf32> -> vector<8x512xf32>
    %243 = arith.addf %240, %242 : vector<8x512xf32>
    %244 = vector.extract_strided_slice %243 {offsets = [0, 0], sizes = [8, 384], strides = [1, 1]} : vector<8x512xf32> to vector<8x384xf32>
    %cst_152 = arith.constant 0.000000e+00 : f32
    %245 = vector.broadcast %cst_152 : f32 to vector<8x384xf32>
    %246 = arith.subf %245, %244 : vector<8x384xf32>
    %247 = math.exp %246 : vector<8x384xf32>
    %cst_153 = arith.constant 1.000000e+00 : f32
    %248 = vector.broadcast %cst_153 : f32 to vector<8x384xf32>
    %249 = arith.addf %248, %247 : vector<8x384xf32>
    %250 = tpu.reciprocal %249 {approx = true} : vector<8x384xf32> -> vector<8x384xf32>
    %251 = vector.extract_strided_slice %250 {offsets = [0, 0], sizes = [8, 128], strides = [1, 1]} : vector<8x384xf32> to vector<8x128xf32>
    %252 = vector.extract_strided_slice %250 {offsets = [0, 128], sizes = [8, 128], strides = [1, 1]} : vector<8x384xf32> to vector<8x128xf32>
    %253 = vector.extract_strided_slice %250 {offsets = [0, 256], sizes = [8, 128], strides = [1, 1]} : vector<8x384xf32> to vector<8x128xf32>
    %254 = vector.extract_strided_slice %243 {offsets = [0, 384], sizes = [8, 128], strides = [1, 1]} : vector<8x512xf32> to vector<8x128xf32>
    %255 = math.tanh %254 : vector<8x128xf32>
    %256 = arith.mulf %252, %238 : vector<8x128xf32>
    %257 = arith.mulf %251, %255 : vector<8x128xf32>
    %258 = arith.addf %256, %257 : vector<8x128xf32>
    %259 = math.tanh %258 : vector<8x128xf32>
    %260 = arith.mulf %253, %259 : vector<8x128xf32>
    %c0_154 = arith.constant 0 : index
    %c0_155 = arith.constant 0 : index
    %261 = vector.load %arg6[%c0_154, %c0_155] : memref<8x128xf32, #tpu.memory_space<vmem>>, vector<8x128xf32>
    tpu.vector_store %arg6[%c0_154, %c0_155], %260 {strides = array<i32>} : memref<8x128xf32, #tpu.memory_space<vmem>>, vector<8x128xf32>,
    %c0_156 = arith.constant 0 : index
    %c0_157 = arith.constant 0 : index
    %262 = vector.load %arg7[%c0_156, %c0_157] : memref<8x128xf32, #tpu.memory_space<vmem>>, vector<8x128xf32>
    tpu.vector_store %arg7[%c0_156, %c0_157], %258 {strides = array<i32>} : memref<8x128xf32, #tpu.memory_space<vmem>>, vector<8x128xf32>,
    %263 = arith.index_cast %c7_i32 : i32 to index
    %c0_158 = arith.constant 0 : index
    %c0_159 = arith.constant 0 : index
    %264 = vector.load %arg5[%263, %c0_158, %c0_159] : memref<8x8x128xf32, #tpu.memory_space<vmem>>, vector<1x8x128xf32>
    %265 = vector.shape_cast %264 : vector<1x8x128xf32> to vector<8x128xf32>
    %266 = vector.shape_cast %260 : vector<8x128xf32> to vector<1x8x128xf32>
    tpu.vector_store %arg5[%263, %c0_158, %c0_159], %266 {strides = array<i32>} : memref<8x8x128xf32, #tpu.memory_space<vmem>>, vector<1x8x128xf32>,
    %c8_i32 = arith.constant 8 : i32
    return
  }
  func.func @transform_0(%arg0: i32, %arg1: i32) -> (i32, i32, i32) {
    %c0_i32 = arith.constant 0 : i32
    %c0_i32_0 = arith.constant 0 : i32
    return %arg1, %arg0, %c0_i32 : i32, i32, i32
  }
  func.func @transform_1(%arg0: i32, %arg1: i32) -> (i32, i32) {
    %c0_i32 = arith.constant 0 : i32
    %c0_i32_0 = arith.constant 0 : i32
    %c0_i32_1 = arith.constant 0 : i32
    return %c0_i32, %c0_i32_0 : i32, i32
  }
  func.func @transform_2(%arg0: i32, %arg1: i32) -> (i32, i32) {
    %c0_i32 = arith.constant 0 : i32
    %c0_i32_0 = arith.constant 0 : i32
    %c0_i32_1 = arith.constant 0 : i32
    return %c0_i32, %c0_i32_0 : i32, i32
  }
  func.func @transform_3(%arg0: i32, %arg1: i32) -> (i32, i32, i32) {
    %c0_i32 = arith.constant 0 : i32
    %c0_i32_0 = arith.constant 0 : i32
    return %arg1, %arg0, %c0_i32 : i32, i32, i32
  }
}

</mosaic_0001>

<llo_original>
// kernel: encoder_lstm_forward.1
$region0: #{encoder_lstm_forward.1}
  #allocation0 [shape = 'u32[]', space=smem, size = 0x4, offset = 0x4, fixed_abs, tag = 'smem constant byte address 0x4 - core index']
  #allocation1 [shape = 'u32[72,128]{1,0:T(1,128)}', space=vmem, size = 0x9000, scoped, tag = 'internal scratch']
  #allocation2 [shape = 'f32[8,128]{1,0:T(8,128)}', space=vmem, size = 0x1000, scoped, tag = 'scratch operand']
  #allocation3 [shape = 'f32[8,128]{1,0:T(8,128)}', space=vmem, size = 0x1000, scoped, tag = 'scratch operand']
  %s0 = inlined_call_operand.vmem [shape: f32[8,8,17], index: 0, kind: input, shape index: {}]
  %s1 = inlined_call_operand.vmem [shape: f32[17,512], index: 1, kind: input, shape index: {}]
  %s2 = inlined_call_operand.vmem [shape: f32[128,512], index: 2, kind: input, shape index: {}]
  %s3 = inlined_call_operand.vmem [shape: f32[8,8,128], index: 3, kind: output, shape index: {}]
  %s4 = sld [smem:[#allocation0]]
  $region26: #{encoder_lstm_forward.1} parent=0
    _
  %s6 = ssub.s32 1, %s4
  %s7 = scalar_select 0, %s6, %s4
  // Predicated region
  $region2: #{encoder_lstm_forward.1} parent=0 // pred_check
    _
  $region3: #{encoder_lstm_forward.1} parent=0 // pred_check_branch
    %9 = sbr.rel (0) target = $region5
  $region4: #{encoder_lstm_forward.1} parent=0 // pred_region
    _
  $region5: #{encoder_lstm_forward.1} parent=0 // pred_fallthru
    _
  // Predicated region
  $region6: #{encoder_lstm_forward.1} parent=0 // pred_check
    _
  $region7: #{encoder_lstm_forward.1} parent=0 // pred_check_branch
    %11 = sbr.rel (0) target = $region9
  $region8: #{encoder_lstm_forward.1} parent=0 // pred_region
    _
  $region9: #{encoder_lstm_forward.1} parent=0 // pred_fallthru
    _
  // Predicated region
  $region10: #{encoder_lstm_forward.1} parent=0 // pred_check
    _
  $region11: #{encoder_lstm_forward.1} parent=0 // pred_check_branch
    %13 = sbr.rel (0) target = $region13
  $region12: #{encoder_lstm_forward.1} parent=0 // pred_region
    _
  $region13: #{encoder_lstm_forward.1} parent=0 // pred_fallthru
    _
  %p14 = scmp.eq.s32.totalorder 0, 0
  // Predicated region
  $region14: #{encoder_lstm_forward.1} parent=0 // pred_check
    %p15 = pneg %p14
  $region15: #{encoder_lstm_forward.1} parent=0 // pred_check_branch
    %17 = sbr.rel (%p15) target = $region17
  $region16: #{encoder_lstm_forward.1} parent=0 // pred_region
    %18 = vst [vmem:[#allocation2] sm:$0xff] 0.0
    %19 = vst [vmem:[#allocation3] sm:$0xff] 0.0
  $region17: #{encoder_lstm_forward.1} parent=0 // pred_fallthru
    _
  %v20 = vld [vmem:[%s0] sm:$0xff]
  %v21 = vld [vmem:[#allocation2] sm:$0xff]
  %v22 = vld [vmem:[#allocation3] sm:$0xff]
  %v23 = vld [vmem:[%s1] sm:$0xff]
  %v24 = vld [vmem:[%s1 + $0x8] sm:$0xff]
  %v25 = vld [vmem:[%s1 + $0x10] sm:$0xff]
  %v26 = vld [vmem:[%s1 + $0x18] sm:$0xff]
  %v27 = vld [vmem:[%s1 + $0x20] sm:$0xff]
  %v28 = vld [vmem:[%s1 + $0x28] sm:$0xff]
  %v29 = vld [vmem:[%s1 + $0x30] sm:$0xff]
  %v30 = vld [vmem:[%s1 + $0x38] sm:$0xff]
  %v31 = vld [vmem:[%s1 + $0x40] sm:$0x1]
  %v32 = vld [vmem:[%s1 + $0x48] sm:$0x1]
  %v33 = vld [vmem:[%s1 + $0x50] sm:$0x1]
  %v34 = vld [vmem:[%s1 + $0x58] sm:$0x1]
  %v35 = vld [vmem:[%s2] sm:$0xff]
  %v36 = vld [vmem:[%s2 + $0x8] sm:$0xff]
  %v37 = vld [vmem:[%s2 + $0x10] sm:$0xff]
  %v38 = vld [vmem:[%s2 + $0x18] sm:$0xff]
  %v39 = vld [vmem:[%s2 + $0x20] sm:$0xff]
  %v40 = vld [vmem:[%s2 + $0x28] sm:$0xff]
  %v41 = vld [vmem:[%s2 + $0x30] sm:$0xff]
  %v42 = vld [vmem:[%s2 + $0x38] sm:$0xff]
  %v43 = vld [vmem:[%s2 + $0x40] sm:$0xff]
  %v44 = vld [vmem:[%s2 + $0x48] sm:$0xff]
  %v45 = vld [vmem:[%s2 + $0x50] sm:$0xff]
  %v46 = vld [vmem:[%s2 + $0x58] sm:$0xff]
  %v47 = vld [vmem:[%s2 + $0x60] sm:$0xff]
  %v48 = vld [vmem:[%s2 + $0x68] sm:$0xff]
  %v49 = vld [vmem:[%s2 + $0x70] sm:$0xff]
  %v50 = vld [vmem:[%s2 + $0x78] sm:$0xff]
  %v51 = vld [vmem:[%s2 + $0x80] sm:$0xff]
  %v52 = vld [vmem:[%s2 + $0x88] sm:$0xff]
  %v53 = vld [vmem:[%s2 + $0x90] sm:$0xff]
  %v54 = vld [vmem:[%s2 + $0x98] sm:$0xff]
  %v55 = vld [vmem:[%s2 + $0xa0] sm:$0xff]
  %v56 = vld [vmem:[%s2 + $0xa8] sm:$0xff]
  %v57 = vld [vmem:[%s2 + $0xb0] sm:$0xff]
  %v58 = vld [vmem:[%s2 + $0xb8] sm:$0xff]
  %v59 = vld [vmem:[%s2 + $0xc0] sm:$0xff]
  %v60 = vld [vmem:[%s2 + $0xc8] sm:$0xff]
  %v61 = vld [vmem:[%s2 + $0xd0] sm:$0xff]
  %v62 = vld [vmem:[%s2 + $0xd8] sm:$0xff]
  %v63 = vld [vmem:[%s2 + $0xe0] sm:$0xff]
  %v64 = vld [vmem:[%s2 + $0xe8] sm:$0xff]
  %v65 = vld [vmem:[%s2 + $0xf0] sm:$0xff]
  %v66 = vld [vmem:[%s2 + $0xf8] sm:$0xff]
  %v67 = vld [vmem:[%s2 + $0x100] sm:$0xff]
  %v68 = vld [vmem:[%s2 + $0x108] sm:$0xff]
  %v69 = vld [vmem:[%s2 + $0x110] sm:$0xff]
  %v70 = vld [vmem:[%s2 + $0x118] sm:$0xff]
  %v71 = vld [vmem:[%s2 + $0x120] sm:$0xff]
  %v72 = vld [vmem:[%s2 + $0x128] sm:$0xff]
  %v73 = vld [vmem:[%s2 + $0x130] sm:$0xff]
  %v74 = vld [vmem:[%s2 + $0x138] sm:$0xff]
  %v75 = vld [vmem:[%s2 + $0x140] sm:$0xff]
  %v76 = vld [vmem:[%s2 + $0x148] sm:$0xff]
  %v77 = vld [vmem:[%s2 + $0x150] sm:$0xff]
  %v78 = vld [vmem:[%s2 + $0x158] sm:$0xff]
  %v79 = vld [vmem:[%s2 + $0x160] sm:$0xff]
  %v80 = vld [vmem:[%s2 + $0x168] sm:$0xff]
  %v81 = vld [vmem:[%s2 + $0x170] sm:$0xff]
  %v82 = vld [vmem:[%s2 + $0x178] sm:$0xff]
  %v83 = vld [vmem:[%s2 + $0x180] sm:$0xff]
  %v84 = vld [vmem:[%s2 + $0x188] sm:$0xff]
  %v85 = vld [vmem:[%s2 + $0x190] sm:$0xff]
  %v86 = vld [vmem:[%s2 + $0x198] sm:$0xff]
  %v87 = vld [vmem:[%s2 + $0x1a0] sm:$0xff]
  %v88 = vld [vmem:[%s2 + $0x1a8] sm:$0xff]
  %v89 = vld [vmem:[%s2 + $0x1b0] sm:$0xff]
  %v90 = vld [vmem:[%s2 + $0x1b8] sm:$0xff]
  %v91 = vld [vmem:[%s2 + $0x1c0] sm:$0xff]
  %v92 = vld [vmem:[%s2 + $0x1c8] sm:$0xff]
  %v93 = vld [vmem:[%s2 + $0x1d0] sm:$0xff]
  %v94 = vld [vmem:[%s2 + $0x1d8] sm:$0xff]
  %v95 = vld [vmem:[%s2 + $0x1e0] sm:$0xff]
  %v96 = vld [vmem:[%s2 + $0x1e8] sm:$0xff]
  %v97 = vld [vmem:[%s2 + $0x1f0] sm:$0xff]
  %v98 = vld [vmem:[%s2 + $0x1f8] sm:$0xff]
  %99 = vmatpush.msra.mxu0 %v95
  %100 = vmatpush.msra.mxu0 %v91
  %101 = vmatpush.msra.mxu0 %v87
  %102 = vmatpush.msra.mxu0 %v83
  %103 = vmatpush.msra.mxu0 %v79
  %104 = vmatpush.msra.mxu0 %v75
  %105 = vmatpush.msra.mxu0 %v71
  %106 = vmatpush.msra.mxu0 %v67
  %107 = vmatpush.msra.mxu0 %v63
  %108 = vmatpush.msra.mxu0 %v59
  %109 = vmatpush.msra.mxu0 %v55
  %110 = vmatpush.msra.mxu0 %v51
  %111 = vmatpush.msra.mxu0 %v47
  %112 = vmatpush.msra.mxu0 %v43
  %113 = vmatpush.msra.mxu0 %v39
  %114 = vmatpush.msra.mxu0 %v35
  %115 = vmatmul.f32.gmra.mxu0 %v21
  %v116 = vpop.f32.mrf.mxu0
  %v117 = vadd.f32 0.0, %v116
  %118 = vdwg.mxu0
  %119 = vmatpush.msra.mxu0 %v96
  %120 = vmatpush.msra.mxu0 %v92
  %121 = vmatpush.msra.mxu0 %v88
  %122 = vmatpush.msra.mxu0 %v84
  %123 = vmatpush.msra.mxu0 %v80
  %124 = vmatpush.msra.mxu0 %v76
  %125 = vmatpush.msra.mxu0 %v72
  %126 = vmatpush.msra.mxu0 %v68
  %127 = vmatpush.msra.mxu0 %v64
  %128 = vmatpush.msra.mxu0 %v60
  %129 = vmatpush.msra.mxu0 %v56
  %130 = vmatpush.msra.mxu0 %v52
  %131 = vmatpush.msra.mxu0 %v48
  %132 = vmatpush.msra.mxu0 %v44
  %133 = vmatpush.msra.mxu0 %v40
  %134 = vmatpush.msra.mxu0 %v36
  %135 = vmatmul.f32.gmra.mxu0 %v21
  %v136 = vpop.f32.mrf.mxu0
  %v137 = vadd.f32 0.0, %v136
  %138 = vdwg.mxu0
  %139 = vmatpush.msra.mxu0 %v97
  %140 = vmatpush.msra.mxu0 %v93
  %141 = vmatpush.msra.mxu0 %v89
  %142 = vmatpush.msra.mxu0 %v85
  %143 = vmatpush.msra.mxu0 %v81
  %144 = vmatpush.msra.mxu0 %v77
  %145 = vmatpush.msra.mxu0 %v73
  %146 = vmatpush.msra.mxu0 %v69
  %147 = vmatpush.msra.mxu0 %v65
  %148 = vmatpush.msra.mxu0 %v61
  %149 = vmatpush.msra.mxu0 %v57
  %150 = vmatpush.msra.mxu0 %v53
  %151 = vmatpush.msra.mxu0 %v49
  %152 = vmatpush.msra.mxu0 %v45
  %153 = vmatpush.msra.mxu0 %v41
  %154 = vmatpush.msra.mxu0 %v37
  %155 = vmatmul.f32.gmra.mxu0 %v21
  %v156 = vpop.f32.mrf.mxu0
  %v157 = vadd.f32 0.0, %v156
  %158 = vdwg.mxu0
  %159 = vmatpush.msra.mxu0 %v98
  %160 = vmatpush.msra.mxu0 %v94
  %161 = vmatpush.msra.mxu0 %v90
  %162 = vmatpush.msra.mxu0 %v86
  %163 = vmatpush.msra.mxu0 %v82
  %164 = vmatpush.msra.mxu0 %v78
  %165 = vmatpush.msra.mxu0 %v74
  %166 = vmatpush.msra.mxu0 %v70
  %167 = vmatpush.msra.mxu0 %v66
  %168 = vmatpush.msra.mxu0 %v62
  %169 = vmatpush.msra.mxu0 %v58
  %170 = vmatpush.msra.mxu0 %v54
  %171 = vmatpush.msra.mxu0 %v50
  %172 = vmatpush.msra.mxu0 %v46
  %173 = vmatpush.msra.mxu0 %v42
  %174 = vmatpush.msra.mxu0 %v38
  %175 = vmatmul.f32.gmra.mxu0 %v21
  %v176 = vpop.f32.mrf.mxu0
  %v177 = vadd.f32 0.0, %v176
  %178 = vdwg.mxu0
  %vm179 = vcmask 138240
  %v181 = vsel %vm179, %v20, 0
  %vm183 = vcmask 1040384
  %v185 = vsel %vm183, %v31, 0
  %v188 = vsel %vm183, %v32, 0
  %v191 = vsel %vm183, %v33, 0
  %v194 = vsel %vm183, %v34, 0
  %196 = vmatpush.msra.mxu0 0.0
  %197 = vmatpush.msra.mxu0 0.0
  %198 = vmatpush.msra.mxu0 0.0
  %199 = vmatpush.msra.mxu0 0.0
  %200 = vmatpush.msra.mxu0 0.0
  %201 = vmatpush.msra.mxu0 0.0
  %202 = vmatpush.msra.mxu0 0.0
  %203 = vmatpush.msra.mxu0 0.0
  %204 = vmatpush.msra.mxu0 0.0
  %205 = vmatpush.msra.mxu0 0.0
  %206 = vmatpush.msra.mxu0 0.0
  %207 = vmatpush.msra.mxu0 0.0
  %208 = vmatpush.msra.mxu0 0.0
  %209 = vmatpush.msra.mxu0 %v185
  %210 = vmatpush.msra.mxu0 %v27
  %211 = vmatpush.msra.mxu0 %v23
  %212 = vmatmul.f32.gmra.mxu0 %v181
  %v213 = vpop.f32.mrf.mxu0
  %v214 = vadd.f32 %v117, %v213
  %215 = vdwg.mxu0
  %216 = vmatpush.msra.mxu0 0.0
  %217 = vmatpush.msra.mxu0 0.0
  %218 = vmatpush.msra.mxu0 0.0
  %219 = vmatpush.msra.mxu0 0.0
  %220 = vmatpush.msra.mxu0 0.0
  %221 = vmatpush.msra.mxu0 0.0
  %222 = vmatpush.msra.mxu0 0.0
  %223 = vmatpush.msra.mxu0 0.0
  %224 = vmatpush.msra.mxu0 0.0
  %225 = vmatpush.msra.mxu0 0.0
  %226 = vmatpush.msra.mxu0 0.0
  %227 = vmatpush.msra.mxu0 0.0
  %228 = vmatpush.msra.mxu0 0.0
  %229 = vmatpush.msra.mxu0 %v188
  %230 = vmatpush.msra.mxu0 %v28
  %231 = vmatpush.msra.mxu0 %v24
  %232 = vmatmul.f32.gmra.mxu0 %v181
  %v233 = vpop.f32.mrf.mxu0
  %v234 = vadd.f32 %v137, %v233
  %235 = vdwg.mxu0
  %236 = vmatpush.msra.mxu0 0.0
  %237 = vmatpush.msra.mxu0 0.0
  %238 = vmatpush.msra.mxu0 0.0
  %239 = vmatpush.msra.mxu0 0.0
  %240 = vmatpush.msra.mxu0 0.0
  %241 = vmatpush.msra.mxu0 0.0
  %242 = vmatpush.msra.mxu0 0.0
  %243 = vmatpush.msra.mxu0 0.0
  %244 = vmatpush.msra.mxu0 0.0
  %245 = vmatpush.msra.mxu0 0.0
  %246 = vmatpush.msra.mxu0 0.0
  %247 = vmatpush.msra.mxu0 0.0
  %248 = vmatpush.msra.mxu0 0.0
  %249 = vmatpush.msra.mxu0 %v191
  %250 = vmatpush.msra.mxu0 %v29
  %251 = vmatpush.msra.mxu0 %v25
  %252 = vmatmul.f32.gmra.mxu0 %v181
  %v253 = vpop.f32.mrf.mxu0
  %v254 = vadd.f32 %v157, %v253
  %255 = vdwg.mxu0
  %256 = vmatpush.msra.mxu0 0.0
  %257 = vmatpush.msra.mxu0 0.0
  %258 = vmatpush.msra.mxu0 0.0
  %259 = vmatpush.msra.mxu0 0.0
  %260 = vmatpush.msra.mxu0 0.0
  %261 = vmatpush.msra.mxu0 0.0
  %262 = vmatpush.msra.mxu0 0.0
  %263 = vmatpush.msra.mxu0 0.0
  %264 = vmatpush.msra.mxu0 0.0
  %265 = vmatpush.msra.mxu0 0.0
  %266 = vmatpush.msra.mxu0 0.0
  %267 = vmatpush.msra.mxu0 0.0
  %268 = vmatpush.msra.mxu0 0.0
  %269 = vmatpush.msra.mxu0 %v194
  %270 = vmatpush.msra.mxu0 %v30
  %271 = vmatpush.msra.mxu0 %v26
  %272 = vmatmul.f32.gmra.mxu0 %v181
  %v273 = vpop.f32.mrf.mxu0
  %v274 = vadd.f32 %v177, %v273
  %275 = vdwg.mxu0
  %v276 = vsub.f32 0.0, %v214
  %v277 = vsub.f32 0.0, %v234
  %v278 = vsub.f32 0.0, %v254
  %v279 = vmul.f32 %v276, 1.442695
  %v280 = vpow.pop %v279
  %v281 = vmul.f32 %v277, 1.442695
  %v282 = vpow.pop %v281
  %v283 = vmul.f32 %v278, 1.442695
  %v284 = vpow.pop %v283
  %v285 = vadd.f32 %v280, 1.0
  %v286 = vadd.f32 %v282, 1.0
  %v287 = vadd.f32 %v284, 1.0
  %v288 = vrcp.pop %v285
  %v289 = vrcp.pop %v286
  %v290 = vrcp.pop %v287
  %v291 = vtanh.pop %v274
  %v292 = vmul.f32 %v289, %v22
  %v293 = vmul.f32 %v288, %v291
  %v294 = vadd.f32 %v292, %v293
  %v295 = vtanh.pop %v294
  %v296 = vmul.f32 %v290, %v295
  %297 = vst [vmem:[#allocation2] sm:$0xff] %v296
  %298 = vst [vmem:[#allocation3] sm:$0xff] %v294
  %299 = vst [vmem:[%s3] sm:$0xff] %v296
  %s300 = scalar_lea.vmem %s0, 8
  %v301 = vld [vmem:[%s300] sm:$0xff]
  %v302 = vld [vmem:[#allocation2] sm:$0xff]
  %v303 = vld [vmem:[#allocation3] sm:$0xff]
  %v304 = vld [vmem:[%s1] sm:$0xff]
  %v305 = vld [vmem:[%s1 + $0x8] sm:$0xff]
  %v306 = vld [vmem:[%s1 + $0x10] sm:$0xff]
  %v307 = vld [vmem:[%s1 + $0x18] sm:$0xff]
  %v308 = vld [vmem:[%s1 + $0x20] sm:$0xff]
  %v309 = vld [vmem:[%s1 + $0x28] sm:$0xff]
  %v310 = vld [vmem:[%s1 + $0x30] sm:$0xff]
  %v311 = vld [vmem:[%s1 + $0x38] sm:$0xff]
  %v312 = vld [vmem:[%s1 + $0x40] sm:$0x1]
  %v313 = vld [vmem:[%s1 + $0x48] sm:$0x1]
  %v314 = vld [vmem:[%s1 + $0x50] sm:$0x1]
  %v315 = vld [vmem:[%s1 + $0x58] sm:$0x1]
  %v316 = vld [vmem:[%s2] sm:$0xff]
  %v317 = vld [vmem:[%s2 + $0x8] sm:$0xff]
  %v318 = vld [vmem:[%s2 + $0x10] sm:$0xff]
  %v319 = vld [vmem:[%s2 + $0x18] sm:$0xff]
  %v320 = vld [vmem:[%s2 + $0x20] sm:$0xff]
  %v321 = vld [vmem:[%s2 + $0x28] sm:$0xff]
  %v322 = vld [vmem:[%s2 + $0x30] sm:$0xff]
  %v323 = vld [vmem:[%s2 + $0x38] sm:$0xff]
  %v324 = vld [vmem:[%s2 + $0x40] sm:$0xff]
  %v325 = vld [vmem:[%s2 + $0x48] sm:$0xff]
  %v326 = vld [vmem:[%s2 + $0x50] sm:$0xff]
  %v327 = vld [vmem:[%s2 + $0x58] sm:$0xff]
  %v328 = vld [vmem:[%s2 + $0x60] sm:$0xff]
  %v329 = vld [vmem:[%s2 + $0x68] sm:$0xff]
  %v330 = vld [vmem:[%s2 + $0x70] sm:$0xff]
  %v331 = vld [vmem:[%s2 + $0x78] sm:$0xff]
  %v332 = vld [vmem:[%s2 + $0x80] sm:$0xff]
  %v333 = vld [vmem:[%s2 + $0x88] sm:$0xff]
  %v334 = vld [vmem:[%s2 + $0x90] sm:$0xff]
  %v335 = vld [vmem:[%s2 + $0x98] sm:$0xff]
  %v336 = vld [vmem:[%s2 + $0xa0] sm:$0xff]
  %v337 = vld [vmem:[%s2 + $0xa8] sm:$0xff]
  %v338 = vld [vmem:[%s2 + $0xb0] sm:$0xff]
  %v339 = vld [vmem:[%s2 + $0xb8] sm:$0xff]
  %v340 = vld [vmem:[%s2 + $0xc0] sm:$0xff]
  %v341 = vld [vmem:[%s2 + $0xc8] sm:$0xff]
  %v342 = vld [vmem:[%s2 + $0xd0] sm:$0xff]
  %v343 = vld [vmem:[%s2 + $0xd8] sm:$0xff]
  %v344 = vld [vmem:[%s2 + $0xe0] sm:$0xff]
  %v345 = vld [vmem:[%s2 + $0xe8] sm:$0xff]
  %v346 = vld [vmem:[%s2 + $0xf0] sm:$0xff]
  %v347 = vld [vmem:[%s2 + $0xf8] sm:$0xff]
  %v348 = vld [vmem:[%s2 + $0x100] sm:$0xff]
  %v349 = vld [vmem:[%s2 + $0x108] sm:$0xff]
  %v350 = vld [vmem:[%s2 + $0x110] sm:$0xff]
  %v351 = vld [vmem:[%s2 + $0x118] sm:$0xff]
  %v352 = vld [vmem:[%s2 + $0x120] sm:$0xff]
  %v353 = vld [vmem:[%s2 + $0x128] sm:$0xff]
  %v354 = vld [vmem:[%s2 + $0x130] sm:$0xff]
  %v355 = vld [vmem:[%s2 + $0x138] sm:$0xff]
  %v356 = vld [vmem:[%s2 + $0x140] sm:$0xff]
  %v357 = vld [vmem:[%s2 + $0x148] sm:$0xff]
  %v358 = vld [vmem:[%s2 + $0x150] sm:$0xff]
  %v359 = vld [vmem:[%s2 + $0x158] sm:$0xff]
  %v360 = vld [vmem:[%s2 + $0x160] sm:$0xff]
  %v361 = vld [vmem:[%s2 + $0x168] sm:$0xff]
  %v362 = vld [vmem:[%s2 + $0x170] sm:$0xff]
  %v363 = vld [vmem:[%s2 + $0x178] sm:$0xff]
  %v364 = vld [vmem:[%s2 + $0x180] sm:$0xff]
  %v365 = vld [vmem:[%s2 + $0x188] sm:$0xff]
  %v366 = vld [vmem:[%s2 + $0x190] sm:$0xff]
  %v367 = vld [vmem:[%s2 + $0x198] sm:$0xff]
  %v368 = vld [vmem:[%s2 + $0x1a0] sm:$0xff]
  %v369 = vld [vmem:[%s2 + $0x1a8] sm:$0xff]
  %v370 = vld [vmem:[%s2 + $0x1b0] sm:$0xff]
  %v371 = vld [vmem:[%s2 + $0x1b8] sm:$0xff]
  %v372 = vld [vmem:[%s2 + $0x1c0] sm:$0xff]
  %v373 = vld [vmem:[%s2 + $0x1c8] sm:$0xff]
  %v374 = vld [vmem:[%s2 + $0x1d0] sm:$0xff]
  %v375 = vld [vmem:[%s2 + $0x1d8] sm:$0xff]
  %v376 = vld [vmem:[%s2 + $0x1e0] sm:$0xff]
  %v377 = vld [vmem:[%s2 + $0x1e8] sm:$0xff]
  %v378 = vld [vmem:[%s2 + $0x1f0] sm:$0xff]
  %v379 = vld [vmem:[%s2 + $0x1f8] sm:$0xff]
  %380 = vmatpush.msra.mxu0 %v376
  %381 = vmatpush.msra.mxu0 %v372
  %382 = vmatpush.msra.mxu0 %v368
  %383 = vmatpush.msra.mxu0 %v364
  %384 = vmatpush.msra.mxu0 %v360
  %385 = vmatpush.msra.mxu0 %v356
  %386 = vmatpush.msra.mxu0 %v352
  %387 = vmatpush.msra.mxu0 %v348
  %388 = vmatpush.msra.mxu0 %v344
  %389 = vmatpush.msra.mxu0 %v340
  %390 = vmatpush.msra.mxu0 %v336
  %391 = vmatpush.msra.mxu0 %v332
  %392 = vmatpush.msra.mxu0 %v328
  %393 = vmatpush.msra.mxu0 %v324
  %394 = vmatpush.msra.mxu0 %v320
  %395 = vmatpush.msra.mxu0 %v316
  %396 = vmatmul.f32.gmra.mxu0 %v302
  %v397 = vpop.f32.mrf.mxu0
  %v398 = vadd.f32 0.0, %v397
  %399 = vdwg.mxu0
  %400 = vmatpush.msra.mxu0 %v377
  %401 = vmatpush.msra.mxu0 %v373
  %402 = vmatpush.msra.mxu0 %v369
  %403 = vmatpush.msra.mxu0 %v365
  %404 = vmatpush.msra.mxu0 %v361
  %405 = vmatpush.msra.mxu0 %v357
  %406 = vmatpush.msra.mxu0 %v353
  %407 = vmatpush.msra.mxu0 %v349
  %408 = vmatpush.msra.mxu0 %v345
  %409 = vmatpush.msra.mxu0 %v341
  %410 = vmatpush.msra.mxu0 %v337
  %411 = vmatpush.msra.mxu0 %v333
  %412 = vmatpush.msra.mxu0 %v329
  %413 = vmatpush.msra.mxu0 %v325
  %414 = vmatpush.msra.mxu0 %v321
  %415 = vmatpush.msra.mxu0 %v317
  %416 = vmatmul.f32.gmra.mxu0 %v302
  %v417 = vpop.f32.mrf.mxu0
  %v418 = vadd.f32 0.0, %v417
  %419 = vdwg.mxu0
  %420 = vmatpush.msra.mxu0 %v378
  %421 = vmatpush.msra.mxu0 %v374
  %422 = vmatpush.msra.mxu0 %v370
  %423 = vmatpush.msra.mxu0 %v366
  %424 = vmatpush.msra.mxu0 %v362
  %425 = vmatpush.msra.mxu0 %v358
  %426 = vmatpush.msra.mxu0 %v354
  %427 = vmatpush.msra.mxu0 %v350
  %428 = vmatpush.msra.mxu0 %v346
  %429 = vmatpush.msra.mxu0 %v342
  %430 = vmatpush.msra.mxu0 %v338
  %431 = vmatpush.msra.mxu0 %v334
  %432 = vmatpush.msra.mxu0 %v330
  %433 = vmatpush.msra.mxu0 %v326
  %434 = vmatpush.msra.mxu0 %v322
  %435 = vmatpush.msra.mxu0 %v318
  %436 = vmatmul.f32.gmra.mxu0 %v302
  %v437 = vpop.f32.mrf.mxu0
  %v438 = vadd.f32 0.0, %v437
  %439 = vdwg.mxu0
  %440 = vmatpush.msra.mxu0 %v379
  %441 = vmatpush.msra.mxu0 %v375
  %442 = vmatpush.msra.mxu0 %v371
  %443 = vmatpush.msra.mxu0 %v367
  %444 = vmatpush.msra.mxu0 %v363
  %445 = vmatpush.msra.mxu0 %v359
  %446 = vmatpush.msra.mxu0 %v355
  %447 = vmatpush.msra.mxu0 %v351
  %448 = vmatpush.msra.mxu0 %v347
  %449 = vmatpush.msra.mxu0 %v343
  %450 = vmatpush.msra.mxu0 %v339
  %451 = vmatpush.msra.mxu0 %v335
  %452 = vmatpush.msra.mxu0 %v331
  %453 = vmatpush.msra.mxu0 %v327
  %454 = vmatpush.msra.mxu0 %v323
  %455 = vmatpush.msra.mxu0 %v319
  %456 = vmatmul.f32.gmra.mxu0 %v302
  %v457 = vpop.f32.mrf.mxu0
  %v458 = vadd.f32 0.0, %v457
  %459 = vdwg.mxu0
  %v461 = vsel %vm179, %v301, 0
  %v464 = vsel %vm183, %v312, 0
  %v467 = vsel %vm183, %v313, 0
  %v470 = vsel %vm183, %v314, 0
  %v473 = vsel %vm183, %v315, 0
  %475 = vmatpush.msra.mxu0 0.0
  %476 = vmatpush.msra.mxu0 0.0
  %477 = vmatpush.msra.mxu0 0.0
  %478 = vmatpush.msra.mxu0 0.0
  %479 = vmatpush.msra.mxu0 0.0
  %480 = vmatpush.msra.mxu0 0.0
  %481 = vmatpush.msra.mxu0 0.0
  %482 = vmatpush.msra.mxu0 0.0
  %483 = vmatpush.msra.mxu0 0.0
  %484 = vmatpush.msra.mxu0 0.0
  %485 = vmatpush.msra.mxu0 0.0
  %486 = vmatpush.msra.mxu0 0.0
  %487 = vmatpush.msra.mxu0 0.0
  %488 = vmatpush.msra.mxu0 %v464
  %489 = vmatpush.msra.mxu0 %v308
  %490 = vmatpush.msra.mxu0 %v304
  %491 = vmatmul.f32.gmra.mxu0 %v461
  %v492 = vpop.f32.mrf.mxu0
  %v493 = vadd.f32 %v398, %v492
  %494 = vdwg.mxu0
  %495 = vmatpush.msra.mxu0 0.0
  %496 = vmatpush.msra.mxu0 0.0
  %497 = vmatpush.msra.mxu0 0.0
  %498 = vmatpush.msra.mxu0 0.0
  %499 = vmatpush.msra.mxu0 0.0
  %500 = vmatpush.msra.mxu0 0.0
  %501 = vmatpush.msra.mxu0 0.0
  %502 = vmatpush.msra.mxu0 0.0
  %503 = vmatpush.msra.mxu0 0.0
  %504 = vmatpush.msra.mxu0 0.0
  %505 = vmatpush.msra.mxu0 0.0
  %506 = vmatpush.msra.mxu0 0.0
  %507 = vmatpush.msra.mxu0 0.0
  %508 = vmatpush.msra.mxu0 %v467
  %509 = vmatpush.msra.mxu0 %v309
  %510 = vmatpush.msra.mxu0 %v305
  %511 = vmatmul.f32.gmra.mxu0 %v461
  %v512 = vpop.f32.mrf.mxu0
  %v513 = vadd.f32 %v418, %v512
  %514 = vdwg.mxu0
  %515 = vmatpush.msra.mxu0 0.0
  %516 = vmatpush.msra.mxu0 0.0
  %517 = vmatpush.msra.mxu0 0.0
  %518 = vmatpush.msra.mxu0 0.0
  %519 = vmatpush.msra.mxu0 0.0
  %520 = vmatpush.msra.mxu0 0.0
  %521 = vmatpush.msra.mxu0 0.0
  %522 = vmatpush.msra.mxu0 0.0
  %523 = vmatpush.msra.mxu0 0.0
  %524 = vmatpush.msra.mxu0 0.0
  %525 = vmatpush.msra.mxu0 0.0
  %526 = vmatpush.msra.mxu0 0.0
  %527 = vmatpush.msra.mxu0 0.0
  %528 = vmatpush.msra.mxu0 %v470
  %529 = vmatpush.msra.mxu0 %v310
  %530 = vmatpush.msra.mxu0 %v306
  %531 = vmatmul.f32.gmra.mxu0 %v461
  %v532 = vpop.f32.mrf.mxu0
  %v533 = vadd.f32 %v438, %v532
  %534 = vdwg.mxu0
  %535 = vmatpush.msra.mxu0 0.0
  %536 = vmatpush.msra.mxu0 0.0
  %537 = vmatpush.msra.mxu0 0.0
  %538 = vmatpush.msra.mxu0 0.0
  %539 = vmatpush.msra.mxu0 0.0
  %540 = vmatpush.msra.mxu0 0.0
  %541 = vmatpush.msra.mxu0 0.0
  %542 = vmatpush.msra.mxu0 0.0
  %543 = vmatpush.msra.mxu0 0.0
  %544 = vmatpush.msra.mxu0 0.0
  %545 = vmatpush.msra.mxu0 0.0
  %546 = vmatpush.msra.mxu0 0.0
  %547 = vmatpush.msra.mxu0 0.0
  %548 = vmatpush.msra.mxu0 %v473
  %549 = vmatpush.msra.mxu0 %v311
  %550 = vmatpush.msra.mxu0 %v307
  %551 = vmatmul.f32.gmra.mxu0 %v461
  %v552 = vpop.f32.mrf.mxu0
  %v553 = vadd.f32 %v458, %v552
  %554 = vdwg.mxu0
  %v555 = vsub.f32 0.0, %v493
  %v556 = vsub.f32 0.0, %v513
  %v557 = vsub.f32 0.0, %v533
  %v558 = vmul.f32 %v555, 1.442695
  %v559 = vpow.pop %v558
  %v560 = vmul.f32 %v556, 1.442695
  %v561 = vpow.pop %v560
  %v562 = vmul.f32 %v557, 1.442695
  %v563 = vpow.pop %v562
  %v564 = vadd.f32 %v559, 1.0
  %v565 = vadd.f32 %v561, 1.0
  %v566 = vadd.f32 %v563, 1.0
  %v567 = vrcp.pop %v564
  %v568 = vrcp.pop %v565
  %v569 = vrcp.pop %v566
  %v570 = vtanh.pop %v553
  %v571 = vmul.f32 %v568, %v303
  %v572 = vmul.f32 %v567, %v570
  %v573 = vadd.f32 %v571, %v572
  %v574 = vtanh.pop %v573
  %v575 = vmul.f32 %v569, %v574
  %576 = vst [vmem:[#allocation2] sm:$0xff] %v575
  %577 = vst [vmem:[#allocation3] sm:$0xff] %v573
  %s578 = scalar_lea.vmem %s3, 8
  %579 = vst [vmem:[%s578] sm:$0xff] %v575
  %s580 = scalar_lea.vmem %s0, 16
  %v581 = vld [vmem:[%s580] sm:$0xff]
  %v582 = vld [vmem:[#allocation2] sm:$0xff]
  %v583 = vld [vmem:[#allocation3] sm:$0xff]
  %v584 = vld [vmem:[%s1] sm:$0xff]
  %v585 = vld [vmem:[%s1 + $0x8] sm:$0xff]
  %v586 = vld [vmem:[%s1 + $0x10] sm:$0xff]
  %v587 = vld [vmem:[%s1 + $0x18] sm:$0xff]
  %v588 = vld [vmem:[%s1 + $0x20] sm:$0xff]
  %v589 = vld [vmem:[%s1 + $0x28] sm:$0xff]
  %v590 = vld [vmem:[%s1 + $0x30] sm:$0xff]
  %v591 = vld [vmem:[%s1 + $0x38] sm:$0xff]
  %v592 = vld [vmem:[%s1 + $0x40] sm:$0x1]
  %v593 = vld [vmem:[%s1 + $0x48] sm:$0x1]
  %v594 = vld [vmem:[%s1 + $0x50] sm:$0x1]
  %v595 = vld [vmem:[%s1 + $0x58] sm:$0x1]
  %v596 = vld [vmem:[%s2] sm:$0xff]
  %v597 = vld [vmem:[%s2 + $0x8] sm:$0xff]
  %v598 = vld [vmem:[%s2 + $0x10] sm:$0xff]
  %v599 = vld [vmem:[%s2 + $0x18] sm:$0xff]
  %v600 = vld [vmem:[%s2 + $0x20] sm:$0xff]
  %v601 = vld [vmem:[%s2 + $0x28] sm:$0xff]
  %v602 = vld [vmem:[%s2 + $0x30] sm:$0xff]
  %v603 = vld [vmem:[%s2 + $0x38] sm:$0xff]
  %v604 = vld [vmem:[%s2 + $0x40] sm:$0xff]
  %v605 = vld [vmem:[%s2 + $0x48] sm:$0xff]
  %v606 = vld [vmem:[%s2 + $0x50] sm:$0xff]
  %v607 = vld [vmem:[%s2 + $0x58] sm:$0xff]
  %v608 = vld [vmem:[%s2 + $0x60] sm:$0xff]
  %v609 = vld [vmem:[%s2 + $0x68] sm:$0xff]
  %v610 = vld [vmem:[%s2 + $0x70] sm:$0xff]
  %v611 = vld [vmem:[%s2 + $0x78] sm:$0xff]
  %v612 = vld [vmem:[%s2 + $0x80] sm:$0xff]
  %v613 = vld [vmem:[%s2 + $0x88] sm:$0xff]
  %v614 = vld [vmem:[%s2 + $0x90] sm:$0xff]
  %v615 = vld [vmem:[%s2 + $0x98] sm:$0xff]
  %v616 = vld [vmem:[%s2 + $0xa0] sm:$0xff]
  %v617 = vld [vmem:[%s2 + $0xa8] sm:$0xff]
  %v618 = vld [vmem:[%s2 + $0xb0] sm:$0xff]
  %v619 = vld [vmem:[%s2 + $0xb8] sm:$0xff]
  %v620 = vld [vmem:[%s2 + $0xc0] sm:$0xff]
  %v621 = vld [vmem:[%s2 + $0xc8] sm:$0xff]
  %v622 = vld [vmem:[%s2 + $0xd0] sm:$0xff]
  %v623 = vld [vmem:[%s2 + $0xd8] sm:$0xff]
  %v624 = vld [vmem:[%s2 + $0xe0] sm:$0xff]
  %v625 = vld [vmem:[%s2 + $0xe8] sm:$0xff]
  %v626 = vld [vmem:[%s2 + $0xf0] sm:$0xff]
  %v627 = vld [vmem:[%s2 + $0xf8] sm:$0xff]
  %v628 = vld [vmem:[%s2 + $0x100] sm:$0xff]
  %v629 = vld [vmem:[%s2 + $0x108] sm:$0xff]
  %v630 = vld [vmem:[%s2 + $0x110] sm:$0xff]
  %v631 = vld [vmem:[%s2 + $0x118] sm:$0xff]
  %v632 = vld [vmem:[%s2 + $0x120] sm:$0xff]
  %v633 = vld [vmem:[%s2 + $0x128] sm:$0xff]
  %v634 = vld [vmem:[%s2 + $0x130] sm:$0xff]
  %v635 = vld [vmem:[%s2 + $0x138] sm:$0xff]
  %v636 = vld [vmem:[%s2 + $0x140] sm:$0xff]
  %v637 = vld [vmem:[%s2 + $0x148] sm:$0xff]
  %v638 = vld [vmem:[%s2 + $0x150] sm:$0xff]
  %v639 = vld [vmem:[%s2 + $0x158] sm:$0xff]
  %v640 = vld [vmem:[%s2 + $0x160] sm:$0xff]
  %v641 = vld [vmem:[%s2 + $0x168] sm:$0xff]
  %v642 = vld [vmem:[%s2 + $0x170] sm:$0xff]
  %v643 = vld [vmem:[%s2 + $0x178] sm:$0xff]
  %v644 = vld [vmem:[%s2 + $0x180] sm:$0xff]
  %v645 = vld [vmem:[%s2 + $0x188] sm:$0xff]
  %v646 = vld [vmem:[%s2 + $0x190] sm:$0xff]
  %v647 = vld [vmem:[%s2 + $0x198] sm:$0xff]
  %v648 = vld [vmem:[%s2 + $0x1a0] sm:$0xff]
  %v649 = vld [vmem:[%s2 + $0x1a8] sm:$0xff]
  %v650 = vld [vmem:[%s2 + $0x1b0] sm:$0xff]
  %v651 = vld [vmem:[%s2 + $0x1b8] sm:$0xff]
  %v652 = vld [vmem:[%s2 + $0x1c0] sm:$0xff]
  %v653 = vld [vmem:[%s2 + $0x1c8] sm:$0xff]
  %v654 = vld [vmem:[%s2 + $0x1d0] sm:$0xff]
  %v655 = vld [vmem:[%s2 + $0x1d8] sm:$0xff]
  %v656 = vld [vmem:[%s2 + $0x1e0] sm:$0xff]
  %v657 = vld [vmem:[%s2 + $0x1e8] sm:$0xff]
  %v658 = vld [vmem:[%s2 + $0x1f0] sm:$0xff]
  %v659 = vld [vmem:[%s2 + $0x1f8] sm:$0xff]
  %660 = vmatpush.msra.mxu0 %v656
  %661 = vmatpush.msra.mxu0 %v652
  %662 = vmatpush.msra.mxu0 %v648
  %663 = vmatpush.msra.mxu0 %v644
  %664 = vmatpush.msra.mxu0 %v640
  %665 = vmatpush.msra.mxu0 %v636
  %666 = vmatpush.msra.mxu0 %v632
  %667 = vmatpush.msra.mxu0 %v628
  %668 = vmatpush.msra.mxu0 %v624
  %669 = vmatpush.msra.mxu0 %v620
  %670 = vmatpush.msra.mxu0 %v616
  %671 = vmatpush.msra.mxu0 %v612
  %672 = vmatpush.msra.mxu0 %v608
  %673 = vmatpush.msra.mxu0 %v604
  %674 = vmatpush.msra.mxu0 %v600
  %675 = vmatpush.msra.mxu0 %v596
  %676 = vmatmul.f32.gmra.mxu0 %v582
  %v677 = vpop.f32.mrf.mxu0
  %v678 = vadd.f32 0.0, %v677
  %679 = vdwg.mxu0
  %680 = vmatpush.msra.mxu0 %v657
  %681 = vmatpush.msra.mxu0 %v653
  %682 = vmatpush.msra.mxu0 %v649
  %683 = vmatpush.msra.mxu0 %v645
  %684 = vmatpush.msra.mxu0 %v641
  %685 = vmatpush.msra.mxu0 %v637
  %686 = vmatpush.msra.mxu0 %v633
  %687 = vmatpush.msra.mxu0 %v629
  %688 = vmatpush.msra.mxu0 %v625
  %689 = vmatpush.msra.mxu0 %v621
  %690 = vmatpush.msra.mxu0 %v617
  %691 = vmatpush.msra.mxu0 %v613
  %692 = vmatpush.msra.mxu0 %v609
  %693 = vmatpush.msra.mxu0 %v605
  %694 = vmatpush.msra.mxu0 %v601
  %695 = vmatpush.msra.mxu0 %v597
  %696 = vmatmul.f32.gmra.mxu0 %v582
  %v697 = vpop.f32.mrf.mxu0
  %v698 = vadd.f32 0.0, %v697
  %699 = vdwg.mxu0
  %700 = vmatpush.msra.mxu0 %v658
  %701 = vmatpush.msra.mxu0 %v654
  %702 = vmatpush.msra.mxu0 %v650
  %703 = vmatpush.msra.mxu0 %v646
  %704 = vmatpush.msra.mxu0 %v642
  %705 = vmatpush.msra.mxu0 %v638
  %706 = vmatpush.msra.mxu0 %v634
  %707 = vmatpush.msra.mxu0 %v630
  %708 = vmatpush.msra.mxu0 %v626
  %709 = vmatpush.msra.mxu0 %v622
  %710 = vmatpush.msra.mxu0 %v618
  %711 = vmatpush.msra.mxu0 %v614
  %712 = vmatpush.msra.mxu0 %v610
  %713 = vmatpush.msra.mxu0 %v606
  %714 = vmatpush.msra.mxu0 %v602
  %715 = vmatpush.msra.mxu0 %v598
  %716 = vmatmul.f32.gmra.mxu0 %v582
  %v717 = vpop.f32.mrf.mxu0
  %v718 = vadd.f32 0.0, %v717
  %719 = vdwg.mxu0
  %720 = vmatpush.msra.mxu0 %v659
  %721 = vmatpush.msra.mxu0 %v655
  %722 = vmatpush.msra.mxu0 %v651
  %723 = vmatpush.msra.mxu0 %v647
  %724 = vmatpush.msra.mxu0 %v643
  %725 = vmatpush.msra.mxu0 %v639
  %726 = vmatpush.msra.mxu0 %v635
  %727 = vmatpush.msra.mxu0 %v631
  %728 = vmatpush.msra.mxu0 %v627
  %729 = vmatpush.msra.mxu0 %v623
  %730 = vmatpush.msra.mxu0 %v619
  %731 = vmatpush.msra.mxu0 %v615
  %732 = vmatpush.msra.mxu0 %v611
  %733 = vmatpush.msra.mxu0 %v607
  %734 = vmatpush.msra.mxu0 %v603
  %735 = vmatpush.msra.mxu0 %v599
  %736 = vmatmul.f32.gmra.mxu0 %v582
  %v737 = vpop.f32.mrf.mxu0
  %v738 = vadd.f32 0.0, %v737
  %739 = vdwg.mxu0
  %v741 = vsel %vm179, %v581, 0
  %v744 = vsel %vm183, %v592, 0
  %v747 = vsel %vm183, %v593, 0
  %v750 = vsel %vm183, %v594, 0
  %v753 = vsel %vm183, %v595, 0
  %755 = vmatpush.msra.mxu0 0.0
  %756 = vmatpush.msra.mxu0 0.0
  %757 = vmatpush.msra.mxu0 0.0
  %758 = vmatpush.msra.mxu0 0.0
  %759 = vmatpush.msra.mxu0 0.0
  %760 = vmatpush.msra.mxu0 0.0
  %761 = vmatpush.msra.mxu0 0.0
  %762 = vmatpush.msra.mxu0 0.0
  %763 = vmatpush.msra.mxu0 0.0
  %764 = vmatpush.msra.mxu0 0.0
  %765 = vmatpush.msra.mxu0 0.0
  %766 = vmatpush.msra.mxu0 0.0
  %767 = vmatpush.msra.mxu0 0.0
  %768 = vmatpush.msra.mxu0 %v744
  %769 = vmatpush.msra.mxu0 %v588
  %770 = vmatpush.msra.mxu0 %v584
  %771 = vmatmul.f32.gmra.mxu0 %v741
  %v772 = vpop.f32.mrf.mxu0
  %v773 = vadd.f32 %v678, %v772
  %774 = vdwg.mxu0
  %775 = vmatpush.msra.mxu0 0.0
  %776 = vmatpush.msra.mxu0 0.0
  %777 = vmatpush.msra.mxu0 0.0
  %778 = vmatpush.msra.mxu0 0.0
  %779 = vmatpush.msra.mxu0 0.0
  %780 = vmatpush.msra.mxu0 0.0
  %781 = vmatpush.msra.mxu0 0.0
  %782 = vmatpush.msra.mxu0 0.0
  %783 = vmatpush.msra.mxu0 0.0
  %784 = vmatpush.msra.mxu0 0.0
  %785 = vmatpush.msra.mxu0 0.0
  %786 = vmatpush.msra.mxu0 0.0
  %787 = vmatpush.msra.mxu0 0.0
  %788 = vmatpush.msra.mxu0 %v747
  %789 = vmatpush.msra.mxu0 %v589
  %790 = vmatpush.msra.mxu0 %v585
  %791 = vmatmul.f32.gmra.mxu0 %v741
  %v792 = vpop.f32.mrf.mxu0
  %v793 = vadd.f32 %v698, %v792
  %794 = vdwg.mxu0
  %795 = vmatpush.msra.mxu0 0.0
  %796 = vmatpush.msra.mxu0 0.0
  %797 = vmatpush.msra.mxu0 0.0
  %798 = vmatpush.msra.mxu0 0.0
  %799 = vmatpush.msra.mxu0 0.0
  %800 = vmatpush.msra.mxu0 0.0
  %801 = vmatpush.msra.mxu0 0.0
  %802 = vmatpush.msra.mxu0 0.0
  %803 = vmatpush.msra.mxu0 0.0
  %804 = vmatpush.msra.mxu0 0.0
  %805 = vmatpush.msra.mxu0 0.0
  %806 = vmatpush.msra.mxu0 0.0
  %807 = vmatpush.msra.mxu0 0.0
  %808 = vmatpush.msra.mxu0 %v750
  %809 = vmatpush.msra.mxu0 %v590
  %810 = vmatpush.msra.mxu0 %v586
  %811 = vmatmul.f32.gmra.mxu0 %v741
  %v812 = vpop.f32.mrf.mxu0
  %v813 = vadd.f32 %v718, %v812
  %814 = vdwg.mxu0
  %815 = vmatpush.msra.mxu0 0.0
  %816 = vmatpush.msra.mxu0 0.0
  %817 = vmatpush.msra.mxu0 0.0
  %818 = vmatpush.msra.mxu0 0.0
  %819 = vmatpush.msra.mxu0 0.0
  %820 = vmatpush.msra.mxu0 0.0
  %821 = vmatpush.msra.mxu0 0.0
  %822 = vmatpush.msra.mxu0 0.0
  %823 = vmatpush.msra.mxu0 0.0
  %824 = vmatpush.msra.mxu0 0.0
  %825 = vmatpush.msra.mxu0 0.0
  %826 = vmatpush.msra.mxu0 0.0
  %827 = vmatpush.msra.mxu0 0.0
  %828 = vmatpush.msra.mxu0 %v753
  %829 = vmatpush.msra.mxu0 %v591
  %830 = vmatpush.msra.mxu0 %v587
  %831 = vmatmul.f32.gmra.mxu0 %v741
  %v832 = vpop.f32.mrf.mxu0
  %v833 = vadd.f32 %v738, %v832
  %834 = vdwg.mxu0
  %v835 = vsub.f32 0.0, %v773
  %v836 = vsub.f32 0.0, %v793
  %v837 = vsub.f32 0.0, %v813
  %v838 = vmul.f32 %v835, 1.442695
  %v839 = vpow.pop %v838
  %v840 = vmul.f32 %v836, 1.442695
  %v841 = vpow.pop %v840
  %v842 = vmul.f32 %v837, 1.442695
  %v843 = vpow.pop %v842
  %v844 = vadd.f32 %v839, 1.0
  %v845 = vadd.f32 %v841, 1.0
  %v846 = vadd.f32 %v843, 1.0
  %v847 = vrcp.pop %v844
  %v848 = vrcp.pop %v845
  %v849 = vrcp.pop %v846
  %v850 = vtanh.pop %v833
  %v851 = vmul.f32 %v848, %v583
  %v852 = vmul.f32 %v847, %v850
  %v853 = vadd.f32 %v851, %v852
  %v854 = vtanh.pop %v853
  %v855 = vmul.f32 %v849, %v854
  %856 = vst [vmem:[#allocation2] sm:$0xff] %v855
  %857 = vst [vmem:[#allocation3] sm:$0xff] %v853
  %s858 = scalar_lea.vmem %s3, 16
  %859 = vst [vmem:[%s858] sm:$0xff] %v855
  %s860 = scalar_lea.vmem %s0, 24
  %v861 = vld [vmem:[%s860] sm:$0xff]
  %v862 = vld [vmem:[#allocation2] sm:$0xff]
  %v863 = vld [vmem:[#allocation3] sm:$0xff]
  %v864 = vld [vmem:[%s1] sm:$0xff]
  %v865 = vld [vmem:[%s1 + $0x8] sm:$0xff]
  %v866 = vld [vmem:[%s1 + $0x10] sm:$0xff]
  %v867 = vld [vmem:[%s1 + $0x18] sm:$0xff]
  %v868 = vld [vmem:[%s1 + $0x20] sm:$0xff]
  %v869 = vld [vmem:[%s1 + $0x28] sm:$0xff]
  %v870 = vld [vmem:[%s1 + $0x30] sm:$0xff]
  %v871 = vld [vmem:[%s1 + $0x38] sm:$0xff]
  %v872 = vld [vmem:[%s1 + $0x40] sm:$0x1]
  %v873 = vld [vmem:[%s1 + $0x48] sm:$0x1]
  %v874 = vld [vmem:[%s1 + $0x50] sm:$0x1]
  %v875 = vld [vmem:[%s1 + $0x58] sm:$0x1]
  %v876 = vld [vmem:[%s2] sm:$0xff]
  %v877 = vld [vmem:[%s2 + $0x8] sm:$0xff]
  %v878 = vld [vmem:[%s2 + $0x10] sm:$0xff]
  %v879 = vld [vmem:[%s2 + $0x18] sm:$0xff]
  %v880 = vld [vmem:[%s2 + $0x20] sm:$0xff]
  %v881 = vld [vmem:[%s2 + $0x28] sm:$0xff]
  %v882 = vld [vmem:[%s2 + $0x30] sm:$0xff]
  %v883 = vld [vmem:[%s2 + $0x38] sm:$0xff]
  %v884 = vld [vmem:[%s2 + $0x40] sm:$0xff]
  %v885 = vld [vmem:[%s2 + $0x48] sm:$0xff]
  %v886 = vld [vmem:[%s2 + $0x50] sm:$0xff]
  %v887 = vld [vmem:[%s2 + $0x58] sm:$0xff]
  %v888 = vld [vmem:[%s2 + $0x60] sm:$0xff]
  %v889 = vld [vmem:[%s2 + $0x68] sm:$0xff]
  %v890 = vld [vmem:[%s2 + $0x70] sm:$0xff]
  %v891 = vld [vmem:[%s2 + $0x78] sm:$0xff]
  %v892 = vld [vmem:[%s2 + $0x80] sm:$0xff]
  %v893 = vld [vmem:[%s2 + $0x88] sm:$0xff]
  %v894 = vld [vmem:[%s2 + $0x90] sm:$0xff]
  %v895 = vld [vmem:[%s2 + $0x98] sm:$0xff]
  %v896 = vld [vmem:[%s2 + $0xa0] sm:$0xff]
  %v897 = vld [vmem:[%s2 + $0xa8] sm:$0xff]
  %v898 = vld [vmem:[%s2 + $0xb0] sm:$0xff]
  %v899 = vld [vmem:[%s2 + $0xb8] sm:$0xff]
  %v900 = vld [vmem:[%s2 + $0xc0] sm:$0xff]
  %v901 = vld [vmem:[%s2 + $0xc8] sm:$0xff]
  %v902 = vld [vmem:[%s2 + $0xd0] sm:$0xff]
  %v903 = vld [vmem:[%s2 + $0xd8] sm:$0xff]
  %v904 = vld [vmem:[%s2 + $0xe0] sm:$0xff]
  %v905 = vld [vmem:[%s2 + $0xe8] sm:$0xff]
  %v906 = vld [vmem:[%s2 + $0xf0] sm:$0xff]
  %v907 = vld [vmem:[%s2 + $0xf8] sm:$0xff]
  %v908 = vld [vmem:[%s2 + $0x100] sm:$0xff]
  %v909 = vld [vmem:[%s2 + $0x108] sm:$0xff]
  %v910 = vld [vmem:[%s2 + $0x110] sm:$0xff]
  %v911 = vld [vmem:[%s2 + $0x118] sm:$0xff]
  %v912 = vld [vmem:[%s2 + $0x120] sm:$0xff]
  %v913 = vld [vmem:[%s2 + $0x128] sm:$0xff]
  %v914 = vld [vmem:[%s2 + $0x130] sm:$0xff]
  %v915 = vld [vmem:[%s2 + $0x138] sm:$0xff]
  %v916 = vld [vmem:[%s2 + $0x140] sm:$0xff]
  %v917 = vld [vmem:[%s2 + $0x148] sm:$0xff]
  %v918 = vld [vmem:[%s2 + $0x150] sm:$0xff]
  %v919 = vld [vmem:[%s2 + $0x158] sm:$0xff]
  %v920 = vld [vmem:[%s2 + $0x160] sm:$0xff]
  %v921 = vld [vmem:[%s2 + $0x168] sm:$0xff]
  %v922 = vld [vmem:[%s2 + $0x170] sm:$0xff]
  %v923 = vld [vmem:[%s2 + $0x178] sm:$0xff]
  %v924 = vld [vmem:[%s2 + $0x180] sm:$0xff]
  %v925 = vld [vmem:[%s2 + $0x188] sm:$0xff]
  %v926 = vld [vmem:[%s2 + $0x190] sm:$0xff]
  %v927 = vld [vmem:[%s2 + $0x198] sm:$0xff]
  %v928 = vld [vmem:[%s2 + $0x1a0] sm:$0xff]
  %v929 = vld [vmem:[%s2 + $0x1a8] sm:$0xff]
  %v930 = vld [vmem:[%s2 + $0x1b0] sm:$0xff]
  %v931 = vld [vmem:[%s2 + $0x1b8] sm:$0xff]
  %v932 = vld [vmem:[%s2 + $0x1c0] sm:$0xff]
  %v933 = vld [vmem:[%s2 + $0x1c8] sm:$0xff]
  %v934 = vld [vmem:[%s2 + $0x1d0] sm:$0xff]
  %v935 = vld [vmem:[%s2 + $0x1d8] sm:$0xff]
  %v936 = vld [vmem:[%s2 + $0x1e0] sm:$0xff]
  %v937 = vld [vmem:[%s2 + $0x1e8] sm:$0xff]
  %v938 = vld [vmem:[%s2 + $0x1f0] sm:$0xff]
  %v939 = vld [vmem:[%s2 + $0x1f8] sm:$0xff]
  %940 = vmatpush.msra.mxu0 %v936
  %941 = vmatpush.msra.mxu0 %v932
  %942 = vmatpush.msra.mxu0 %v928
  %943 = vmatpush.msra.mxu0 %v924
  %944 = vmatpush.msra.mxu0 %v920
  %945 = vmatpush.msra.mxu0 %v916
  %946 = vmatpush.msra.mxu0 %v912
  %947 = vmatpush.msra.mxu0 %v908
  %948 = vmatpush.msra.mxu0 %v904
  %949 = vmatpush.msra.mxu0 %v900
  %950 = vmatpush.msra.mxu0 %v896
  %951 = vmatpush.msra.mxu0 %v892
  %952 = vmatpush.msra.mxu0 %v888
  %953 = vmatpush.msra.mxu0 %v884
  %954 = vmatpush.msra.mxu0 %v880
  %955 = vmatpush.msra.mxu0 %v876
  %956 = vmatmul.f32.gmra.mxu0 %v862
  %v957 = vpop.f32.mrf.mxu0
  %v958 = vadd.f32 0.0, %v957
  %959 = vdwg.mxu0
  %960 = vmatpush.msra.mxu0 %v937
  %961 = vmatpush.msra.mxu0 %v933
  %962 = vmatpush.msra.mxu0 %v929
  %963 = vmatpush.msra.mxu0 %v925
  %964 = vmatpush.msra.mxu0 %v921
  %965 = vmatpush.msra.mxu0 %v917
  %966 = vmatpush.msra.mxu0 %v913
  %967 = vmatpush.msra.mxu0 %v909
  %968 = vmatpush.msra.mxu0 %v905
  %969 = vmatpush.msra.mxu0 %v901
  %970 = vmatpush.msra.mxu0 %v897
  %971 = vmatpush.msra.mxu0 %v893
  %972 = vmatpush.msra.mxu0 %v889
  %973 = vmatpush.msra.mxu0 %v885
  %974 = vmatpush.msra.mxu0 %v881
  %975 = vmatpush.msra.mxu0 %v877
  %976 = vmatmul.f32.gmra.mxu0 %v862
  %v977 = vpop.f32.mrf.mxu0
  %v978 = vadd.f32 0.0, %v977
  %979 = vdwg.mxu0
  %980 = vmatpush.msra.mxu0 %v938
  %981 = vmatpush.msra.mxu0 %v934
  %982 = vmatpush.msra.mxu0 %v930
  %983 = vmatpush.msra.mxu0 %v926
  %984 = vmatpush.msra.mxu0 %v922
  %985 = vmatpush.msra.mxu0 %v918
  %986 = vmatpush.msra.mxu0 %v914
  %987 = vmatpush.msra.mxu0 %v910
  %988 = vmatpush.msra.mxu0 %v906
  %989 = vmatpush.msra.mxu0 %v902
  %990 = vmatpush.msra.mxu0 %v898
  %991 = vmatpush.msra.mxu0 %v894
  %992 = vmatpush.msra.mxu0 %v890
  %993 = vmatpush.msra.mxu0 %v886
  %994 = vmatpush.msra.mxu0 %v882
  %995 = vmatpush.msra.mxu0 %v878
  %996 = vmatmul.f32.gmra.mxu0 %v862
  %v997 = vpop.f32.mrf.mxu0
  %v998 = vadd.f32 0.0, %v997
  %999 = vdwg.mxu0
  %1000 = vmatpush.msra.mxu0 %v939
  %1001 = vmatpush.msra.mxu0 %v935
  %1002 = vmatpush.msra.mxu0 %v931
  %1003 = vmatpush.msra.mxu0 %v927
  %1004 = vmatpush.msra.mxu0 %v923
  %1005 = vmatpush.msra.mxu0 %v919
  %1006 = vmatpush.msra.mxu0 %v915
  %1007 = vmatpush.msra.mxu0 %v911
  %1008 = vmatpush.msra.mxu0 %v907
  %1009 = vmatpush.msra.mxu0 %v903
  %1010 = vmatpush.msra.mxu0 %v899
  %1011 = vmatpush.msra.mxu0 %v895
  %1012 = vmatpush.msra.mxu0 %v891
  %1013 = vmatpush.msra.mxu0 %v887
  %1014 = vmatpush.msra.mxu0 %v883
  %1015 = vmatpush.msra.mxu0 %v879
  %1016 = vmatmul.f32.gmra.mxu0 %v862
  %v1017 = vpop.f32.mrf.mxu0
  %v1018 = vadd.f32 0.0, %v1017
  %1019 = vdwg.mxu0
  %v1021 = vsel %vm179, %v861, 0
  %v1024 = vsel %vm183, %v872, 0
  %v1027 = vsel %vm183, %v873, 0
  %v1030 = vsel %vm183, %v874, 0
  %v1033 = vsel %vm183, %v875, 0
  %1035 = vmatpush.msra.mxu0 0.0
  %1036 = vmatpush.msra.mxu0 0.0
  %1037 = vmatpush.msra.mxu0 0.0
  %1038 = vmatpush.msra.mxu0 0.0
  %1039 = vmatpush.msra.mxu0 0.0
  %1040 = vmatpush.msra.mxu0 0.0
  %1041 = vmatpush.msra.mxu0 0.0
  %1042 = vmatpush.msra.mxu0 0.0
  %1043 = vmatpush.msra.mxu0 0.0
  %1044 = vmatpush.msra.mxu0 0.0
  %1045 = vmatpush.msra.mxu0 0.0
  %1046 = vmatpush.msra.mxu0 0.0
  %1047 = vmatpush.msra.mxu0 0.0
  %1048 = vmatpush.msra.mxu0 %v1024
  %1049 = vmatpush.msra.mxu0 %v868
  %1050 = vmatpush.msra.mxu0 %v864
  %1051 = vmatmul.f32.gmra.mxu0 %v1021
  %v1052 = vpop.f32.mrf.mxu0
  %v1053 = vadd.f32 %v958, %v1052
  %1054 = vdwg.mxu0
  %1055 = vmatpush.msra.mxu0 0.0
  %1056 = vmatpush.msra.mxu0 0.0
  %1057 = vmatpush.msra.mxu0 0.0
  %1058 = vmatpush.msra.mxu0 0.0
  %1059 = vmatpush.msra.mxu0 0.0
  %1060 = vmatpush.msra.mxu0 0.0
  %1061 = vmatpush.msra.mxu0 0.0
  %1062 = vmatpush.msra.mxu0 0.0
  %1063 = vmatpush.msra.mxu0 0.0
  %1064 = vmatpush.msra.mxu0 0.0
  %1065 = vmatpush.msra.mxu0 0.0
  %1066 = vmatpush.msra.mxu0 0.0
  %1067 = vmatpush.msra.mxu0 0.0
  %1068 = vmatpush.msra.mxu0 %v1027
  %1069 = vmatpush.msra.mxu0 %v869
  %1070 = vmatpush.msra.mxu0 %v865
  %1071 = vmatmul.f32.gmra.mxu0 %v1021
  %v1072 = vpop.f32.mrf.mxu0
  %v1073 = vadd.f32 %v978, %v1072
  %1074 = vdwg.mxu0
  %1075 = vmatpush.msra.mxu0 0.0
  %1076 = vmatpush.msra.mxu0 0.0
  %1077 = vmatpush.msra.mxu0 0.0
  %1078 = vmatpush.msra.mxu0 0.0
  %1079 = vmatpush.msra.mxu0 0.0
  %1080 = vmatpush.msra.mxu0 0.0
  %1081 = vmatpush.msra.mxu0 0.0
  %1082 = vmatpush.msra.mxu0 0.0
  %1083 = vmatpush.msra.mxu0 0.0
  %1084 = vmatpush.msra.mxu0 0.0
  %1085 = vmatpush.msra.mxu0 0.0
  %1086 = vmatpush.msra.mxu0 0.0
  %1087 = vmatpush.msra.mxu0 0.0
  %1088 = vmatpush.msra.mxu0 %v1030
  %1089 = vmatpush.msra.mxu0 %v870
  %1090 = vmatpush.msra.mxu0 %v866
  %1091 = vmatmul.f32.gmra.mxu0 %v1021
  %v1092 = vpop.f32.mrf.mxu0
  %v1093 = vadd.f32 %v998, %v1092
  %1094 = vdwg.mxu0
  %1095 = vmatpush.msra.mxu0 0.0
  %1096 = vmatpush.msra.mxu0 0.0
  %1097 = vmatpush.msra.mxu0 0.0
  %1098 = vmatpush.msra.mxu0 0.0
  %1099 = vmatpush.msra.mxu0 0.0
  %1100 = vmatpush.msra.mxu0 0.0
  %1101 = vmatpush.msra.mxu0 0.0
  %1102 = vmatpush.msra.mxu0 0.0
  %1103 = vmatpush.msra.mxu0 0.0
  %1104 = vmatpush.msra.mxu0 0.0
  %1105 = vmatpush.msra.mxu0 0.0
  %1106 = vmatpush.msra.mxu0 0.0
  %1107 = vmatpush.msra.mxu0 0.0
  %1108 = vmatpush.msra.mxu0 %v1033
  %1109 = vmatpush.msra.mxu0 %v871
  %1110 = vmatpush.msra.mxu0 %v867
  %1111 = vmatmul.f32.gmra.mxu0 %v1021
  %v1112 = vpop.f32.mrf.mxu0
  %v1113 = vadd.f32 %v1018, %v1112
  %1114 = vdwg.mxu0
  %v1115 = vsub.f32 0.0, %v1053
  %v1116 = vsub.f32 0.0, %v1073
  %v1117 = vsub.f32 0.0, %v1093
  %v1118 = vmul.f32 %v1115, 1.442695
  %v1119 = vpow.pop %v1118
  %v1120 = vmul.f32 %v1116, 1.442695
  %v1121 = vpow.pop %v1120
  %v1122 = vmul.f32 %v1117, 1.442695
  %v1123 = vpow.pop %v1122
  %v1124 = vadd.f32 %v1119, 1.0
  %v1125 = vadd.f32 %v1121, 1.0
  %v1126 = vadd.f32 %v1123, 1.0
  %v1127 = vrcp.pop %v1124
  %v1128 = vrcp.pop %v1125
  %v1129 = vrcp.pop %v1126
  %v1130 = vtanh.pop %v1113
  %v1131 = vmul.f32 %v1128, %v863
  %v1132 = vmul.f32 %v1127, %v1130
  %v1133 = vadd.f32 %v1131, %v1132
  %v1134 = vtanh.pop %v1133
  %v1135 = vmul.f32 %v1129, %v1134
  %1136 = vst [vmem:[#allocation2] sm:$0xff] %v1135
  %1137 = vst [vmem:[#allocation3] sm:$0xff] %v1133
  %s1138 = scalar_lea.vmem %s3, 24
  %1139 = vst [vmem:[%s1138] sm:$0xff] %v1135
  %s1140 = scalar_lea.vmem %s0, 32
  %v1141 = vld [vmem:[%s1140] sm:$0xff]
  %v1142 = vld [vmem:[#allocation2] sm:$0xff]
  %v1143 = vld [vmem:[#allocation3] sm:$0xff]
  %v1144 = vld [vmem:[%s1] sm:$0xff]
  %v1145 = vld [vmem:[%s1 + $0x8] sm:$0xff]
  %v1146 = vld [vmem:[%s1 + $0x10] sm:$0xff]
  %v1147 = vld [vmem:[%s1 + $0x18] sm:$0xff]
  %v1148 = vld [vmem:[%s1 + $0x20] sm:$0xff]
  %v1149 = vld [vmem:[%s1 + $0x28] sm:$0xff]
  %v1150 = vld [vmem:[%s1 + $0x30] sm:$0xff]
  %v1151 = vld [vmem:[%s1 + $0x38] sm:$0xff]
  %v1152 = vld [vmem:[%s1 + $0x40] sm:$0x1]
  %v1153 = vld [vmem:[%s1 + $0x48] sm:$0x1]
  %v1154 = vld [vmem:[%s1 + $0x50] sm:$0x1]
  %v1155 = vld [vmem:[%s1 + $0x58] sm:$0x1]
  %v1156 = vld [vmem:[%s2] sm:$0xff]
  %v1157 = vld [vmem:[%s2 + $0x8] sm:$0xff]
  %v1158 = vld [vmem:[%s2 + $0x10] sm:$0xff]
  %v1159 = vld [vmem:[%s2 + $0x18] sm:$0xff]
  %v1160 = vld [vmem:[%s2 + $0x20] sm:$0xff]
  %v1161 = vld [vmem:[%s2 + $0x28] sm:$0xff]
  %v1162 = vld [vmem:[%s2 + $0x30] sm:$0xff]
  %v1163 = vld [vmem:[%s2 + $0x38] sm:$0xff]
  %v1164 = vld [vmem:[%s2 + $0x40] sm:$0xff]
  %v1165 = vld [vmem:[%s2 + $0x48] sm:$0xff]
  %v1166 = vld [vmem:[%s2 + $0x50] sm:$0xff]
  %v1167 = vld [vmem:[%s2 + $0x58] sm:$0xff]
  %v1168 = vld [vmem:[%s2 + $0x60] sm:$0xff]
  %v1169 = vld [vmem:[%s2 + $0x68] sm:$0xff]
  %v1170 = vld [vmem:[%s2 + $0x70] sm:$0xff]
  %v1171 = vld [vmem:[%s2 + $0x78] sm:$0xff]
  %v1172 = vld [vmem:[%s2 + $0x80] sm:$0xff]
  %v1173 = vld [vmem:[%s2 + $0x88] sm:$0xff]
  %v1174 = vld [vmem:[%s2 + $0x90] sm:$0xff]
  %v1175 = vld [vmem:[%s2 + $0x98] sm:$0xff]
  %v1176 = vld [vmem:[%s2 + $0xa0] sm:$0xff]
  %v1177 = vld [vmem:[%s2 + $0xa8] sm:$0xff]
  %v1178 = vld [vmem:[%s2 + $0xb0] sm:$0xff]
  %v1179 = vld [vmem:[%s2 + $0xb8] sm:$0xff]
  %v1180 = vld [vmem:[%s2 + $0xc0] sm:$0xff]
  %v1181 = vld [vmem:[%s2 + $0xc8] sm:$0xff]
  %v1182 = vld [vmem:[%s2 + $0xd0] sm:$0xff]
  %v1183 = vld [vmem:[%s2 + $0xd8] sm:$0xff]
  %v1184 = vld [vmem:[%s2 + $0xe0] sm:$0xff]
  %v1185 = vld [vmem:[%s2 + $0xe8] sm:$0xff]
  %v1186 = vld [vmem:[%s2 + $0xf0] sm:$0xff]
  %v1187 = vld [vmem:[%s2 + $0xf8] sm:$0xff]
  %v1188 = vld [vmem:[%s2 + $0x100] sm:$0xff]
  %v1189 = vld [vmem:[%s2 + $0x108] sm:$0xff]
  %v1190 = vld [vmem:[%s2 + $0x110] sm:$0xff]
  %v1191 = vld [vmem:[%s2 + $0x118] sm:$0xff]
  %v1192 = vld [vmem:[%s2 + $0x120] sm:$0xff]
  %v1193 = vld [vmem:[%s2 + $0x128] sm:$0xff]
  %v1194 = vld [vmem:[%s2 + $0x130] sm:$0xff]
  %v1195 = vld [vmem:[%s2 + $0x138] sm:$0xff]
  %v1196 = vld [vmem:[%s2 + $0x140] sm:$0xff]
  %v1197 = vld [vmem:[%s2 + $0x148] sm:$0xff]
  %v1198 = vld [vmem:[%s2 + $0x150] sm:$0xff]
  %v1199 = vld [vmem:[%s2 + $0x158] sm:$0xff]
  %v1200 = vld [vmem:[%s2 + $0x160] sm:$0xff]
  %v1201 = vld [vmem:[%s2 + $0x168] sm:$0xff]
  %v1202 = vld [vmem:[%s2 + $0x170] sm:$0xff]
  %v1203 = vld [vmem:[%s2 + $0x178] sm:$0xff]
  %v1204 = vld [vmem:[%s2 + $0x180] sm:$0xff]
  %v1205 = vld [vmem:[%s2 + $0x188] sm:$0xff]
  %v1206 = vld [vmem:[%s2 + $0x190] sm:$0xff]
  %v1207 = vld [vmem:[%s2 + $0x198] sm:$0xff]
  %v1208 = vld [vmem:[%s2 + $0x1a0] sm:$0xff]
  %v1209 = vld [vmem:[%s2 + $0x1a8] sm:$0xff]
  %v1210 = vld [vmem:[%s2 + $0x1b0] sm:$0xff]
  %v1211 = vld [vmem:[%s2 + $0x1b8] sm:$0xff]
  %v1212 = vld [vmem:[%s2 + $0x1c0] sm:$0xff]
  %v1213 = vld [vmem:[%s2 + $0x1c8] sm:$0xff]
  %v1214 = vld [vmem:[%s2 + $0x1d0] sm:$0xff]
  %v1215 = vld [vmem:[%s2 + $0x1d8] sm:$0xff]
  %v1216 = vld [vmem:[%s2 + $0x1e0] sm:$0xff]
  %v1217 = vld [vmem:[%s2 + $0x1e8] sm:$0xff]
  %v1218 = vld [vmem:[%s2 + $0x1f0] sm:$0xff]
  %v1219 = vld [vmem:[%s2 + $0x1f8] sm:$0xff]
  %1220 = vmatpush.msra.mxu0 %v1216
  %1221 = vmatpush.msra.mxu0 %v1212
  %1222 = vmatpush.msra.mxu0 %v1208
  %1223 = vmatpush.msra.mxu0 %v1204
  %1224 = vmatpush.msra.mxu0 %v1200
  %1225 = vmatpush.msra.mxu0 %v1196
  %1226 = vmatpush.msra.mxu0 %v1192
  %1227 = vmatpush.msra.mxu0 %v1188
  %1228 = vmatpush.msra.mxu0 %v1184
  %1229 = vmatpush.msra.mxu0 %v1180
  %1230 = vmatpush.msra.mxu0 %v1176
  %1231 = vmatpush.msra.mxu0 %v1172
  %1232 = vmatpush.msra.mxu0 %v1168
  %1233 = vmatpush.msra.mxu0 %v1164
  %1234 = vmatpush.msra.mxu0 %v1160
  %1235 = vmatpush.msra.mxu0 %v1156
  %1236 = vmatmul.f32.gmra.mxu0 %v1142
  %v1237 = vpop.f32.mrf.mxu0
  %v1238 = vadd.f32 0.0, %v1237
  %1239 = vdwg.mxu0
  %1240 = vmatpush.msra.mxu0 %v1217
  %1241 = vmatpush.msra.mxu0 %v1213
  %1242 = vmatpush.msra.mxu0 %v1209
  %1243 = vmatpush.msra.mxu0 %v1205
  %1244 = vmatpush.msra.mxu0 %v1201
  %1245 = vmatpush.msra.mxu0 %v1197
  %1246 = vmatpush.msra.mxu0 %v1193
  %1247 = vmatpush.msra.mxu0 %v1189
  %1248 = vmatpush.msra.mxu0 %v1185
  %1249 = vmatpush.msra.mxu0 %v1181
  %1250 = vmatpush.msra.mxu0 %v1177
  %1251 = vmatpush.msra.mxu0 %v1173
  %1252 = vmatpush.msra.mxu0 %v1169
  %1253 = vmatpush.msra.mxu0 %v1165
  %1254 = vmatpush.msra.mxu0 %v1161
  %1255 = vmatpush.msra.mxu0 %v1157
  %1256 = vmatmul.f32.gmra.mxu0 %v1142
  %v1257 = vpop.f32.mrf.mxu0
  %v1258 = vadd.f32 0.0, %v1257
  %1259 = vdwg.mxu0
  %1260 = vmatpush.msra.mxu0 %v1218
  %1261 = vmatpush.msra.mxu0 %v1214
  %1262 = vmatpush.msra.mxu0 %v1210
  %1263 = vmatpush.msra.mxu0 %v1206
  %1264 = vmatpush.msra.mxu0 %v1202
  %1265 = vmatpush.msra.mxu0 %v1198
  %1266 = vmatpush.msra.mxu0 %v1194
  %1267 = vmatpush.msra.mxu0 %v1190
  %1268 = vmatpush.msra.mxu0 %v1186
  %1269 = vmatpush.msra.mxu0 %v1182
  %1270 = vmatpush.msra.mxu0 %v1178
  %1271 = vmatpush.msra.mxu0 %v1174
  %1272 = vmatpush.msra.mxu0 %v1170
  %1273 = vmatpush.msra.mxu0 %v1166
  %1274 = vmatpush.msra.mxu0 %v1162
  %1275 = vmatpush.msra.mxu0 %v1158
  %1276 = vmatmul.f32.gmra.mxu0 %v1142
  %v1277 = vpop.f32.mrf.mxu0
  %v1278 = vadd.f32 0.0, %v1277
  %1279 = vdwg.mxu0
  %1280 = vmatpush.msra.mxu0 %v1219
  %1281 = vmatpush.msra.mxu0 %v1215
  %1282 = vmatpush.msra.mxu0 %v1211
  %1283 = vmatpush.msra.mxu0 %v1207
  %1284 = vmatpush.msra.mxu0 %v1203
  %1285 = vmatpush.msra.mxu0 %v1199
  %1286 = vmatpush.msra.mxu0 %v1195
  %1287 = vmatpush.msra.mxu0 %v1191
  %1288 = vmatpush.msra.mxu0 %v1187
  %1289 = vmatpush.msra.mxu0 %v1183
  %1290 = vmatpush.msra.mxu0 %v1179
  %1291 = vmatpush.msra.mxu0 %v1175
  %1292 = vmatpush.msra.mxu0 %v1171
  %1293 = vmatpush.msra.mxu0 %v1167
  %1294 = vmatpush.msra.mxu0 %v1163
  %1295 = vmatpush.msra.mxu0 %v1159
  %1296 = vmatmul.f32.gmra.mxu0 %v1142
  %v1297 = vpop.f32.mrf.mxu0
  %v1298 = vadd.f32 0.0, %v1297
  %1299 = vdwg.mxu0
  %v1301 = vsel %vm179, %v1141, 0
  %v1304 = vsel %vm183, %v1152, 0
  %v1307 = vsel %vm183, %v1153, 0
  %v1310 = vsel %vm183, %v1154, 0
  %v1313 = vsel %vm183, %v1155, 0
  %1315 = vmatpush.msra.mxu0 0.0
  %1316 = vmatpush.msra.mxu0 0.0
  %1317 = vmatpush.msra.mxu0 0.0
  %1318 = vmatpush.msra.mxu0 0.0
  %1319 = vmatpush.msra.mxu0 0.0
  %1320 = vmatpush.msra.mxu0 0.0
  %1321 = vmatpush.msra.mxu0 0.0
  %1322 = vmatpush.msra.mxu0 0.0
  %1323 = vmatpush.msra.mxu0 0.0
  %1324 = vmatpush.msra.mxu0 0.0
  %1325 = vmatpush.msra.mxu0 0.0
  %1326 = vmatpush.msra.mxu0 0.0
  %1327 = vmatpush.msra.mxu0 0.0
  %1328 = vmatpush.msra.mxu0 %v1304
  %1329 = vmatpush.msra.mxu0 %v1148
  %1330 = vmatpush.msra.mxu0 %v1144
  %1331 = vmatmul.f32.gmra.mxu0 %v1301
  %v1332 = vpop.f32.mrf.mxu0
  %v1333 = vadd.f32 %v1238, %v1332
  %1334 = vdwg.mxu0
  %1335 = vmatpush.msra.mxu0 0.0
  %1336 = vmatpush.msra.mxu0 0.0
  %1337 = vmatpush.msra.mxu0 0.0
  %1338 = vmatpush.msra.mxu0 0.0
  %1339 = vmatpush.msra.mxu0 0.0
  %1340 = vmatpush.msra.mxu0 0.0
  %1341 = vmatpush.msra.mxu0 0.0
  %1342 = vmatpush.msra.mxu0 0.0
  %1343 = vmatpush.msra.mxu0 0.0
  %1344 = vmatpush.msra.mxu0 0.0
  %1345 = vmatpush.msra.mxu0 0.0
  %1346 = vmatpush.msra.mxu0 0.0
  %1347 = vmatpush.msra.mxu0 0.0
  %1348 = vmatpush.msra.mxu0 %v1307
  %1349 = vmatpush.msra.mxu0 %v1149
  %1350 = vmatpush.msra.mxu0 %v1145
  %1351 = vmatmul.f32.gmra.mxu0 %v1301
  %v1352 = vpop.f32.mrf.mxu0
  %v1353 = vadd.f32 %v1258, %v1352
  %1354 = vdwg.mxu0
  %1355 = vmatpush.msra.mxu0 0.0
  %1356 = vmatpush.msra.mxu0 0.0
  %1357 = vmatpush.msra.mxu0 0.0
  %1358 = vmatpush.msra.mxu0 0.0
  %1359 = vmatpush.msra.mxu0 0.0
  %1360 = vmatpush.msra.mxu0 0.0
  %1361 = vmatpush.msra.mxu0 0.0
  %1362 = vmatpush.msra.mxu0 0.0
  %1363 = vmatpush.msra.mxu0 0.0
  %1364 = vmatpush.msra.mxu0 0.0
  %1365 = vmatpush.msra.mxu0 0.0
  %1366 = vmatpush.msra.mxu0 0.0
  %1367 = vmatpush.msra.mxu0 0.0
  %1368 = vmatpush.msra.mxu0 %v1310
  %1369 = vmatpush.msra.mxu0 %v1150
  %1370 = vmatpush.msra.mxu0 %v1146
  %1371 = vmatmul.f32.gmra.mxu0 %v1301
  %v1372 = vpop.f32.mrf.mxu0
  %v1373 = vadd.f32 %v1278, %v1372
  %1374 = vdwg.mxu0
  %1375 = vmatpush.msra.mxu0 0.0
  %1376 = vmatpush.msra.mxu0 0.0
  %1377 = vmatpush.msra.mxu0 0.0
  %1378 = vmatpush.msra.mxu0 0.0
  %1379 = vmatpush.msra.mxu0 0.0
  %1380 = vmatpush.msra.mxu0 0.0
  %1381 = vmatpush.msra.mxu0 0.0
  %1382 = vmatpush.msra.mxu0 0.0
  %1383 = vmatpush.msra.mxu0 0.0
  %1384 = vmatpush.msra.mxu0 0.0
  %1385 = vmatpush.msra.mxu0 0.0
  %1386 = vmatpush.msra.mxu0 0.0
  %1387 = vmatpush.msra.mxu0 0.0
  %1388 = vmatpush.msra.mxu0 %v1313
  %1389 = vmatpush.msra.mxu0 %v1151
  %1390 = vmatpush.msra.mxu0 %v1147
  %1391 = vmatmul.f32.gmra.mxu0 %v1301
  %v1392 = vpop.f32.mrf.mxu0
  %v1393 = vadd.f32 %v1298, %v1392
  %1394 = vdwg.mxu0
  %v1395 = vsub.f32 0.0, %v1333
  %v1396 = vsub.f32 0.0, %v1353
  %v1397 = vsub.f32 0.0, %v1373
  %v1398 = vmul.f32 %v1395, 1.442695
  %v1399 = vpow.pop %v1398
  %v1400 = vmul.f32 %v1396, 1.442695
  %v1401 = vpow.pop %v1400
  %v1402 = vmul.f32 %v1397, 1.442695
  %v1403 = vpow.pop %v1402
  %v1404 = vadd.f32 %v1399, 1.0
  %v1405 = vadd.f32 %v1401, 1.0
  %v1406 = vadd.f32 %v1403, 1.0
  %v1407 = vrcp.pop %v1404
  %v1408 = vrcp.pop %v1405
  %v1409 = vrcp.pop %v1406
  %v1410 = vtanh.pop %v1393
  %v1411 = vmul.f32 %v1408, %v1143
  %v1412 = vmul.f32 %v1407, %v1410
  %v1413 = vadd.f32 %v1411, %v1412
  %v1414 = vtanh.pop %v1413
  %v1415 = vmul.f32 %v1409, %v1414
  %1416 = vst [vmem:[#allocation2] sm:$0xff] %v1415
  %1417 = vst [vmem:[#allocation3] sm:$0xff] %v1413
  %s1418 = scalar_lea.vmem %s3, 32
  %1419 = vst [vmem:[%s1418] sm:$0xff] %v1415
  %s1420 = scalar_lea.vmem %s0, 40
  %v1421 = vld [vmem:[%s1420] sm:$0xff]
  %v1422 = vld [vmem:[#allocation2] sm:$0xff]
  %v1423 = vld [vmem:[#allocation3] sm:$0xff]
  %v1424 = vld [vmem:[%s1] sm:$0xff]
  %v1425 = vld [vmem:[%s1 + $0x8] sm:$0xff]
  %v1426 = vld [vmem:[%s1 + $0x10] sm:$0xff]
  %v1427 = vld [vmem:[%s1 + $0x18] sm:$0xff]
  %v1428 = vld [vmem:[%s1 + $0x20] sm:$0xff]
  %v1429 = vld [vmem:[%s1 + $0x28] sm:$0xff]
  %v1430 = vld [vmem:[%s1 + $0x30] sm:$0xff]
  %v1431 = vld [vmem:[%s1 + $0x38] sm:$0xff]
  %v1432 = vld [vmem:[%s1 + $0x40] sm:$0x1]
  %v1433 = vld [vmem:[%s1 + $0x48] sm:$0x1]
  %v1434 = vld [vmem:[%s1 + $0x50] sm:$0x1]
  %v1435 = vld [vmem:[%s1 + $0x58] sm:$0x1]
  %v1436 = vld [vmem:[%s2] sm:$0xff]
  %v1437 = vld [vmem:[%s2 + $0x8] sm:$0xff]
  %v1438 = vld [vmem:[%s2 + $0x10] sm:$0xff]
  %v1439 = vld [vmem:[%s2 + $0x18] sm:$0xff]
  %v1440 = vld [vmem:[%s2 + $0x20] sm:$0xff]
  %v1441 = vld [vmem:[%s2 + $0x28] sm:$0xff]
  %v1442 = vld [vmem:[%s2 + $0x30] sm:$0xff]
  %v1443 = vld [vmem:[%s2 + $0x38] sm:$0xff]
  %v1444 = vld [vmem:[%s2 + $0x40] sm:$0xff]
  %v1445 = vld [vmem:[%s2 + $0x48] sm:$0xff]
  %v1446 = vld [vmem:[%s2 + $0x50] sm:$0xff]
  %v1447 = vld [vmem:[%s2 + $0x58] sm:$0xff]
  %v1448 = vld [vmem:[%s2 + $0x60] sm:$0xff]
  %v1449 = vld [vmem:[%s2 + $0x68] sm:$0xff]
  %v1450 = vld [vmem:[%s2 + $0x70] sm:$0xff]
  %v1451 = vld [vmem:[%s2 + $0x78] sm:$0xff]
  %v1452 = vld [vmem:[%s2 + $0x80] sm:$0xff]
  %v1453 = vld [vmem:[%s2 + $0x88] sm:$0xff]
  %v1454 = vld [vmem:[%s2 + $0x90] sm:$0xff]
  %v1455 = vld [vmem:[%s2 + $0x98] sm:$0xff]
  %v1456 = vld [vmem:[%s2 + $0xa0] sm:$0xff]
  %v1457 = vld [vmem:[%s2 + $0xa8] sm:$0xff]
  %v1458 = vld [vmem:[%s2 + $0xb0] sm:$0xff]
  %v1459 = vld [vmem:[%s2 + $0xb8] sm:$0xff]
  %v1460 = vld [vmem:[%s2 + $0xc0] sm:$0xff]
  %v1461 = vld [vmem:[%s2 + $0xc8] sm:$0xff]
  %v1462 = vld [vmem:[%s2 + $0xd0] sm:$0xff]
  %v1463 = vld [vmem:[%s2 + $0xd8] sm:$0xff]
  %v1464 = vld [vmem:[%s2 + $0xe0] sm:$0xff]
  %v1465 = vld [vmem:[%s2 + $0xe8] sm:$0xff]
  %v1466 = vld [vmem:[%s2 + $0xf0] sm:$0xff]
  %v1467 = vld [vmem:[%s2 + $0xf8] sm:$0xff]
  %v1468 = vld [vmem:[%s2 + $0x100] sm:$0xff]
  %v1469 = vld [vmem:[%s2 + $0x108] sm:$0xff]
  %v1470 = vld [vmem:[%s2 + $0x110] sm:$0xff]
  %v1471 = vld [vmem:[%s2 + $0x118] sm:$0xff]
  %v1472 = vld [vmem:[%s2 + $0x120] sm:$0xff]
  %v1473 = vld [vmem:[%s2 + $0x128] sm:$0xff]
  %v1474 = vld [vmem:[%s2 + $0x130] sm:$0xff]
  %v1475 = vld [vmem:[%s2 + $0x138] sm:$0xff]
  %v1476 = vld [vmem:[%s2 + $0x140] sm:$0xff]
  %v1477 = vld [vmem:[%s2 + $0x148] sm:$0xff]
  %v1478 = vld [vmem:[%s2 + $0x150] sm:$0xff]
  %v1479 = vld [vmem:[%s2 + $0x158] sm:$0xff]
  %v1480 = vld [vmem:[%s2 + $0x160] sm:$0xff]
  %v1481 = vld [vmem:[%s2 + $0x168] sm:$0xff]
  %v1482 = vld [vmem:[%s2 + $0x170] sm:$0xff]
  %v1483 = vld [vmem:[%s2 + $0x178] sm:$0xff]
  %v1484 = vld [vmem:[%s2 + $0x180] sm:$0xff]
  %v1485 = vld [vmem:[%s2 + $0x188] sm:$0xff]
  %v1486 = vld [vmem:[%s2 + $0x190] sm:$0xff]
  %v1487 = vld [vmem:[%s2 + $0x198] sm:$0xff]
  %v1488 = vld [vmem:[%s2 + $0x1a0] sm:$0xff]
  %v1489 = vld [vmem:[%s2 + $0x1a8] sm:$0xff]
  %v1490 = vld [vmem:[%s2 + $0x1b0] sm:$0xff]
  %v1491 = vld [vmem:[%s2 + $0x1b8] sm:$0xff]
  %v1492 = vld [vmem:[%s2 + $0x1c0] sm:$0xff]
  %v1493 = vld [vmem:[%s2 + $0x1c8] sm:$0xff]
  %v1494 = vld [vmem:[%s2 + $0x1d0] sm:$0xff]
  %v1495 = vld [vmem:[%s2 + $0x1d8] sm:$0xff]
  %v1496 = vld [vmem:[%s2 + $0x1e0] sm:$0xff]
  %v1497 = vld [vmem:[%s2 + $0x1e8] sm:$0xff]
  %v1498 = vld [vmem:[%s2 + $0x1f0] sm:$0xff]
  %v1499 = vld [vmem:[%s2 + $0x1f8] sm:$0xff]
  %1500 = vmatpush.msra.mxu0 %v1496
  %1501 = vmatpush.msra.mxu0 %v1492
  %1502 = vmatpush.msra.mxu0 %v1488
  %1503 = vmatpush.msra.mxu0 %v1484
  %1504 = vmatpush.msra.mxu0 %v1480
  %1505 = vmatpush.msra.mxu0 %v1476
  %1506 = vmatpush.msra.mxu0 %v1472
  %1507 = vmatpush.msra.mxu0 %v1468
  %1508 = vmatpush.msra.mxu0 %v1464
  %1509 = vmatpush.msra.mxu0 %v1460
  %1510 = vmatpush.msra.mxu0 %v1456
  %1511 = vmatpush.msra.mxu0 %v1452
  %1512 = vmatpush.msra.mxu0 %v1448
  %1513 = vmatpush.msra.mxu0 %v1444
  %1514 = vmatpush.msra.mxu0 %v1440
  %1515 = vmatpush.msra.mxu0 %v1436
  %1516 = vmatmul.f32.gmra.mxu0 %v1422
  %v1517 = vpop.f32.mrf.mxu0
  %v1518 = vadd.f32 0.0, %v1517
  %1519 = vdwg.mxu0
  %1520 = vmatpush.msra.mxu0 %v1497
  %1521 = vmatpush.msra.mxu0 %v1493
  %1522 = vmatpush.msra.mxu0 %v1489
  %1523 = vmatpush.msra.mxu0 %v1485
  %1524 = vmatpush.msra.mxu0 %v1481
  %1525 = vmatpush.msra.mxu0 %v1477
  %1526 = vmatpush.msra.mxu0 %v1473
  %1527 = vmatpush.msra.mxu0 %v1469
  %1528 = vmatpush.msra.mxu0 %v1465
  %1529 = vmatpush.msra.mxu0 %v1461
  %1530 = vmatpush.msra.mxu0 %v1457
  %1531 = vmatpush.msra.mxu0 %v1453
  %1532 = vmatpush.msra.mxu0 %v1449
  %1533 = vmatpush.msra.mxu0 %v1445
  %1534 = vmatpush.msra.mxu0 %v1441
  %1535 = vmatpush.msra.mxu0 %v1437
  %1536 = vmatmul.f32.gmra.mxu0 %v1422
  %v1537 = vpop.f32.mrf.mxu0
  %v1538 = vadd.f32 0.0, %v1537
  %1539 = vdwg.mxu0
  %1540 = vmatpush.msra.mxu0 %v1498
  %1541 = vmatpush.msra.mxu0 %v1494
  %1542 = vmatpush.msra.mxu0 %v1490
  %1543 = vmatpush.msra.mxu0 %v1486
  %1544 = vmatpush.msra.mxu0 %v1482
  %1545 = vmatpush.msra.mxu0 %v1478
  %1546 = vmatpush.msra.mxu0 %v1474
  %1547 = vmatpush.msra.mxu0 %v1470
  %1548 = vmatpush.msra.mxu0 %v1466
  %1549 = vmatpush.msra.mxu0 %v1462
  %1550 = vmatpush.msra.mxu0 %v1458
  %1551 = vmatpush.msra.mxu0 %v1454
  %1552 = vmatpush.msra.mxu0 %v1450
  %1553 = vmatpush.msra.mxu0 %v1446
  %1554 = vmatpush.msra.mxu0 %v1442
  %1555 = vmatpush.msra.mxu0 %v1438
  %1556 = vmatmul.f32.gmra.mxu0 %v1422
  %v1557 = vpop.f32.mrf.mxu0
  %v1558 = vadd.f32 0.0, %v1557
  %1559 = vdwg.mxu0
  %1560 = vmatpush.msra.mxu0 %v1499
  %1561 = vmatpush.msra.mxu0 %v1495
  %1562 = vmatpush.msra.mxu0 %v1491
  %1563 = vmatpush.msra.mxu0 %v1487
  %1564 = vmatpush.msra.mxu0 %v1483
  %1565 = vmatpush.msra.mxu0 %v1479
  %1566 = vmatpush.msra.mxu0 %v1475
  %1567 = vmatpush.msra.mxu0 %v1471
  %1568 = vmatpush.msra.mxu0 %v1467
  %1569 = vmatpush.msra.mxu0 %v1463
  %1570 = vmatpush.msra.mxu0 %v1459
  %1571 = vmatpush.msra.mxu0 %v1455
  %1572 = vmatpush.msra.mxu0 %v1451
  %1573 = vmatpush.msra.mxu0 %v1447
  %1574 = vmatpush.msra.mxu0 %v1443
  %1575 = vmatpush.msra.mxu0 %v1439
  %1576 = vmatmul.f32.gmra.mxu0 %v1422
  %v1577 = vpop.f32.mrf.mxu0
  %v1578 = vadd.f32 0.0, %v1577
  %1579 = vdwg.mxu0
  %v1581 = vsel %vm179, %v1421, 0
  %v1584 = vsel %vm183, %v1432, 0
  %v1587 = vsel %vm183, %v1433, 0
  %v1590 = vsel %vm183, %v1434, 0
  %v1593 = vsel %vm183, %v1435, 0
  %1595 = vmatpush.msra.mxu0 0.0
  %1596 = vmatpush.msra.mxu0 0.0
  %1597 = vmatpush.msra.mxu0 0.0
  %1598 = vmatpush.msra.mxu0 0.0
  %1599 = vmatpush.msra.mxu0 0.0
  %1600 = vmatpush.msra.mxu0 0.0
  %1601 = vmatpush.msra.mxu0 0.0
  %1602 = vmatpush.msra.mxu0 0.0
  %1603 = vmatpush.msra.mxu0 0.0
  %1604 = vmatpush.msra.mxu0 0.0
  %1605 = vmatpush.msra.mxu0 0.0
  %1606 = vmatpush.msra.mxu0 0.0
  %1607 = vmatpush.msra.mxu0 0.0
  %1608 = vmatpush.msra.mxu0 %v1584
  %1609 = vmatpush.msra.mxu0 %v1428
  %1610 = vmatpush.msra.mxu0 %v1424
  %1611 = vmatmul.f32.gmra.mxu0 %v1581
  %v1612 = vpop.f32.mrf.mxu0
  %v1613 = vadd.f32 %v1518, %v1612
  %1614 = vdwg.mxu0
  %1615 = vmatpush.msra.mxu0 0.0
  %1616 = vmatpush.msra.mxu0 0.0
  %1617 = vmatpush.msra.mxu0 0.0
  %1618 = vmatpush.msra.mxu0 0.0
  %1619 = vmatpush.msra.mxu0 0.0
  %1620 = vmatpush.msra.mxu0 0.0
  %1621 = vmatpush.msra.mxu0 0.0
  %1622 = vmatpush.msra.mxu0 0.0
  %1623 = vmatpush.msra.mxu0 0.0
  %1624 = vmatpush.msra.mxu0 0.0
  %1625 = vmatpush.msra.mxu0 0.0
  %1626 = vmatpush.msra.mxu0 0.0
  %1627 = vmatpush.msra.mxu0 0.0
  %1628 = vmatpush.msra.mxu0 %v1587
  %1629 = vmatpush.msra.mxu0 %v1429
  %1630 = vmatpush.msra.mxu0 %v1425
  %1631 = vmatmul.f32.gmra.mxu0 %v1581
  %v1632 = vpop.f32.mrf.mxu0
  %v1633 = vadd.f32 %v1538, %v1632
  %1634 = vdwg.mxu0
  %1635 = vmatpush.msra.mxu0 0.0
  %1636 = vmatpush.msra.mxu0 0.0
  %1637 = vmatpush.msra.mxu0 0.0
  %1638 = vmatpush.msra.mxu0 0.0
  %1639 = vmatpush.msra.mxu0 0.0
  %1640 = vmatpush.msra.mxu0 0.0
  %1641 = vmatpush.msra.mxu0 0.0
  %1642 = vmatpush.msra.mxu0 0.0
  %1643 = vmatpush.msra.mxu0 0.0
  %1644 = vmatpush.msra.mxu0 0.0
  %1645 = vmatpush.msra.mxu0 0.0
  %1646 = vmatpush.msra.mxu0 0.0
  %1647 = vmatpush.msra.mxu0 0.0
  %1648 = vmatpush.msra.mxu0 %v1590
  %1649 = vmatpush.msra.mxu0 %v1430
  %1650 = vmatpush.msra.mxu0 %v1426
  %1651 = vmatmul.f32.gmra.mxu0 %v1581
  %v1652 = vpop.f32.mrf.mxu0
  %v1653 = vadd.f32 %v1558, %v1652
  %1654 = vdwg.mxu0
  %1655 = vmatpush.msra.mxu0 0.0
  %1656 = vmatpush.msra.mxu0 0.0
  %1657 = vmatpush.msra.mxu0 0.0
  %1658 = vmatpush.msra.mxu0 0.0
  %1659 = vmatpush.msra.mxu0 0.0
  %1660 = vmatpush.msra.mxu0 0.0
  %1661 = vmatpush.msra.mxu0 0.0
  %1662 = vmatpush.msra.mxu0 0.0
  %1663 = vmatpush.msra.mxu0 0.0
  %1664 = vmatpush.msra.mxu0 0.0
  %1665 = vmatpush.msra.mxu0 0.0
  %1666 = vmatpush.msra.mxu0 0.0
  %1667 = vmatpush.msra.mxu0 0.0
  %1668 = vmatpush.msra.mxu0 %v1593
  %1669 = vmatpush.msra.mxu0 %v1431
  %1670 = vmatpush.msra.mxu0 %v1427
  %1671 = vmatmul.f32.gmra.mxu0 %v1581
  %v1672 = vpop.f32.mrf.mxu0
  %v1673 = vadd.f32 %v1578, %v1672
  %1674 = vdwg.mxu0
  %v1675 = vsub.f32 0.0, %v1613
  %v1676 = vsub.f32 0.0, %v1633
  %v1677 = vsub.f32 0.0, %v1653
  %v1678 = vmul.f32 %v1675, 1.442695
  %v1679 = vpow.pop %v1678
  %v1680 = vmul.f32 %v1676, 1.442695
  %v1681 = vpow.pop %v1680
  %v1682 = vmul.f32 %v1677, 1.442695
  %v1683 = vpow.pop %v1682
  %v1684 = vadd.f32 %v1679, 1.0
  %v1685 = vadd.f32 %v1681, 1.0
  %v1686 = vadd.f32 %v1683, 1.0
  %v1687 = vrcp.pop %v1684
  %v1688 = vrcp.pop %v1685
  %v1689 = vrcp.pop %v1686
  %v1690 = vtanh.pop %v1673
  %v1691 = vmul.f32 %v1688, %v1423
  %v1692 = vmul.f32 %v1687, %v1690
  %v1693 = vadd.f32 %v1691, %v1692
  %v1694 = vtanh.pop %v1693
  %v1695 = vmul.f32 %v1689, %v1694
  %1696 = vst [vmem:[#allocation2] sm:$0xff] %v1695
  %1697 = vst [vmem:[#allocation3] sm:$0xff] %v1693
  %s1698 = scalar_lea.vmem %s3, 40
  %1699 = vst [vmem:[%s1698] sm:$0xff] %v1695
  %s1700 = scalar_lea.vmem %s0, 48
  %v1701 = vld [vmem:[%s1700] sm:$0xff]
  %v1702 = vld [vmem:[#allocation2] sm:$0xff]
  %v1703 = vld [vmem:[#allocation3] sm:$0xff]
  %v1704 = vld [vmem:[%s1] sm:$0xff]
  %v1705 = vld [vmem:[%s1 + $0x8] sm:$0xff]
  %v1706 = vld [vmem:[%s1 + $0x10] sm:$0xff]
  %v1707 = vld [vmem:[%s1 + $0x18] sm:$0xff]
  %v1708 = vld [vmem:[%s1 + $0x20] sm:$0xff]
  %v1709 = vld [vmem:[%s1 + $0x28] sm:$0xff]
  %v1710 = vld [vmem:[%s1 + $0x30] sm:$0xff]
  %v1711 = vld [vmem:[%s1 + $0x38] sm:$0xff]
  %v1712 = vld [vmem:[%s1 + $0x40] sm:$0x1]
  %v1713 = vld [vmem:[%s1 + $0x48] sm:$0x1]
  %v1714 = vld [vmem:[%s1 + $0x50] sm:$0x1]
  %v1715 = vld [vmem:[%s1 + $0x58] sm:$0x1]
  %v1716 = vld [vmem:[%s2] sm:$0xff]
  %v1717 = vld [vmem:[%s2 + $0x8] sm:$0xff]
  %v1718 = vld [vmem:[%s2 + $0x10] sm:$0xff]
  %v1719 = vld [vmem:[%s2 + $0x18] sm:$0xff]
  %v1720 = vld [vmem:[%s2 + $0x20] sm:$0xff]
  %v1721 = vld [vmem:[%s2 + $0x28] sm:$0xff]
  %v1722 = vld [vmem:[%s2 + $0x30] sm:$0xff]
  %v1723 = vld [vmem:[%s2 + $0x38] sm:$0xff]
  %v1724 = vld [vmem:[%s2 + $0x40] sm:$0xff]
  %v1725 = vld [vmem:[%s2 + $0x48] sm:$0xff]
  %v1726 = vld [vmem:[%s2 + $0x50] sm:$0xff]
  %v1727 = vld [vmem:[%s2 + $0x58] sm:$0xff]
  %v1728 = vld [vmem:[%s2 + $0x60] sm:$0xff]
  %v1729 = vld [vmem:[%s2 + $0x68] sm:$0xff]
  %v1730 = vld [vmem:[%s2 + $0x70] sm:$0xff]
  %v1731 = vld [vmem:[%s2 + $0x78] sm:$0xff]
  %v1732 = vld [vmem:[%s2 + $0x80] sm:$0xff]
  %v1733 = vld [vmem:[%s2 + $0x88] sm:$0xff]
  %v1734 = vld [vmem:[%s2 + $0x90] sm:$0xff]
  %v1735 = vld [vmem:[%s2 + $0x98] sm:$0xff]
  %v1736 = vld [vmem:[%s2 + $0xa0] sm:$0xff]
  %v1737 = vld [vmem:[%s2 + $0xa8] sm:$0xff]
  %v1738 = vld [vmem:[%s2 + $0xb0] sm:$0xff]
  %v1739 = vld [vmem:[%s2 + $0xb8] sm:$0xff]
  %v1740 = vld [vmem:[%s2 + $0xc0] sm:$0xff]
  %v1741 = vld [vmem:[%s2 + $0xc8] sm:$0xff]
  %v1742 = vld [vmem:[%s2 + $0xd0] sm:$0xff]
  %v1743 = vld [vmem:[%s2 + $0xd8] sm:$0xff]
  %v1744 = vld [vmem:[%s2 + $0xe0] sm:$0xff]
  %v1745 = vld [vmem:[%s2 + $0xe8] sm:$0xff]
  %v1746 = vld [vmem:[%s2 + $0xf0] sm:$0xff]
  %v1747 = vld [vmem:[%s2 + $0xf8] sm:$0xff]
  %v1748 = vld [vmem:[%s2 + $0x100] sm:$0xff]
  %v1749 = vld [vmem:[%s2 + $0x108] sm:$0xff]
  %v1750 = vld [vmem:[%s2 + $0x110] sm:$0xff]
  %v1751 = vld [vmem:[%s2 + $0x118] sm:$0xff]
  %v1752 = vld [vmem:[%s2 + $0x120] sm:$0xff]
  %v1753 = vld [vmem:[%s2 + $0x128] sm:$0xff]
  %v1754 = vld [vmem:[%s2 + $0x130] sm:$0xff]
  %v1755 = vld [vmem:[%s2 + $0x138] sm:$0xff]
  %v1756 = vld [vmem:[%s2 + $0x140] sm:$0xff]
  %v1757 = vld [vmem:[%s2 + $0x148] sm:$0xff]
  %v1758 = vld [vmem:[%s2 + $0x150] sm:$0xff]
  %v1759 = vld [vmem:[%s2 + $0x158] sm:$0xff]
  %v1760 = vld [vmem:[%s2 + $0x160] sm:$0xff]
  %v1761 = vld [vmem:[%s2 + $0x168] sm:$0xff]
  %v1762 = vld [vmem:[%s2 + $0x170] sm:$0xff]
  %v1763 = vld [vmem:[%s2 + $0x178] sm:$0xff]
  %v1764 = vld [vmem:[%s2 + $0x180] sm:$0xff]
  %v1765 = vld [vmem:[%s2 + $0x188] sm:$0xff]
  %v1766 = vld [vmem:[%s2 + $0x190] sm:$0xff]
  %v1767 = vld [vmem:[%s2 + $0x198] sm:$0xff]
  %v1768 = vld [vmem:[%s2 + $0x1a0] sm:$0xff]
  %v1769 = vld [vmem:[%s2 + $0x1a8] sm:$0xff]
  %v1770 = vld [vmem:[%s2 + $0x1b0] sm:$0xff]
  %v1771 = vld [vmem:[%s2 + $0x1b8] sm:$0xff]
  %v1772 = vld [vmem:[%s2 + $0x1c0] sm:$0xff]
  %v1773 = vld [vmem:[%s2 + $0x1c8] sm:$0xff]
  %v1774 = vld [vmem:[%s2 + $0x1d0] sm:$0xff]
  %v1775 = vld [vmem:[%s2 + $0x1d8] sm:$0xff]
  %v1776 = vld [vmem:[%s2 + $0x1e0] sm:$0xff]
  %v1777 = vld [vmem:[%s2 + $0x1e8] sm:$0xff]
  %v1778 = vld [vmem:[%s2 + $0x1f0] sm:$0xff]
  %v1779 = vld [vmem:[%s2 + $0x1f8] sm:$0xff]
  %1780 = vmatpush.msra.mxu0 %v1776
  %1781 = vmatpush.msra.mxu0 %v1772
  %1782 = vmatpush.msra.mxu0 %v1768
  %1783 = vmatpush.msra.mxu0 %v1764
  %1784 = vmatpush.msra.mxu0 %v1760
  %1785 = vmatpush.msra.mxu0 %v1756
  %1786 = vmatpush.msra.mxu0 %v1752
  %1787 = vmatpush.msra.mxu0 %v1748
  %1788 = vmatpush.msra.mxu0 %v1744
  %1789 = vmatpush.msra.mxu0 %v1740
  %1790 = vmatpush.msra.mxu0 %v1736
  %1791 = vmatpush.msra.mxu0 %v1732
  %1792 = vmatpush.msra.mxu0 %v1728
  %1793 = vmatpush.msra.mxu0 %v1724
  %1794 = vmatpush.msra.mxu0 %v1720
  %1795 = vmatpush.msra.mxu0 %v1716
  %1796 = vmatmul.f32.gmra.mxu0 %v1702
  %v1797 = vpop.f32.mrf.mxu0
  %v1798 = vadd.f32 0.0, %v1797
  %1799 = vdwg.mxu0
  %1800 = vmatpush.msra.mxu0 %v1777
  %1801 = vmatpush.msra.mxu0 %v1773
  %1802 = vmatpush.msra.mxu0 %v1769
  %1803 = vmatpush.msra.mxu0 %v1765
  %1804 = vmatpush.msra.mxu0 %v1761
  %1805 = vmatpush.msra.mxu0 %v1757
  %1806 = vmatpush.msra.mxu0 %v1753
  %1807 = vmatpush.msra.mxu0 %v1749
  %1808 = vmatpush.msra.mxu0 %v1745
  %1809 = vmatpush.msra.mxu0 %v1741
  %1810 = vmatpush.msra.mxu0 %v1737
  %1811 = vmatpush.msra.mxu0 %v1733
  %1812 = vmatpush.msra.mxu0 %v1729
  %1813 = vmatpush.msra.mxu0 %v1725
  %1814 = vmatpush.msra.mxu0 %v1721
  %1815 = vmatpush.msra.mxu0 %v1717
  %1816 = vmatmul.f32.gmra.mxu0 %v1702
  %v1817 = vpop.f32.mrf.mxu0
  %v1818 = vadd.f32 0.0, %v1817
  %1819 = vdwg.mxu0
  %1820 = vmatpush.msra.mxu0 %v1778
  %1821 = vmatpush.msra.mxu0 %v1774
  %1822 = vmatpush.msra.mxu0 %v1770
  %1823 = vmatpush.msra.mxu0 %v1766
  %1824 = vmatpush.msra.mxu0 %v1762
  %1825 = vmatpush.msra.mxu0 %v1758
  %1826 = vmatpush.msra.mxu0 %v1754
  %1827 = vmatpush.msra.mxu0 %v1750
  %1828 = vmatpush.msra.mxu0 %v1746
  %1829 = vmatpush.msra.mxu0 %v1742
  %1830 = vmatpush.msra.mxu0 %v1738
  %1831 = vmatpush.msra.mxu0 %v1734
  %1832 = vmatpush.msra.mxu0 %v1730
  %1833 = vmatpush.msra.mxu0 %v1726
  %1834 = vmatpush.msra.mxu0 %v1722
  %1835 = vmatpush.msra.mxu0 %v1718
  %1836 = vmatmul.f32.gmra.mxu0 %v1702
  %v1837 = vpop.f32.mrf.mxu0
  %v1838 = vadd.f32 0.0, %v1837
  %1839 = vdwg.mxu0
  %1840 = vmatpush.msra.mxu0 %v1779
  %1841 = vmatpush.msra.mxu0 %v1775
  %1842 = vmatpush.msra.mxu0 %v1771
  %1843 = vmatpush.msra.mxu0 %v1767
  %1844 = vmatpush.msra.mxu0 %v1763
  %1845 = vmatpush.msra.mxu0 %v1759
  %1846 = vmatpush.msra.mxu0 %v1755
  %1847 = vmatpush.msra.mxu0 %v1751
  %1848 = vmatpush.msra.mxu0 %v1747
  %1849 = vmatpush.msra.mxu0 %v1743
  %1850 = vmatpush.msra.mxu0 %v1739
  %1851 = vmatpush.msra.mxu0 %v1735
  %1852 = vmatpush.msra.mxu0 %v1731
  %1853 = vmatpush.msra.mxu0 %v1727
  %1854 = vmatpush.msra.mxu0 %v1723
  %1855 = vmatpush.msra.mxu0 %v1719
  %1856 = vmatmul.f32.gmra.mxu0 %v1702
  %v1857 = vpop.f32.mrf.mxu0
  %v1858 = vadd.f32 0.0, %v1857
  %1859 = vdwg.mxu0
  %v1861 = vsel %vm179, %v1701, 0
  %v1864 = vsel %vm183, %v1712, 0
  %v1867 = vsel %vm183, %v1713, 0
  %v1870 = vsel %vm183, %v1714, 0
  %v1873 = vsel %vm183, %v1715, 0
  %1875 = vmatpush.msra.mxu0 0.0
  %1876 = vmatpush.msra.mxu0 0.0
  %1877 = vmatpush.msra.mxu0 0.0
  %1878 = vmatpush.msra.mxu0 0.0
  %1879 = vmatpush.msra.mxu0 0.0
  %1880 = vmatpush.msra.mxu0 0.0
  %1881 = vmatpush.msra.mxu0 0.0
  %1882 = vmatpush.msra.mxu0 0.0
  %1883 = vmatpush.msra.mxu0 0.0
  %1884 = vmatpush.msra.mxu0 0.0
  %1885 = vmatpush.msra.mxu0 0.0
  %1886 = vmatpush.msra.mxu0 0.0
  %1887 = vmatpush.msra.mxu0 0.0
  %1888 = vmatpush.msra.mxu0 %v1864
  %1889 = vmatpush.msra.mxu0 %v1708
  %1890 = vmatpush.msra.mxu0 %v1704
  %1891 = vmatmul.f32.gmra.mxu0 %v1861
  %v1892 = vpop.f32.mrf.mxu0
  %v1893 = vadd.f32 %v1798, %v1892
  %1894 = vdwg.mxu0
  %1895 = vmatpush.msra.mxu0 0.0
  %1896 = vmatpush.msra.mxu0 0.0
  %1897 = vmatpush.msra.mxu0 0.0
  %1898 = vmatpush.msra.mxu0 0.0
  %1899 = vmatpush.msra.mxu0 0.0
  %1900 = vmatpush.msra.mxu0 0.0
  %1901 = vmatpush.msra.mxu0 0.0
  %1902 = vmatpush.msra.mxu0 0.0
  %1903 = vmatpush.msra.mxu0 0.0
  %1904 = vmatpush.msra.mxu0 0.0
  %1905 = vmatpush.msra.mxu0 0.0
  %1906 = vmatpush.msra.mxu0 0.0
  %1907 = vmatpush.msra.mxu0 0.0
  %1908 = vmatpush.msra.mxu0 %v1867
  %1909 = vmatpush.msra.mxu0 %v1709
  %1910 = vmatpush.msra.mxu0 %v1705
  %1911 = vmatmul.f32.gmra.mxu0 %v1861
  %v1912 = vpop.f32.mrf.mxu0
  %v1913 = vadd.f32 %v1818, %v1912
  %1914 = vdwg.mxu0
  %1915 = vmatpush.msra.mxu0 0.0
  %1916 = vmatpush.msra.mxu0 0.0
  %1917 = vmatpush.msra.mxu0 0.0
  %1918 = vmatpush.msra.mxu0 0.0
  %1919 = vmatpush.msra.mxu0 0.0
  %1920 = vmatpush.msra.mxu0 0.0
  %1921 = vmatpush.msra.mxu0 0.0
  %1922 = vmatpush.msra.mxu0 0.0
  %1923 = vmatpush.msra.mxu0 0.0
  %1924 = vmatpush.msra.mxu0 0.0
  %1925 = vmatpush.msra.mxu0 0.0
  %1926 = vmatpush.msra.mxu0 0.0
  %1927 = vmatpush.msra.mxu0 0.0
  %1928 = vmatpush.msra.mxu0 %v1870
  %1929 = vmatpush.msra.mxu0 %v1710
  %1930 = vmatpush.msra.mxu0 %v1706
  %1931 = vmatmul.f32.gmra.mxu0 %v1861
  %v1932 = vpop.f32.mrf.mxu0
  %v1933 = vadd.f32 %v1838, %v1932
  %1934 = vdwg.mxu0
  %1935 = vmatpush.msra.mxu0 0.0
  %1936 = vmatpush.msra.mxu0 0.0
  %1937 = vmatpush.msra.mxu0 0.0
  %1938 = vmatpush.msra.mxu0 0.0
  %1939 = vmatpush.msra.mxu0 0.0
  %1940 = vmatpush.msra.mxu0 0.0
  %1941 = vmatpush.msra.mxu0 0.0
  %1942 = vmatpush.msra.mxu0 0.0
  %1943 = vmatpush.msra.mxu0 0.0
  %1944 = vmatpush.msra.mxu0 0.0
  %1945 = vmatpush.msra.mxu0 0.0
  %1946 = vmatpush.msra.mxu0 0.0
  %1947 = vmatpush.msra.mxu0 0.0
  %1948 = vmatpush.msra.mxu0 %v1873
  %1949 = vmatpush.msra.mxu0 %v1711
  %1950 = vmatpush.msra.mxu0 %v1707
  %1951 = vmatmul.f32.gmra.mxu0 %v1861
  %v1952 = vpop.f32.mrf.mxu0
  %v1953 = vadd.f32 %v1858, %v1952
  %1954 = vdwg.mxu0
  %v1955 = vsub.f32 0.0, %v1893
  %v1956 = vsub.f32 0.0, %v1913
  %v1957 = vsub.f32 0.0, %v1933
  %v1958 = vmul.f32 %v1955, 1.442695
  %v1959 = vpow.pop %v1958
  %v1960 = vmul.f32 %v1956, 1.442695
  %v1961 = vpow.pop %v1960
  %v1962 = vmul.f32 %v1957, 1.442695
  %v1963 = vpow.pop %v1962
  %v1964 = vadd.f32 %v1959, 1.0
  %v1965 = vadd.f32 %v1961, 1.0
  %v1966 = vadd.f32 %v1963, 1.0
  %v1967 = vrcp.pop %v1964
  %v1968 = vrcp.pop %v1965
  %v1969 = vrcp.pop %v1966
  %v1970 = vtanh.pop %v1953
  %v1971 = vmul.f32 %v1968, %v1703
  %v1972 = vmul.f32 %v1967, %v1970
  %v1973 = vadd.f32 %v1971, %v1972
  %v1974 = vtanh.pop %v1973
  %v1975 = vmul.f32 %v1969, %v1974
  %1976 = vst [vmem:[#allocation2] sm:$0xff] %v1975
  %1977 = vst [vmem:[#allocation3] sm:$0xff] %v1973
  %s1978 = scalar_lea.vmem %s3, 48
  %1979 = vst [vmem:[%s1978] sm:$0xff] %v1975
  %s1980 = scalar_lea.vmem %s0, 56
  %v1981 = vld [vmem:[%s1980] sm:$0xff]
  %v1982 = vld [vmem:[#allocation2] sm:$0xff]
  %v1983 = vld [vmem:[#allocation3] sm:$0xff]
  %v1984 = vld [vmem:[%s1] sm:$0xff]
  %v1985 = vld [vmem:[%s1 + $0x8] sm:$0xff]
  %v1986 = vld [vmem:[%s1 + $0x10] sm:$0xff]
  %v1987 = vld [vmem:[%s1 + $0x18] sm:$0xff]
  %v1988 = vld [vmem:[%s1 + $0x20] sm:$0xff]
  %v1989 = vld [vmem:[%s1 + $0x28] sm:$0xff]
  %v1990 = vld [vmem:[%s1 + $0x30] sm:$0xff]
  %v1991 = vld [vmem:[%s1 + $0x38] sm:$0xff]
  %v1992 = vld [vmem:[%s1 + $0x40] sm:$0x1]
  %v1993 = vld [vmem:[%s1 + $0x48] sm:$0x1]
  %v1994 = vld [vmem:[%s1 + $0x50] sm:$0x1]
  %v1995 = vld [vmem:[%s1 + $0x58] sm:$0x1]
  %v1996 = vld [vmem:[%s2] sm:$0xff]
  %v1997 = vld [vmem:[%s2 + $0x8] sm:$0xff]
  %v1998 = vld [vmem:[%s2 + $0x10] sm:$0xff]
  %v1999 = vld [vmem:[%s2 + $0x18] sm:$0xff]
  %v2000 = vld [vmem:[%s2 + $0x20] sm:$0xff]
  %v2001 = vld [vmem:[%s2 + $0x28] sm:$0xff]
  %v2002 = vld [vmem:[%s2 + $0x30] sm:$0xff]
  %v2003 = vld [vmem:[%s2 + $0x38] sm:$0xff]
  %v2004 = vld [vmem:[%s2 + $0x40] sm:$0xff]
  %v2005 = vld [vmem:[%s2 + $0x48] sm:$0xff]
  %v2006 = vld [vmem:[%s2 + $0x50] sm:$0xff]
  %v2007 = vld [vmem:[%s2 + $0x58] sm:$0xff]
  %v2008 = vld [vmem:[%s2 + $0x60] sm:$0xff]
  %v2009 = vld [vmem:[%s2 + $0x68] sm:$0xff]
  %v2010 = vld [vmem:[%s2 + $0x70] sm:$0xff]
  %v2011 = vld [vmem:[%s2 + $0x78] sm:$0xff]
  %v2012 = vld [vmem:[%s2 + $0x80] sm:$0xff]
  %v2013 = vld [vmem:[%s2 + $0x88] sm:$0xff]
  %v2014 = vld [vmem:[%s2 + $0x90] sm:$0xff]
  %v2015 = vld [vmem:[%s2 + $0x98] sm:$0xff]
  %v2016 = vld [vmem:[%s2 + $0xa0] sm:$0xff]
  %v2017 = vld [vmem:[%s2 + $0xa8] sm:$0xff]
  %v2018 = vld [vmem:[%s2 + $0xb0] sm:$0xff]
  %v2019 = vld [vmem:[%s2 + $0xb8] sm:$0xff]
  %v2020 = vld [vmem:[%s2 + $0xc0] sm:$0xff]
  %v2021 = vld [vmem:[%s2 + $0xc8] sm:$0xff]
  %v2022 = vld [vmem:[%s2 + $0xd0] sm:$0xff]
  %v2023 = vld [vmem:[%s2 + $0xd8] sm:$0xff]
  %v2024 = vld [vmem:[%s2 + $0xe0] sm:$0xff]
  %v2025 = vld [vmem:[%s2 + $0xe8] sm:$0xff]
  %v2026 = vld [vmem:[%s2 + $0xf0] sm:$0xff]
  %v2027 = vld [vmem:[%s2 + $0xf8] sm:$0xff]
  %v2028 = vld [vmem:[%s2 + $0x100] sm:$0xff]
  %v2029 = vld [vmem:[%s2 + $0x108] sm:$0xff]
  %v2030 = vld [vmem:[%s2 + $0x110] sm:$0xff]
  %v2031 = vld [vmem:[%s2 + $0x118] sm:$0xff]
  %v2032 = vld [vmem:[%s2 + $0x120] sm:$0xff]
  %v2033 = vld [vmem:[%s2 + $0x128] sm:$0xff]
  %v2034 = vld [vmem:[%s2 + $0x130] sm:$0xff]
  %v2035 = vld [vmem:[%s2 + $0x138] sm:$0xff]
  %v2036 = vld [vmem:[%s2 + $0x140] sm:$0xff]
  %v2037 = vld [vmem:[%s2 + $0x148] sm:$0xff]
  %v2038 = vld [vmem:[%s2 + $0x150] sm:$0xff]
  %v2039 = vld [vmem:[%s2 + $0x158] sm:$0xff]
  %v2040 = vld [vmem:[%s2 + $0x160] sm:$0xff]
  %v2041 = vld [vmem:[%s2 + $0x168] sm:$0xff]
  %v2042 = vld [vmem:[%s2 + $0x170] sm:$0xff]
  %v2043 = vld [vmem:[%s2 + $0x178] sm:$0xff]
  %v2044 = vld [vmem:[%s2 + $0x180] sm:$0xff]
  %v2045 = vld [vmem:[%s2 + $0x188] sm:$0xff]
  %v2046 = vld [vmem:[%s2 + $0x190] sm:$0xff]
  %v2047 = vld [vmem:[%s2 + $0x198] sm:$0xff]
  %v2048 = vld [vmem:[%s2 + $0x1a0] sm:$0xff]
  %v2049 = vld [vmem:[%s2 + $0x1a8] sm:$0xff]
  %v2050 = vld [vmem:[%s2 + $0x1b0] sm:$0xff]
  %v2051 = vld [vmem:[%s2 + $0x1b8] sm:$0xff]
  %v2052 = vld [vmem:[%s2 + $0x1c0] sm:$0xff]
  %v2053 = vld [vmem:[%s2 + $0x1c8] sm:$0xff]
  %v2054 = vld [vmem:[%s2 + $0x1d0] sm:$0xff]
  %v2055 = vld [vmem:[%s2 + $0x1d8] sm:$0xff]
  %v2056 = vld [vmem:[%s2 + $0x1e0] sm:$0xff]
  %v2057 = vld [vmem:[%s2 + $0x1e8] sm:$0xff]
  %v2058 = vld [vmem:[%s2 + $0x1f0] sm:$0xff]
  %v2059 = vld [vmem:[%s2 + $0x1f8] sm:$0xff]
  %2060 = vmatpush.msra.mxu0 %v2056
  %2061 = vmatpush.msra.mxu0 %v2052
  %2062 = vmatpush.msra.mxu0 %v2048
  %2063 = vmatpush.msra.mxu0 %v2044
  %2064 = vmatpush.msra.mxu0 %v2040
  %2065 = vmatpush.msra.mxu0 %v2036
  %2066 = vmatpush.msra.mxu0 %v2032
  %2067 = vmatpush.msra.mxu0 %v2028
  %2068 = vmatpush.msra.mxu0 %v2024
  %2069 = vmatpush.msra.mxu0 %v2020
  %2070 = vmatpush.msra.mxu0 %v2016
  %2071 = vmatpush.msra.mxu0 %v2012
  %2072 = vmatpush.msra.mxu0 %v2008
  %2073 = vmatpush.msra.mxu0 %v2004
  %2074 = vmatpush.msra.mxu0 %v2000
  %2075 = vmatpush.msra.mxu0 %v1996
  %2076 = vmatmul.f32.gmra.mxu0 %v1982
  %v2077 = vpop.f32.mrf.mxu0
  %v2078 = vadd.f32 0.0, %v2077
  %2079 = vdwg.mxu0
  %2080 = vmatpush.msra.mxu0 %v2057
  %2081 = vmatpush.msra.mxu0 %v2053
  %2082 = vmatpush.msra.mxu0 %v2049
  %2083 = vmatpush.msra.mxu0 %v2045
  %2084 = vmatpush.msra.mxu0 %v2041
  %2085 = vmatpush.msra.mxu0 %v2037
  %2086 = vmatpush.msra.mxu0 %v2033
  %2087 = vmatpush.msra.mxu0 %v2029
  %2088 = vmatpush.msra.mxu0 %v2025
  %2089 = vmatpush.msra.mxu0 %v2021
  %2090 = vmatpush.msra.mxu0 %v2017
  %2091 = vmatpush.msra.mxu0 %v2013
  %2092 = vmatpush.msra.mxu0 %v2009
  %2093 = vmatpush.msra.mxu0 %v2005
  %2094 = vmatpush.msra.mxu0 %v2001
  %2095 = vmatpush.msra.mxu0 %v1997
  %2096 = vmatmul.f32.gmra.mxu0 %v1982
  %v2097 = vpop.f32.mrf.mxu0
  %v2098 = vadd.f32 0.0, %v2097
  %2099 = vdwg.mxu0
  %2100 = vmatpush.msra.mxu0 %v2058
  %2101 = vmatpush.msra.mxu0 %v2054
  %2102 = vmatpush.msra.mxu0 %v2050
  %2103 = vmatpush.msra.mxu0 %v2046
  %2104 = vmatpush.msra.mxu0 %v2042
  %2105 = vmatpush.msra.mxu0 %v2038
  %2106 = vmatpush.msra.mxu0 %v2034
  %2107 = vmatpush.msra.mxu0 %v2030
  %2108 = vmatpush.msra.mxu0 %v2026
  %2109 = vmatpush.msra.mxu0 %v2022
  %2110 = vmatpush.msra.mxu0 %v2018
  %2111 = vmatpush.msra.mxu0 %v2014
  %2112 = vmatpush.msra.mxu0 %v2010
  %2113 = vmatpush.msra.mxu0 %v2006
  %2114 = vmatpush.msra.mxu0 %v2002
  %2115 = vmatpush.msra.mxu0 %v1998
  %2116 = vmatmul.f32.gmra.mxu0 %v1982
  %v2117 = vpop.f32.mrf.mxu0
  %v2118 = vadd.f32 0.0, %v2117
  %2119 = vdwg.mxu0
  %2120 = vmatpush.msra.mxu0 %v2059
  %2121 = vmatpush.msra.mxu0 %v2055
  %2122 = vmatpush.msra.mxu0 %v2051
  %2123 = vmatpush.msra.mxu0 %v2047
  %2124 = vmatpush.msra.mxu0 %v2043
  %2125 = vmatpush.msra.mxu0 %v2039
  %2126 = vmatpush.msra.mxu0 %v2035
  %2127 = vmatpush.msra.mxu0 %v2031
  %2128 = vmatpush.msra.mxu0 %v2027
  %2129 = vmatpush.msra.mxu0 %v2023
  %2130 = vmatpush.msra.mxu0 %v2019
  %2131 = vmatpush.msra.mxu0 %v2015
  %2132 = vmatpush.msra.mxu0 %v2011
  %2133 = vmatpush.msra.mxu0 %v2007
  %2134 = vmatpush.msra.mxu0 %v2003
  %2135 = vmatpush.msra.mxu0 %v1999
  %2136 = vmatmul.f32.gmra.mxu0 %v1982
  %v2137 = vpop.f32.mrf.mxu0
  %v2138 = vadd.f32 0.0, %v2137
  %2139 = vdwg.mxu0
  %v2141 = vsel %vm179, %v1981, 0
  %v2144 = vsel %vm183, %v1992, 0
  %v2147 = vsel %vm183, %v1993, 0
  %v2150 = vsel %vm183, %v1994, 0
  %v2153 = vsel %vm183, %v1995, 0
  %2155 = vmatpush.msra.mxu0 0.0
  %2156 = vmatpush.msra.mxu0 0.0
  %2157 = vmatpush.msra.mxu0 0.0
  %2158 = vmatpush.msra.mxu0 0.0
  %2159 = vmatpush.msra.mxu0 0.0
  %2160 = vmatpush.msra.mxu0 0.0
  %2161 = vmatpush.msra.mxu0 0.0
  %2162 = vmatpush.msra.mxu0 0.0
  %2163 = vmatpush.msra.mxu0 0.0
  %2164 = vmatpush.msra.mxu0 0.0
  %2165 = vmatpush.msra.mxu0 0.0
  %2166 = vmatpush.msra.mxu0 0.0
  %2167 = vmatpush.msra.mxu0 0.0
  %2168 = vmatpush.msra.mxu0 %v2144
  %2169 = vmatpush.msra.mxu0 %v1988
  %2170 = vmatpush.msra.mxu0 %v1984
  %2171 = vmatmul.f32.gmra.mxu0 %v2141
  %v2172 = vpop.f32.mrf.mxu0
  %v2173 = vadd.f32 %v2078, %v2172
  %2174 = vdwg.mxu0
  %2175 = vmatpush.msra.mxu0 0.0
  %2176 = vmatpush.msra.mxu0 0.0
  %2177 = vmatpush.msra.mxu0 0.0
  %2178 = vmatpush.msra.mxu0 0.0
  %2179 = vmatpush.msra.mxu0 0.0
  %2180 = vmatpush.msra.mxu0 0.0
  %2181 = vmatpush.msra.mxu0 0.0
  %2182 = vmatpush.msra.mxu0 0.0
  %2183 = vmatpush.msra.mxu0 0.0
  %2184 = vmatpush.msra.mxu0 0.0
  %2185 = vmatpush.msra.mxu0 0.0
  %2186 = vmatpush.msra.mxu0 0.0
  %2187 = vmatpush.msra.mxu0 0.0
  %2188 = vmatpush.msra.mxu0 %v2147
  %2189 = vmatpush.msra.mxu0 %v1989
  %2190 = vmatpush.msra.mxu0 %v1985
  %2191 = vmatmul.f32.gmra.mxu0 %v2141
  %v2192 = vpop.f32.mrf.mxu0
  %v2193 = vadd.f32 %v2098, %v2192
  %2194 = vdwg.mxu0
  %2195 = vmatpush.msra.mxu0 0.0
  %2196 = vmatpush.msra.mxu0 0.0
  %2197 = vmatpush.msra.mxu0 0.0
  %2198 = vmatpush.msra.mxu0 0.0
  %2199 = vmatpush.msra.mxu0 0.0
  %2200 = vmatpush.msra.mxu0 0.0
  %2201 = vmatpush.msra.mxu0 0.0
  %2202 = vmatpush.msra.mxu0 0.0
  %2203 = vmatpush.msra.mxu0 0.0
  %2204 = vmatpush.msra.mxu0 0.0
  %2205 = vmatpush.msra.mxu0 0.0
  %2206 = vmatpush.msra.mxu0 0.0
  %2207 = vmatpush.msra.mxu0 0.0
  %2208 = vmatpush.msra.mxu0 %v2150
  %2209 = vmatpush.msra.mxu0 %v1990
  %2210 = vmatpush.msra.mxu0 %v1986
  %2211 = vmatmul.f32.gmra.mxu0 %v2141
  %v2212 = vpop.f32.mrf.mxu0
  %v2213 = vadd.f32 %v2118, %v2212
  %2214 = vdwg.mxu0
  %2215 = vmatpush.msra.mxu0 0.0
  %2216 = vmatpush.msra.mxu0 0.0
  %2217 = vmatpush.msra.mxu0 0.0
  %2218 = vmatpush.msra.mxu0 0.0
  %2219 = vmatpush.msra.mxu0 0.0
  %2220 = vmatpush.msra.mxu0 0.0
  %2221 = vmatpush.msra.mxu0 0.0
  %2222 = vmatpush.msra.mxu0 0.0
  %2223 = vmatpush.msra.mxu0 0.0
  %2224 = vmatpush.msra.mxu0 0.0
  %2225 = vmatpush.msra.mxu0 0.0
  %2226 = vmatpush.msra.mxu0 0.0
  %2227 = vmatpush.msra.mxu0 0.0
  %2228 = vmatpush.msra.mxu0 %v2153
  %2229 = vmatpush.msra.mxu0 %v1991
  %2230 = vmatpush.msra.mxu0 %v1987
  %2231 = vmatmul.f32.gmra.mxu0 %v2141
  %v2232 = vpop.f32.mrf.mxu0
  %v2233 = vadd.f32 %v2138, %v2232
  %2234 = vdwg.mxu0
  %v2235 = vsub.f32 0.0, %v2173
  %v2236 = vsub.f32 0.0, %v2193
  %v2237 = vsub.f32 0.0, %v2213
  %v2238 = vmul.f32 %v2235, 1.442695
  %v2239 = vpow.pop %v2238
  %v2240 = vmul.f32 %v2236, 1.442695
  %v2241 = vpow.pop %v2240
  %v2242 = vmul.f32 %v2237, 1.442695
  %v2243 = vpow.pop %v2242
  %v2244 = vadd.f32 %v2239, 1.0
  %v2245 = vadd.f32 %v2241, 1.0
  %v2246 = vadd.f32 %v2243, 1.0
  %v2247 = vrcp.pop %v2244
  %v2248 = vrcp.pop %v2245
  %v2249 = vrcp.pop %v2246
  %v2250 = vtanh.pop %v2233
  %v2251 = vmul.f32 %v2248, %v1983
  %v2252 = vmul.f32 %v2247, %v2250
  %v2253 = vadd.f32 %v2251, %v2252
  %v2254 = vtanh.pop %v2253
  %v2255 = vmul.f32 %v2249, %v2254
  %2256 = vst [vmem:[#allocation2] sm:$0xff] %v2255
  %2257 = vst [vmem:[#allocation3] sm:$0xff] %v2253
  %s2258 = scalar_lea.vmem %s3, 56
  %2259 = vst [vmem:[%s2258] sm:$0xff] %v2255
  // Predicated region
  $region18: #{encoder_lstm_forward.1} parent=0 // pred_check
    _
  $region19: #{encoder_lstm_forward.1} parent=0 // pred_check_branch
    %2261 = sbr.rel (0) target = $region21
  $region20: #{encoder_lstm_forward.1} parent=0 // pred_region
    _
  $region21: #{encoder_lstm_forward.1} parent=0 // pred_fallthru
    _
  // Predicated region
  $region22: #{encoder_lstm_forward.1} parent=0 // pred_check
    _
  $region23: #{encoder_lstm_forward.1} parent=0 // pred_check_branch
    %2263 = sbr.rel (0) target = $region25
  $region24: #{encoder_lstm_forward.1} parent=0 // pred_region
    _
  $region25: #{encoder_lstm_forward.1} parent=0 // pred_fallthru
    _

</llo_original>
